<compile_context>
chip_gen: v6e
topology: v6e:2x2x1
jax: 0.10.0
libtpu: 0.0.40
codegen_flags: <defaults>
</compile_context>

<pallas_src>
import functools

import jax
import jax.numpy as jnp
from jax import lax
from jax.experimental import pallas as pl
from jax.experimental.pallas import tpu as pltpu

EPS = 1e-5
GAMMA, ZETA, TEMP = -0.1, 1.1, 2.0 / 3.0   # L0GateLayer defaults (fix_temp)


# ----------------------------------------------------------------------------
# Fused Pallas kernel: whole Layer_l03d forward for one grid step.
# ----------------------------------------------------------------------------
def _layer_l03d_kernel(x_ref, gm_ref, g1_ref, g2_ref, g3_ref,
                       w0a_ref, w0b_ref, w1a_ref, w1b_ref, w2a_ref, w2b_ref,
                       sh0a_ref, sh0b_ref, sh1a_ref, sh1b_ref, sh2a_ref, sh2b_ref,
                       o_ref, xp_ref, *, D, H, L):
    # x_ref  : (1, D, H, L)   activation; L = P*W*C lanes (P packed batch elems)
    # g*_ref : (1, 1, L)      per-(packed batch, channel) gate masks
    # w*_ref : (3, 3L, L)     kd-indexed banded weights (kw band over W,
    #                         kh stacked along K, BN scale folded, block-diag
    #                         over the packed batch elements)
    # sh*_ref: (1, L)         folded BN shift
    # o_ref  : (1, D, H, L)
    # xp_ref : (D+2, H+2, L)  padded VMEM scratch (D/H halo only)
    M = D * H

    # Zero ONLY the halo faces, every grid step (interior is fully rewritten
    # by each conv; doing it every step keeps megacore 'parallel' safe).
    xp_ref[pl.ds(0, 1)] = jnp.zeros((1, H + 2, L), jnp.float32)
    xp_ref[pl.ds(D + 1, 1)] = jnp.zeros((1, H + 2, L), jnp.float32)
    xp_ref[:, pl.ds(0, 1), :] = jnp.zeros((D + 2, 1, L), jnp.float32)
    xp_ref[:, pl.ds(H + 1, 1), :] = jnp.zeros((D + 2, 1, L), jnp.float32)

    def conv3x3x3(act, w_ref):
        """3x3x3 'same' conv on a (D*H, L) lane-folded activation: 3 matmuls."""
        # Write the interior of the padded scratch, read it back once and
        # build the kh-stacked (im2col along H) operand entirely in registers.
        xp_ref[pl.ds(1, D), pl.ds(1, H), :] = act.reshape(D, H, L)
        p = xp_ref[...]                                          # (D+2, H+2, L)
        big = jnp.concatenate(
            [p[:, kh:kh + H, :].reshape((D + 2) * H, L) for kh in range(3)],
            axis=-1)                                             # ((D+2)*H, 3L)
        # One matmul per kd tap; the kd shift is a sublane-aligned row slice.
        acc = jnp.dot(big[0:M], w_ref[0],
                      preferred_element_type=jnp.float32)
        acc = acc + jnp.dot(big[H:H + M], w_ref[1],
                            preferred_element_type=jnp.float32)
        acc = acc + jnp.dot(big[2 * H:2 * H + M], w_ref[2],
                            preferred_element_type=jnp.float32)
        return acc

    act = x_ref[...].reshape(M, L)
    gm = gm_ref[...].reshape(1, L)
    identity = act

    blocks = ((w0a_ref, sh0a_ref, w0b_ref, sh0b_ref, g1_ref),
              (w1a_ref, sh1a_ref, w1b_ref, sh1b_ref, g2_ref),
              (w2a_ref, sh2a_ref, w2b_ref, sh2b_ref, g3_ref))
    for wa_ref, sha_ref, wb_ref, shb_ref, g_ref in blocks:
        y = conv3x3x3(act, wa_ref) + sha_ref[...]              # conv1 + bn1
        y = jnp.maximum(y, 0.0) * g_ref[...].reshape(1, L)     # relu + block gate
        act = (conv3x3x3(y, wb_ref) + shb_ref[...]             # conv2 + bn2
               + identity) * gm                                 # residual + main gate
        identity = act

    o_ref[...] = act.reshape(1, D, H, L)


# ----------------------------------------------------------------------------
# Host-side parameter re-layout helpers.
# ----------------------------------------------------------------------------
def _band_weight(w, scale, W, P):
    """torch (Cout, Cin, 3,3,3) conv weight + per-Cout BN scale ->
    (3, 3*P*W*Cin, P*W*Cout): kd-indexed; kw folded into a W-band; kh folded
    into the contraction axis; block-diagonal over the P packed batch elems."""
    cout, cin = w.shape[0], w.shape[1]
    wt = jnp.transpose(w, (2, 3, 4, 1, 0)) * scale[None, None, None, None, :]
    # wt: (kd, kh, kw, Cin, Cout)
    wi = jnp.arange(W)[:, None]
    wo = jnp.arange(W)[None, :]
    kw = wi - wo + 1                                   # input w = wo + kw - 1
    valid = ((kw >= 0) & (kw <= 2)).astype(wt.dtype)
    band = wt[:, :, jnp.clip(kw, 0, 2)] * valid[None, None, :, :, None, None]
    # band: (kd, kh, wi, wo, Cin, Cout) -> (kd, kh, [wi, Cin], [wo, Cout])
    band = jnp.transpose(band, (0, 1, 2, 4, 3, 5)).reshape(3, 3, W * cin, W * cout)
    eye = jnp.eye(P, dtype=wt.dtype)
    packed = jnp.einsum('pq,dhkn->dhpkqn', eye, band)   # block-diag over P
    return packed.reshape(3, 3 * P * W * cin, P * W * cout)


def _pack_factor(N):
    """How many batch elements to pack into the lane axis."""
    if N % 2 != 0:
        return 1
    try:
        kind = jax.devices()[0].device_kind.lower()
    except Exception:
        kind = ""
    is_v7x = ("v7" in kind) or ("7x" in kind)
    # On v7x keep >= 2 grid steps so both TensorCores get work.
    if is_v7x and N < 4:
        return 1
    return 2


def _const_spec(shape, index_map):
    """Grid-invariant operand spec; single-buffered when supported."""
    try:
        return pl.BlockSpec(shape, index_map, pipeline_mode=pl.Buffered(1))
    except Exception:
        return pl.BlockSpec(shape, index_map)


# ----------------------------------------------------------------------------
# Wrapper: layout transform + single pallas_call over the (packed) batch grid.
# ----------------------------------------------------------------------------
def forward_pallas(x_ncdhw, params, masks):
    N, C, D, H, W = x_ncdhw.shape
    P = _pack_factor(N)
    G = N // P
    L = P * W * C

    # NCDHW -> (G, D, H, P*W*C): channels (and P batch elems) folded into lanes.
    x = jnp.transpose(x_ncdhw, (0, 2, 3, 4, 1))            # (N, D, H, W, C)
    x = x.reshape(G, P, D, H, W * C)
    x = jnp.transpose(x, (0, 2, 3, 1, 4)).reshape(G, D, H, L)

    def prep_block(p):
        wa = _band_weight(p["w1"], p["s1"][0], W, P)
        wb = _band_weight(p["w2"], p["s2"][0], W, P)
        sha = jnp.tile(p["sh1"][0], P * W).reshape(1, L)
        shb = jnp.tile(p["sh2"][0], P * W).reshape(1, L)
        return wa, wb, sha, shb

    w0a, w0b, sh0a, sh0b = prep_block(params["b0"])
    w1a, w1b, sh1a, sh1b = prep_block(params["b1"])
    w2a, w2b, sh2a, sh2b = prep_block(params["b2"])

    def prep_mask(m):                                       # (N, C) -> (G, 1, L)
        mm = m.reshape(G, P, 1, C)
        mm = jnp.broadcast_to(mm, (G, P, W, C))
        return mm.reshape(G, 1, L)

    gm = prep_mask(masks["main"])
    g1 = prep_mask(masks["g1"])
    g2 = prep_mask(masks["g2"])
    g3 = prep_mask(masks["g3"])

    kernel = functools.partial(_layer_l03d_kernel, D=D, H=H, L=L)
    act_spec = pl.BlockSpec((1, D, H, L), lambda n: (n, 0, 0, 0))
    mask_spec = pl.BlockSpec((1, 1, L), lambda n: (n, 0, 0))
    w_spec = _const_spec((3, 3 * L, L), lambda n: (0, 0, 0))
    sh_spec = _const_spec((1, L), lambda n: (0, 0))

    out = pl.pallas_call(
        kernel,
        out_shape=jax.ShapeDtypeStruct((G, D, H, L), jnp.float32),
        grid=(G,),
        in_specs=[act_spec] + [mask_spec] * 4 + [w_spec] * 6 + [sh_spec] * 6,
        out_specs=act_spec,
        scratch_shapes=[pltpu.VMEM((D + 2, H + 2, L), jnp.float32)],
        compiler_params=pltpu.CompilerParams(
            dimension_semantics=("parallel",),
            vmem_limit_bytes=32 * 1024 * 1024),
    )(x, gm, g1, g2, g3,
      w0a, w0b, w1a, w1b, w2a, w2b,
      sh0a, sh0b, sh1a, sh1b, sh2a, sh2b)

    out = out.reshape(G, D, H, P, W, C)
    out = jnp.transpose(out, (0, 3, 5, 1, 2, 4)).reshape(N, C, D, H, W)
    return out


# ----------------------------------------------------------------------------
# L0 gate mask (small (N, C) tensor; computed in plain JAX)
# ----------------------------------------------------------------------------
def l0_gate_mask(key, loc, batch):
    u = jax.random.uniform(key, (batch, loc.shape[0]), jnp.float32,
                           minval=1e-6, maxval=1.0 - 1e-6)
    s = jax.nn.sigmoid((jnp.log(u) - jnp.log(1.0 - u) + loc) / TEMP)
    s = s * (ZETA - GAMMA) + GAMMA
    return jnp.clip(s, 0.0, 1.0)          # hard_sigmoid


# ----------------------------------------------------------------------------
# Deterministic parameter construction (mirrors Connect_conv / Connect_bn)
# ----------------------------------------------------------------------------
def make_connect_conv(key, c_half):
    C = 2 * c_half
    k1, k2 = jax.random.split(key)
    w = jnp.zeros((C, C, 3, 3, 3), jnp.float32)     # torch (Cout,Cin,kD,kH,kW)
    w = w.at[:c_half, :c_half].set(
        0.05 * jax.random.normal(k1, (c_half, c_half, 3, 3, 3), jnp.float32))
    w = w.at[c_half:, c_half:].set(
        0.05 * jax.random.normal(k2, (c_half, c_half, 3, 3, 3), jnp.float32))
    return w


def make_connect_bn(key, c_half):
    C = 2 * c_half
    k1, k2, k3 = jax.random.split(key, 3)
    weight = jnp.concatenate([
        jax.random.uniform(k1, (c_half,), jnp.float32, 0.5, 1.5),
        jax.random.uniform(k2, (c_half,), jnp.float32, 0.5, 1.5)])
    bias = 0.1 * jax.random.normal(k3, (C,), jnp.float32)
    # inference-mode BN with default buffers (running_mean=0, running_var=1)
    scale = weight / jnp.sqrt(1.0 + EPS)
    shift = bias
    return scale.reshape(1, C), shift.reshape(1, C)


def init_params(key, c_half):
    C = 2 * c_half
    keys = jax.random.split(key, 12)
    params = {"main_loc": 1.0 + 0.01 * jax.random.normal(keys[0], (C,), jnp.float32)}

    def make_block(kc1, kb1, kc2, kb2, kloc):
        w1 = make_connect_conv(kc1, c_half)
        s1, sh1 = make_connect_bn(kb1, c_half)
        w2 = make_connect_conv(kc2, c_half)
        s2, sh2 = make_connect_bn(kb2, c_half)
        loc = 1.0 + 0.01 * jax.random.normal(kloc, (C,), jnp.float32)
        return {"w1": w1, "s1": s1, "sh1": sh1,
                "w2": w2, "s2": s2, "sh2": sh2, "loc": loc}

    params["b0"] = make_block(keys[1], keys[2], keys[3], keys[4], keys[5])
    params["b1"] = make_block(keys[6], keys[7], keys[8], keys[9], keys[10])
    # block2 is built from the SAME source convs/bns as block1 (cl*_layer[1]),
    # so its conv/bn values are identical; only its gate `loc` is fresh.
    b2 = dict(params["b1"])
    b2["loc"] = 1.0 + 0.01 * jax.random.normal(keys[11], (C,), jnp.float32)
    params["b2"] = b2
    return params


# ----------------------------------------------------------------------------
# Pure-JAX reference (for correctness check)
# ----------------------------------------------------------------------------
def _conv3d_ref(x, w):
    w_dhwio = jnp.transpose(w, (2, 3, 4, 1, 0))
    return lax.conv_general_dilated(
        x, w_dhwio, window_strides=(1, 1, 1),
        padding=((1, 1), (1, 1), (1, 1)),
        dimension_numbers=("NDHWC", "DHWIO", "NDHWC"),
        precision=lax.Precision.HIGHEST)


def forward_reference(x_ncdhw, params, masks):
    x = jnp.transpose(x_ncdhw, (0, 2, 3, 4, 1))
    main_mask = masks["main"][:, None, None, None, :]
    identity = x
    for name, gm in (("b0", masks["g1"]), ("b1", masks["g2"]), ("b2", masks["g3"])):
        p = params[name]
        y = _conv3d_ref(x, p["w1"]) * p["s1"][0] + p["sh1"][0]
        y = jnp.maximum(y, 0.0) * gm[:, None, None, None, :]
        y = _conv3d_ref(y, p["w2"]) * p["s2"][0] + p["sh2"][0]
        x = (y + identity) * main_mask
        identity = x
    return jnp.transpose(x, (0, 4, 1, 2, 3))


# ----------------------------------------------------------------------------
if __name__ == "__main__":
    key = jax.random.PRNGKey(0)
    N, C_HALF, D, H, W = 2, 4, 4, 8, 8
    C = 2 * C_HALF

    k_x, k_p, k_m = jax.random.split(key, 3)
    x = jax.random.normal(k_x, (N, C, D, H, W), jnp.float32)     # NCDHW input
    params = init_params(k_p, C_HALF)

    km = jax.random.split(k_m, 4)
    masks = {
        "main": l0_gate_mask(km[0], params["main_loc"], N),
        "g1": l0_gate_mask(km[1], params["b0"]["loc"], N),
        "g2": l0_gate_mask(km[2], params["b1"]["loc"], N),
        "g3": l0_gate_mask(km[3], params["b2"]["loc"], N),
    }

    out = jax.block_until_ready(forward_pallas(x, params, masks))
    assert out.shape == (N, C, D, H, W), out.shape

    ref = jax.block_until_ready(forward_reference(x, params, masks))
    # Tolerance accommodates the TPU MXU's reduced-precision f32 matmul passes;
    # structural errors produce O(0.1 - 1) deviations and are still caught.
    if not bool(jnp.allclose(out, ref, rtol=2e-2, atol=2e-2)):
        err = float(jnp.max(jnp.abs(out - ref)))
        raise AssertionError(
            f"Pallas kernel output mismatch vs JAX reference (max abs err {err})")

    print("KERNEL_OK")
</pallas_src>

<mosaic_0001>
module attributes {stable_mosaic.version = 11 : i64} {
  func.func @_layer_l03d_kernel(%arg0: i32, %arg1: memref<1x4x8x128xf32, #tpu.memory_space<vmem>>, %arg2: memref<1x1x128xf32, #tpu.memory_space<vmem>>, %arg3: memref<1x1x128xf32, #tpu.memory_space<vmem>>, %arg4: memref<1x1x128xf32, #tpu.memory_space<vmem>>, %arg5: memref<1x1x128xf32, #tpu.memory_space<vmem>>, %arg6: memref<3x384x128xf32, #tpu.memory_space<vmem>>, %arg7: memref<3x384x128xf32, #tpu.memory_space<vmem>>, %arg8: memref<3x384x128xf32, #tpu.memory_space<vmem>>, %arg9: memref<3x384x128xf32, #tpu.memory_space<vmem>>, %arg10: memref<3x384x128xf32, #tpu.memory_space<vmem>>, %arg11: memref<3x384x128xf32, #tpu.memory_space<vmem>>, %arg12: memref<1x128xf32, #tpu.memory_space<vmem>>, %arg13: memref<1x128xf32, #tpu.memory_space<vmem>>, %arg14: memref<1x128xf32, #tpu.memory_space<vmem>>, %arg15: memref<1x128xf32, #tpu.memory_space<vmem>>, %arg16: memref<1x128xf32, #tpu.memory_space<vmem>>, %arg17: memref<1x128xf32, #tpu.memory_space<vmem>>, %arg18: memref<1x4x8x128xf32, #tpu.memory_space<vmem>>, %arg19: memref<6x10x128xf32, #tpu.memory_space<vmem>>) attributes {dimension_semantics = [#tpu.dimension_semantics<parallel>], iteration_bounds = array<i64: 1>, scalar_prefetch = 0 : i64, scratch_operands = 1 : i64, tpu.core_type = #tpu.core_type<tc>, window_params = [{transform_indices = @transform_0, window_bounds = array<i64: 1, 4, 8, 128>}, {transform_indices = @transform_1, window_bounds = array<i64: 1, 1, 128>}, {transform_indices = @transform_2, window_bounds = array<i64: 1, 1, 128>}, {transform_indices = @transform_3, window_bounds = array<i64: 1, 1, 128>}, {transform_indices = @transform_4, window_bounds = array<i64: 1, 1, 128>}, {pipeline_mode = #tpu.pipeline_mode<synchronous>, transform_indices = @transform_5, window_bounds = array<i64: 3, 384, 128>}, {pipeline_mode = #tpu.pipeline_mode<synchronous>, transform_indices = @transform_6, window_bounds = array<i64: 3, 384, 128>}, {pipeline_mode = #tpu.pipeline_mode<synchronous>, transform_indices = @transform_7, window_bounds = array<i64: 3, 384, 128>}, {pipeline_mode = #tpu.pipeline_mode<synchronous>, transform_indices = @transform_8, window_bounds = array<i64: 3, 384, 128>}, {pipeline_mode = #tpu.pipeline_mode<synchronous>, transform_indices = @transform_9, window_bounds = array<i64: 3, 384, 128>}, {pipeline_mode = #tpu.pipeline_mode<synchronous>, transform_indices = @transform_10, window_bounds = array<i64: 3, 384, 128>}, {pipeline_mode = #tpu.pipeline_mode<synchronous>, transform_indices = @transform_11, window_bounds = array<i64: 1, 128>}, {pipeline_mode = #tpu.pipeline_mode<synchronous>, transform_indices = @transform_12, window_bounds = array<i64: 1, 128>}, {pipeline_mode = #tpu.pipeline_mode<synchronous>, transform_indices = @transform_13, window_bounds = array<i64: 1, 128>}, {pipeline_mode = #tpu.pipeline_mode<synchronous>, transform_indices = @transform_14, window_bounds = array<i64: 1, 128>}, {pipeline_mode = #tpu.pipeline_mode<synchronous>, transform_indices = @transform_15, window_bounds = array<i64: 1, 128>}, {pipeline_mode = #tpu.pipeline_mode<synchronous>, transform_indices = @transform_16, window_bounds = array<i64: 1, 128>}, {transform_indices = @transform_17, window_bounds = array<i64: 1, 4, 8, 128>}]} {
    %cst = arith.constant 0.000000e+00 : f32
    %0 = vector.broadcast %cst : f32 to vector<1x10x128xf32>
    %c0 = arith.constant 0 : index
    %c0_0 = arith.constant 0 : index
    %c0_1 = arith.constant 0 : index
    %1 = vector.load %arg19[%c0, %c0_0, %c0_1] : memref<6x10x128xf32, #tpu.memory_space<vmem>>, vector<1x10x128xf32>
    tpu.vector_store %arg19[%c0, %c0_0, %c0_1], %0 {strides = array<i32>} : memref<6x10x128xf32, #tpu.memory_space<vmem>>, vector<1x10x128xf32>,
    %cst_2 = arith.constant 0.000000e+00 : f32
    %2 = vector.broadcast %cst_2 : f32 to vector<1x10x128xf32>
    %c5 = arith.constant 5 : index
    %c0_3 = arith.constant 0 : index
    %c0_4 = arith.constant 0 : index
    %3 = vector.load %arg19[%c5, %c0_3, %c0_4] : memref<6x10x128xf32, #tpu.memory_space<vmem>>, vector<1x10x128xf32>
    tpu.vector_store %arg19[%c5, %c0_3, %c0_4], %2 {strides = array<i32>} : memref<6x10x128xf32, #tpu.memory_space<vmem>>, vector<1x10x128xf32>,
    %cst_5 = arith.constant 0.000000e+00 : f32
    %4 = vector.broadcast %cst_5 : f32 to vector<6x1x128xf32>
    %c0_6 = arith.constant 0 : index
    %c0_7 = arith.constant 0 : index
    %c0_8 = arith.constant 0 : index
    %5 = vector.load %arg19[%c0_6, %c0_7, %c0_8] : memref<6x10x128xf32, #tpu.memory_space<vmem>>, vector<6x1x128xf32>
    tpu.vector_store %arg19[%c0_6, %c0_7, %c0_8], %4 {strides = array<i32>} : memref<6x10x128xf32, #tpu.memory_space<vmem>>, vector<6x1x128xf32>,
    %cst_9 = arith.constant 0.000000e+00 : f32
    %6 = vector.broadcast %cst_9 : f32 to vector<6x1x128xf32>
    %c0_10 = arith.constant 0 : index
    %c9 = arith.constant 9 : index
    %c0_11 = arith.constant 0 : index
    %7 = vector.load %arg19[%c0_10, %c9, %c0_11] : memref<6x10x128xf32, #tpu.memory_space<vmem>>, vector<6x1x128xf32>
    tpu.vector_store %arg19[%c0_10, %c9, %c0_11], %6 {strides = array<i32>} : memref<6x10x128xf32, #tpu.memory_space<vmem>>, vector<6x1x128xf32>,
    %c0_12 = arith.constant 0 : index
    %c0_13 = arith.constant 0 : index
    %c0_14 = arith.constant 0 : index
    %c0_15 = arith.constant 0 : index
    %8 = vector.load %arg1[%c0_12, %c0_13, %c0_14, %c0_15] : memref<1x4x8x128xf32, #tpu.memory_space<vmem>>, vector<1x4x8x128xf32>
    %9 = vector.shape_cast %8 : vector<1x4x8x128xf32> to vector<32x128xf32>
    %c0_16 = arith.constant 0 : index
    %c0_17 = arith.constant 0 : index
    %c0_18 = arith.constant 0 : index
    %10 = vector.load %arg2[%c0_16, %c0_17, %c0_18] : memref<1x1x128xf32, #tpu.memory_space<vmem>>, vector<1x1x128xf32>
    %11 = vector.shape_cast %10 : vector<1x1x128xf32> to vector<1x128xf32>
    %12 = vector.shape_cast %9 : vector<32x128xf32> to vector<4x8x128xf32>
    %c1 = arith.constant 1 : index
    %c1_19 = arith.constant 1 : index
    %c0_20 = arith.constant 0 : index
    %13 = vector.load %arg19[%c1, %c1_19, %c0_20] : memref<6x10x128xf32, #tpu.memory_space<vmem>>, vector<4x8x128xf32>
    tpu.vector_store %arg19[%c1, %c1_19, %c0_20], %12 {strides = array<i32>} : memref<6x10x128xf32, #tpu.memory_space<vmem>>, vector<4x8x128xf32>,
    %c0_21 = arith.constant 0 : index
    %c0_22 = arith.constant 0 : index
    %c0_23 = arith.constant 0 : index
    %14 = vector.load %arg19[%c0_21, %c0_22, %c0_23] : memref<6x10x128xf32, #tpu.memory_space<vmem>>, vector<6x10x128xf32>
    %15 = vector.extract_strided_slice %14 {offsets = [0, 0, 0], sizes = [6, 8, 128], strides = [1, 1, 1]} : vector<6x10x128xf32> to vector<6x8x128xf32>
    %16 = vector.shape_cast %15 : vector<6x8x128xf32> to vector<48x128xf32>
    %17 = vector.extract_strided_slice %14 {offsets = [0, 1, 0], sizes = [6, 8, 128], strides = [1, 1, 1]} : vector<6x10x128xf32> to vector<6x8x128xf32>
    %18 = vector.shape_cast %17 : vector<6x8x128xf32> to vector<48x128xf32>
    %19 = vector.extract_strided_slice %14 {offsets = [0, 2, 0], sizes = [6, 8, 128], strides = [1, 1, 1]} : vector<6x10x128xf32> to vector<6x8x128xf32>
    %20 = vector.shape_cast %19 : vector<6x8x128xf32> to vector<48x128xf32>
    %21 = tpu.concatenate %16, %18, %20 in 1 : vector<48x128xf32>, vector<48x128xf32>, vector<48x128xf32> -> vector<48x384xf32>
    %22 = vector.extract_strided_slice %21 {offsets = [0, 0], sizes = [32, 384], strides = [1, 1]} : vector<48x384xf32> to vector<32x384xf32>
    %c0_24 = arith.constant 0 : index
    %c0_25 = arith.constant 0 : index
    %c0_26 = arith.constant 0 : index
    %23 = vector.load %arg6[%c0_24, %c0_25, %c0_26] : memref<3x384x128xf32, #tpu.memory_space<vmem>>, vector<1x384x128xf32>
    %24 = vector.shape_cast %23 : vector<1x384x128xf32> to vector<384x128xf32>
    %cst_27 = arith.constant dense<0.000000e+00> : vector<32x128xf32>
    %25 = tpu.matmul %22, %24, %cst_27 {dimension_numbers = #tpu.dot_dimension_numbers<[1], [0], [0], [1], [0, 0, 1, 1], [], []>} : vector<32x384xf32>, vector<384x128xf32>, vector<32x128xf32> -> vector<32x128xf32>
    %26 = vector.extract_strided_slice %21 {offsets = [8, 0], sizes = [32, 384], strides = [1, 1]} : vector<48x384xf32> to vector<32x384xf32>
    %c1_28 = arith.constant 1 : index
    %c0_29 = arith.constant 0 : index
    %c0_30 = arith.constant 0 : index
    %27 = vector.load %arg6[%c1_28, %c0_29, %c0_30] : memref<3x384x128xf32, #tpu.memory_space<vmem>>, vector<1x384x128xf32>
    %28 = vector.shape_cast %27 : vector<1x384x128xf32> to vector<384x128xf32>
    %cst_31 = arith.constant dense<0.000000e+00> : vector<32x128xf32>
    %29 = tpu.matmul %26, %28, %cst_31 {dimension_numbers = #tpu.dot_dimension_numbers<[1], [0], [0], [1], [0, 0, 1, 1], [], []>} : vector<32x384xf32>, vector<384x128xf32>, vector<32x128xf32> -> vector<32x128xf32>
    %30 = arith.addf %25, %29 : vector<32x128xf32>
    %31 = vector.extract_strided_slice %21 {offsets = [16, 0], sizes = [32, 384], strides = [1, 1]} : vector<48x384xf32> to vector<32x384xf32>
    %c2 = arith.constant 2 : index
    %c0_32 = arith.constant 0 : index
    %c0_33 = arith.constant 0 : index
    %32 = vector.load %arg6[%c2, %c0_32, %c0_33] : memref<3x384x128xf32, #tpu.memory_space<vmem>>, vector<1x384x128xf32>
    %33 = vector.shape_cast %32 : vector<1x384x128xf32> to vector<384x128xf32>
    %cst_34 = arith.constant dense<0.000000e+00> : vector<32x128xf32>
    %34 = tpu.matmul %31, %33, %cst_34 {dimension_numbers = #tpu.dot_dimension_numbers<[1], [0], [0], [1], [0, 0, 1, 1], [], []>} : vector<32x384xf32>, vector<384x128xf32>, vector<32x128xf32> -> vector<32x128xf32>
    %35 = arith.addf %30, %34 : vector<32x128xf32>
    %c0_35 = arith.constant 0 : index
    %c0_36 = arith.constant 0 : index
    %36 = vector.load %arg12[%c0_35, %c0_36] : memref<1x128xf32, #tpu.memory_space<vmem>>, vector<1x128xf32>
    %37 = vector.broadcast %36 : vector<1x128xf32> to vector<32x128xf32>
    %38 = arith.addf %35, %37 : vector<32x128xf32>
    %cst_37 = arith.constant 0.000000e+00 : f32
    %39 = vector.broadcast %cst_37 : f32 to vector<32x128xf32>
    %40 = arith.maximumf %38, %39 : vector<32x128xf32>
    %c0_38 = arith.constant 0 : index
    %c0_39 = arith.constant 0 : index
    %c0_40 = arith.constant 0 : index
    %41 = vector.load %arg3[%c0_38, %c0_39, %c0_40] : memref<1x1x128xf32, #tpu.memory_space<vmem>>, vector<1x1x128xf32>
    %42 = vector.shape_cast %41 : vector<1x1x128xf32> to vector<1x128xf32>
    %43 = vector.broadcast %42 : vector<1x128xf32> to vector<32x128xf32>
    %44 = arith.mulf %40, %43 : vector<32x128xf32>
    %45 = vector.shape_cast %44 : vector<32x128xf32> to vector<4x8x128xf32>
    %c1_41 = arith.constant 1 : index
    %c1_42 = arith.constant 1 : index
    %c0_43 = arith.constant 0 : index
    %46 = vector.load %arg19[%c1_41, %c1_42, %c0_43] : memref<6x10x128xf32, #tpu.memory_space<vmem>>, vector<4x8x128xf32>
    tpu.vector_store %arg19[%c1_41, %c1_42, %c0_43], %45 {strides = array<i32>} : memref<6x10x128xf32, #tpu.memory_space<vmem>>, vector<4x8x128xf32>,
    %c0_44 = arith.constant 0 : index
    %c0_45 = arith.constant 0 : index
    %c0_46 = arith.constant 0 : index
    %47 = vector.load %arg19[%c0_44, %c0_45, %c0_46] : memref<6x10x128xf32, #tpu.memory_space<vmem>>, vector<6x10x128xf32>
    %48 = vector.extract_strided_slice %47 {offsets = [0, 0, 0], sizes = [6, 8, 128], strides = [1, 1, 1]} : vector<6x10x128xf32> to vector<6x8x128xf32>
    %49 = vector.shape_cast %48 : vector<6x8x128xf32> to vector<48x128xf32>
    %50 = vector.extract_strided_slice %47 {offsets = [0, 1, 0], sizes = [6, 8, 128], strides = [1, 1, 1]} : vector<6x10x128xf32> to vector<6x8x128xf32>
    %51 = vector.shape_cast %50 : vector<6x8x128xf32> to vector<48x128xf32>
    %52 = vector.extract_strided_slice %47 {offsets = [0, 2, 0], sizes = [6, 8, 128], strides = [1, 1, 1]} : vector<6x10x128xf32> to vector<6x8x128xf32>
    %53 = vector.shape_cast %52 : vector<6x8x128xf32> to vector<48x128xf32>
    %54 = tpu.concatenate %49, %51, %53 in 1 : vector<48x128xf32>, vector<48x128xf32>, vector<48x128xf32> -> vector<48x384xf32>
    %55 = vector.extract_strided_slice %54 {offsets = [0, 0], sizes = [32, 384], strides = [1, 1]} : vector<48x384xf32> to vector<32x384xf32>
    %c0_47 = arith.constant 0 : index
    %c0_48 = arith.constant 0 : index
    %c0_49 = arith.constant 0 : index
    %56 = vector.load %arg7[%c0_47, %c0_48, %c0_49] : memref<3x384x128xf32, #tpu.memory_space<vmem>>, vector<1x384x128xf32>
    %57 = vector.shape_cast %56 : vector<1x384x128xf32> to vector<384x128xf32>
    %cst_50 = arith.constant dense<0.000000e+00> : vector<32x128xf32>
    %58 = tpu.matmul %55, %57, %cst_50 {dimension_numbers = #tpu.dot_dimension_numbers<[1], [0], [0], [1], [0, 0, 1, 1], [], []>} : vector<32x384xf32>, vector<384x128xf32>, vector<32x128xf32> -> vector<32x128xf32>
    %59 = vector.extract_strided_slice %54 {offsets = [8, 0], sizes = [32, 384], strides = [1, 1]} : vector<48x384xf32> to vector<32x384xf32>
    %c1_51 = arith.constant 1 : index
    %c0_52 = arith.constant 0 : index
    %c0_53 = arith.constant 0 : index
    %60 = vector.load %arg7[%c1_51, %c0_52, %c0_53] : memref<3x384x128xf32, #tpu.memory_space<vmem>>, vector<1x384x128xf32>
    %61 = vector.shape_cast %60 : vector<1x384x128xf32> to vector<384x128xf32>
    %cst_54 = arith.constant dense<0.000000e+00> : vector<32x128xf32>
    %62 = tpu.matmul %59, %61, %cst_54 {dimension_numbers = #tpu.dot_dimension_numbers<[1], [0], [0], [1], [0, 0, 1, 1], [], []>} : vector<32x384xf32>, vector<384x128xf32>, vector<32x128xf32> -> vector<32x128xf32>
    %63 = arith.addf %58, %62 : vector<32x128xf32>
    %64 = vector.extract_strided_slice %54 {offsets = [16, 0], sizes = [32, 384], strides = [1, 1]} : vector<48x384xf32> to vector<32x384xf32>
    %c2_55 = arith.constant 2 : index
    %c0_56 = arith.constant 0 : index
    %c0_57 = arith.constant 0 : index
    %65 = vector.load %arg7[%c2_55, %c0_56, %c0_57] : memref<3x384x128xf32, #tpu.memory_space<vmem>>, vector<1x384x128xf32>
    %66 = vector.shape_cast %65 : vector<1x384x128xf32> to vector<384x128xf32>
    %cst_58 = arith.constant dense<0.000000e+00> : vector<32x128xf32>
    %67 = tpu.matmul %64, %66, %cst_58 {dimension_numbers = #tpu.dot_dimension_numbers<[1], [0], [0], [1], [0, 0, 1, 1], [], []>} : vector<32x384xf32>, vector<384x128xf32>, vector<32x128xf32> -> vector<32x128xf32>
    %68 = arith.addf %63, %67 : vector<32x128xf32>
    %c0_59 = arith.constant 0 : index
    %c0_60 = arith.constant 0 : index
    %69 = vector.load %arg13[%c0_59, %c0_60] : memref<1x128xf32, #tpu.memory_space<vmem>>, vector<1x128xf32>
    %70 = vector.broadcast %69 : vector<1x128xf32> to vector<32x128xf32>
    %71 = arith.addf %68, %70 : vector<32x128xf32>
    %72 = arith.addf %71, %9 : vector<32x128xf32>
    %73 = vector.broadcast %11 : vector<1x128xf32> to vector<32x128xf32>
    %74 = arith.mulf %72, %73 : vector<32x128xf32>
    %75 = vector.shape_cast %74 : vector<32x128xf32> to vector<4x8x128xf32>
    %c1_61 = arith.constant 1 : index
    %c1_62 = arith.constant 1 : index
    %c0_63 = arith.constant 0 : index
    %76 = vector.load %arg19[%c1_61, %c1_62, %c0_63] : memref<6x10x128xf32, #tpu.memory_space<vmem>>, vector<4x8x128xf32>
    tpu.vector_store %arg19[%c1_61, %c1_62, %c0_63], %75 {strides = array<i32>} : memref<6x10x128xf32, #tpu.memory_space<vmem>>, vector<4x8x128xf32>,
    %c0_64 = arith.constant 0 : index
    %c0_65 = arith.constant 0 : index
    %c0_66 = arith.constant 0 : index
    %77 = vector.load %arg19[%c0_64, %c0_65, %c0_66] : memref<6x10x128xf32, #tpu.memory_space<vmem>>, vector<6x10x128xf32>
    %78 = vector.extract_strided_slice %77 {offsets = [0, 0, 0], sizes = [6, 8, 128], strides = [1, 1, 1]} : vector<6x10x128xf32> to vector<6x8x128xf32>
    %79 = vector.shape_cast %78 : vector<6x8x128xf32> to vector<48x128xf32>
    %80 = vector.extract_strided_slice %77 {offsets = [0, 1, 0], sizes = [6, 8, 128], strides = [1, 1, 1]} : vector<6x10x128xf32> to vector<6x8x128xf32>
    %81 = vector.shape_cast %80 : vector<6x8x128xf32> to vector<48x128xf32>
    %82 = vector.extract_strided_slice %77 {offsets = [0, 2, 0], sizes = [6, 8, 128], strides = [1, 1, 1]} : vector<6x10x128xf32> to vector<6x8x128xf32>
    %83 = vector.shape_cast %82 : vector<6x8x128xf32> to vector<48x128xf32>
    %84 = tpu.concatenate %79, %81, %83 in 1 : vector<48x128xf32>, vector<48x128xf32>, vector<48x128xf32> -> vector<48x384xf32>
    %85 = vector.extract_strided_slice %84 {offsets = [0, 0], sizes = [32, 384], strides = [1, 1]} : vector<48x384xf32> to vector<32x384xf32>
    %c0_67 = arith.constant 0 : index
    %c0_68 = arith.constant 0 : index
    %c0_69 = arith.constant 0 : index
    %86 = vector.load %arg8[%c0_67, %c0_68, %c0_69] : memref<3x384x128xf32, #tpu.memory_space<vmem>>, vector<1x384x128xf32>
    %87 = vector.shape_cast %86 : vector<1x384x128xf32> to vector<384x128xf32>
    %cst_70 = arith.constant dense<0.000000e+00> : vector<32x128xf32>
    %88 = tpu.matmul %85, %87, %cst_70 {dimension_numbers = #tpu.dot_dimension_numbers<[1], [0], [0], [1], [0, 0, 1, 1], [], []>} : vector<32x384xf32>, vector<384x128xf32>, vector<32x128xf32> -> vector<32x128xf32>
    %89 = vector.extract_strided_slice %84 {offsets = [8, 0], sizes = [32, 384], strides = [1, 1]} : vector<48x384xf32> to vector<32x384xf32>
    %c1_71 = arith.constant 1 : index
    %c0_72 = arith.constant 0 : index
    %c0_73 = arith.constant 0 : index
    %90 = vector.load %arg8[%c1_71, %c0_72, %c0_73] : memref<3x384x128xf32, #tpu.memory_space<vmem>>, vector<1x384x128xf32>
    %91 = vector.shape_cast %90 : vector<1x384x128xf32> to vector<384x128xf32>
    %cst_74 = arith.constant dense<0.000000e+00> : vector<32x128xf32>
    %92 = tpu.matmul %89, %91, %cst_74 {dimension_numbers = #tpu.dot_dimension_numbers<[1], [0], [0], [1], [0, 0, 1, 1], [], []>} : vector<32x384xf32>, vector<384x128xf32>, vector<32x128xf32> -> vector<32x128xf32>
    %93 = arith.addf %88, %92 : vector<32x128xf32>
    %94 = vector.extract_strided_slice %84 {offsets = [16, 0], sizes = [32, 384], strides = [1, 1]} : vector<48x384xf32> to vector<32x384xf32>
    %c2_75 = arith.constant 2 : index
    %c0_76 = arith.constant 0 : index
    %c0_77 = arith.constant 0 : index
    %95 = vector.load %arg8[%c2_75, %c0_76, %c0_77] : memref<3x384x128xf32, #tpu.memory_space<vmem>>, vector<1x384x128xf32>
    %96 = vector.shape_cast %95 : vector<1x384x128xf32> to vector<384x128xf32>
    %cst_78 = arith.constant dense<0.000000e+00> : vector<32x128xf32>
    %97 = tpu.matmul %94, %96, %cst_78 {dimension_numbers = #tpu.dot_dimension_numbers<[1], [0], [0], [1], [0, 0, 1, 1], [], []>} : vector<32x384xf32>, vector<384x128xf32>, vector<32x128xf32> -> vector<32x128xf32>
    %98 = arith.addf %93, %97 : vector<32x128xf32>
    %c0_79 = arith.constant 0 : index
    %c0_80 = arith.constant 0 : index
    %99 = vector.load %arg14[%c0_79, %c0_80] : memref<1x128xf32, #tpu.memory_space<vmem>>, vector<1x128xf32>
    %100 = vector.broadcast %99 : vector<1x128xf32> to vector<32x128xf32>
    %101 = arith.addf %98, %100 : vector<32x128xf32>
    %cst_81 = arith.constant 0.000000e+00 : f32
    %102 = vector.broadcast %cst_81 : f32 to vector<32x128xf32>
    %103 = arith.maximumf %101, %102 : vector<32x128xf32>
    %c0_82 = arith.constant 0 : index
    %c0_83 = arith.constant 0 : index
    %c0_84 = arith.constant 0 : index
    %104 = vector.load %arg4[%c0_82, %c0_83, %c0_84] : memref<1x1x128xf32, #tpu.memory_space<vmem>>, vector<1x1x128xf32>
    %105 = vector.shape_cast %104 : vector<1x1x128xf32> to vector<1x128xf32>
    %106 = vector.broadcast %105 : vector<1x128xf32> to vector<32x128xf32>
    %107 = arith.mulf %103, %106 : vector<32x128xf32>
    %108 = vector.shape_cast %107 : vector<32x128xf32> to vector<4x8x128xf32>
    %c1_85 = arith.constant 1 : index
    %c1_86 = arith.constant 1 : index
    %c0_87 = arith.constant 0 : index
    %109 = vector.load %arg19[%c1_85, %c1_86, %c0_87] : memref<6x10x128xf32, #tpu.memory_space<vmem>>, vector<4x8x128xf32>
    tpu.vector_store %arg19[%c1_85, %c1_86, %c0_87], %108 {strides = array<i32>} : memref<6x10x128xf32, #tpu.memory_space<vmem>>, vector<4x8x128xf32>,
    %c0_88 = arith.constant 0 : index
    %c0_89 = arith.constant 0 : index
    %c0_90 = arith.constant 0 : index
    %110 = vector.load %arg19[%c0_88, %c0_89, %c0_90] : memref<6x10x128xf32, #tpu.memory_space<vmem>>, vector<6x10x128xf32>
    %111 = vector.extract_strided_slice %110 {offsets = [0, 0, 0], sizes = [6, 8, 128], strides = [1, 1, 1]} : vector<6x10x128xf32> to vector<6x8x128xf32>
    %112 = vector.shape_cast %111 : vector<6x8x128xf32> to vector<48x128xf32>
    %113 = vector.extract_strided_slice %110 {offsets = [0, 1, 0], sizes = [6, 8, 128], strides = [1, 1, 1]} : vector<6x10x128xf32> to vector<6x8x128xf32>
    %114 = vector.shape_cast %113 : vector<6x8x128xf32> to vector<48x128xf32>
    %115 = vector.extract_strided_slice %110 {offsets = [0, 2, 0], sizes = [6, 8, 128], strides = [1, 1, 1]} : vector<6x10x128xf32> to vector<6x8x128xf32>
    %116 = vector.shape_cast %115 : vector<6x8x128xf32> to vector<48x128xf32>
    %117 = tpu.concatenate %112, %114, %116 in 1 : vector<48x128xf32>, vector<48x128xf32>, vector<48x128xf32> -> vector<48x384xf32>
    %118 = vector.extract_strided_slice %117 {offsets = [0, 0], sizes = [32, 384], strides = [1, 1]} : vector<48x384xf32> to vector<32x384xf32>
    %c0_91 = arith.constant 0 : index
    %c0_92 = arith.constant 0 : index
    %c0_93 = arith.constant 0 : index
    %119 = vector.load %arg9[%c0_91, %c0_92, %c0_93] : memref<3x384x128xf32, #tpu.memory_space<vmem>>, vector<1x384x128xf32>
    %120 = vector.shape_cast %119 : vector<1x384x128xf32> to vector<384x128xf32>
    %cst_94 = arith.constant dense<0.000000e+00> : vector<32x128xf32>
    %121 = tpu.matmul %118, %120, %cst_94 {dimension_numbers = #tpu.dot_dimension_numbers<[1], [0], [0], [1], [0, 0, 1, 1], [], []>} : vector<32x384xf32>, vector<384x128xf32>, vector<32x128xf32> -> vector<32x128xf32>
    %122 = vector.extract_strided_slice %117 {offsets = [8, 0], sizes = [32, 384], strides = [1, 1]} : vector<48x384xf32> to vector<32x384xf32>
    %c1_95 = arith.constant 1 : index
    %c0_96 = arith.constant 0 : index
    %c0_97 = arith.constant 0 : index
    %123 = vector.load %arg9[%c1_95, %c0_96, %c0_97] : memref<3x384x128xf32, #tpu.memory_space<vmem>>, vector<1x384x128xf32>
    %124 = vector.shape_cast %123 : vector<1x384x128xf32> to vector<384x128xf32>
    %cst_98 = arith.constant dense<0.000000e+00> : vector<32x128xf32>
    %125 = tpu.matmul %122, %124, %cst_98 {dimension_numbers = #tpu.dot_dimension_numbers<[1], [0], [0], [1], [0, 0, 1, 1], [], []>} : vector<32x384xf32>, vector<384x128xf32>, vector<32x128xf32> -> vector<32x128xf32>
    %126 = arith.addf %121, %125 : vector<32x128xf32>
    %127 = vector.extract_strided_slice %117 {offsets = [16, 0], sizes = [32, 384], strides = [1, 1]} : vector<48x384xf32> to vector<32x384xf32>
    %c2_99 = arith.constant 2 : index
    %c0_100 = arith.constant 0 : index
    %c0_101 = arith.constant 0 : index
    %128 = vector.load %arg9[%c2_99, %c0_100, %c0_101] : memref<3x384x128xf32, #tpu.memory_space<vmem>>, vector<1x384x128xf32>
    %129 = vector.shape_cast %128 : vector<1x384x128xf32> to vector<384x128xf32>
    %cst_102 = arith.constant dense<0.000000e+00> : vector<32x128xf32>
    %130 = tpu.matmul %127, %129, %cst_102 {dimension_numbers = #tpu.dot_dimension_numbers<[1], [0], [0], [1], [0, 0, 1, 1], [], []>} : vector<32x384xf32>, vector<384x128xf32>, vector<32x128xf32> -> vector<32x128xf32>
    %131 = arith.addf %126, %130 : vector<32x128xf32>
    %c0_103 = arith.constant 0 : index
    %c0_104 = arith.constant 0 : index
    %132 = vector.load %arg15[%c0_103, %c0_104] : memref<1x128xf32, #tpu.memory_space<vmem>>, vector<1x128xf32>
    %133 = vector.broadcast %132 : vector<1x128xf32> to vector<32x128xf32>
    %134 = arith.addf %131, %133 : vector<32x128xf32>
    %135 = arith.addf %134, %74 : vector<32x128xf32>
    %136 = vector.broadcast %11 : vector<1x128xf32> to vector<32x128xf32>
    %137 = arith.mulf %135, %136 : vector<32x128xf32>
    %138 = vector.shape_cast %137 : vector<32x128xf32> to vector<4x8x128xf32>
    %c1_105 = arith.constant 1 : index
    %c1_106 = arith.constant 1 : index
    %c0_107 = arith.constant 0 : index
    %139 = vector.load %arg19[%c1_105, %c1_106, %c0_107] : memref<6x10x128xf32, #tpu.memory_space<vmem>>, vector<4x8x128xf32>
    tpu.vector_store %arg19[%c1_105, %c1_106, %c0_107], %138 {strides = array<i32>} : memref<6x10x128xf32, #tpu.memory_space<vmem>>, vector<4x8x128xf32>,
    %c0_108 = arith.constant 0 : index
    %c0_109 = arith.constant 0 : index
    %c0_110 = arith.constant 0 : index
    %140 = vector.load %arg19[%c0_108, %c0_109, %c0_110] : memref<6x10x128xf32, #tpu.memory_space<vmem>>, vector<6x10x128xf32>
    %141 = vector.extract_strided_slice %140 {offsets = [0, 0, 0], sizes = [6, 8, 128], strides = [1, 1, 1]} : vector<6x10x128xf32> to vector<6x8x128xf32>
    %142 = vector.shape_cast %141 : vector<6x8x128xf32> to vector<48x128xf32>
    %143 = vector.extract_strided_slice %140 {offsets = [0, 1, 0], sizes = [6, 8, 128], strides = [1, 1, 1]} : vector<6x10x128xf32> to vector<6x8x128xf32>
    %144 = vector.shape_cast %143 : vector<6x8x128xf32> to vector<48x128xf32>
    %145 = vector.extract_strided_slice %140 {offsets = [0, 2, 0], sizes = [6, 8, 128], strides = [1, 1, 1]} : vector<6x10x128xf32> to vector<6x8x128xf32>
    %146 = vector.shape_cast %145 : vector<6x8x128xf32> to vector<48x128xf32>
    %147 = tpu.concatenate %142, %144, %146 in 1 : vector<48x128xf32>, vector<48x128xf32>, vector<48x128xf32> -> vector<48x384xf32>
    %148 = vector.extract_strided_slice %147 {offsets = [0, 0], sizes = [32, 384], strides = [1, 1]} : vector<48x384xf32> to vector<32x384xf32>
    %c0_111 = arith.constant 0 : index
    %c0_112 = arith.constant 0 : index
    %c0_113 = arith.constant 0 : index
    %149 = vector.load %arg10[%c0_111, %c0_112, %c0_113] : memref<3x384x128xf32, #tpu.memory_space<vmem>>, vector<1x384x128xf32>
    %150 = vector.shape_cast %149 : vector<1x384x128xf32> to vector<384x128xf32>
    %cst_114 = arith.constant dense<0.000000e+00> : vector<32x128xf32>
    %151 = tpu.matmul %148, %150, %cst_114 {dimension_numbers = #tpu.dot_dimension_numbers<[1], [0], [0], [1], [0, 0, 1, 1], [], []>} : vector<32x384xf32>, vector<384x128xf32>, vector<32x128xf32> -> vector<32x128xf32>
    %152 = vector.extract_strided_slice %147 {offsets = [8, 0], sizes = [32, 384], strides = [1, 1]} : vector<48x384xf32> to vector<32x384xf32>
    %c1_115 = arith.constant 1 : index
    %c0_116 = arith.constant 0 : index
    %c0_117 = arith.constant 0 : index
    %153 = vector.load %arg10[%c1_115, %c0_116, %c0_117] : memref<3x384x128xf32, #tpu.memory_space<vmem>>, vector<1x384x128xf32>
    %154 = vector.shape_cast %153 : vector<1x384x128xf32> to vector<384x128xf32>
    %cst_118 = arith.constant dense<0.000000e+00> : vector<32x128xf32>
    %155 = tpu.matmul %152, %154, %cst_118 {dimension_numbers = #tpu.dot_dimension_numbers<[1], [0], [0], [1], [0, 0, 1, 1], [], []>} : vector<32x384xf32>, vector<384x128xf32>, vector<32x128xf32> -> vector<32x128xf32>
    %156 = arith.addf %151, %155 : vector<32x128xf32>
    %157 = vector.extract_strided_slice %147 {offsets = [16, 0], sizes = [32, 384], strides = [1, 1]} : vector<48x384xf32> to vector<32x384xf32>
    %c2_119 = arith.constant 2 : index
    %c0_120 = arith.constant 0 : index
    %c0_121 = arith.constant 0 : index
    %158 = vector.load %arg10[%c2_119, %c0_120, %c0_121] : memref<3x384x128xf32, #tpu.memory_space<vmem>>, vector<1x384x128xf32>
    %159 = vector.shape_cast %158 : vector<1x384x128xf32> to vector<384x128xf32>
    %cst_122 = arith.constant dense<0.000000e+00> : vector<32x128xf32>
    %160 = tpu.matmul %157, %159, %cst_122 {dimension_numbers = #tpu.dot_dimension_numbers<[1], [0], [0], [1], [0, 0, 1, 1], [], []>} : vector<32x384xf32>, vector<384x128xf32>, vector<32x128xf32> -> vector<32x128xf32>
    %161 = arith.addf %156, %160 : vector<32x128xf32>
    %c0_123 = arith.constant 0 : index
    %c0_124 = arith.constant 0 : index
    %162 = vector.load %arg16[%c0_123, %c0_124] : memref<1x128xf32, #tpu.memory_space<vmem>>, vector<1x128xf32>
    %163 = vector.broadcast %162 : vector<1x128xf32> to vector<32x128xf32>
    %164 = arith.addf %161, %163 : vector<32x128xf32>
    %cst_125 = arith.constant 0.000000e+00 : f32
    %165 = vector.broadcast %cst_125 : f32 to vector<32x128xf32>
    %166 = arith.maximumf %164, %165 : vector<32x128xf32>
    %c0_126 = arith.constant 0 : index
    %c0_127 = arith.constant 0 : index
    %c0_128 = arith.constant 0 : index
    %167 = vector.load %arg5[%c0_126, %c0_127, %c0_128] : memref<1x1x128xf32, #tpu.memory_space<vmem>>, vector<1x1x128xf32>
    %168 = vector.shape_cast %167 : vector<1x1x128xf32> to vector<1x128xf32>
    %169 = vector.broadcast %168 : vector<1x128xf32> to vector<32x128xf32>
    %170 = arith.mulf %166, %169 : vector<32x128xf32>
    %171 = vector.shape_cast %170 : vector<32x128xf32> to vector<4x8x128xf32>
    %c1_129 = arith.constant 1 : index
    %c1_130 = arith.constant 1 : index
    %c0_131 = arith.constant 0 : index
    %172 = vector.load %arg19[%c1_129, %c1_130, %c0_131] : memref<6x10x128xf32, #tpu.memory_space<vmem>>, vector<4x8x128xf32>
    tpu.vector_store %arg19[%c1_129, %c1_130, %c0_131], %171 {strides = array<i32>} : memref<6x10x128xf32, #tpu.memory_space<vmem>>, vector<4x8x128xf32>,
    %c0_132 = arith.constant 0 : index
    %c0_133 = arith.constant 0 : index
    %c0_134 = arith.constant 0 : index
    %173 = vector.load %arg19[%c0_132, %c0_133, %c0_134] : memref<6x10x128xf32, #tpu.memory_space<vmem>>, vector<6x10x128xf32>
    %174 = vector.extract_strided_slice %173 {offsets = [0, 0, 0], sizes = [6, 8, 128], strides = [1, 1, 1]} : vector<6x10x128xf32> to vector<6x8x128xf32>
    %175 = vector.shape_cast %174 : vector<6x8x128xf32> to vector<48x128xf32>
    %176 = vector.extract_strided_slice %173 {offsets = [0, 1, 0], sizes = [6, 8, 128], strides = [1, 1, 1]} : vector<6x10x128xf32> to vector<6x8x128xf32>
    %177 = vector.shape_cast %176 : vector<6x8x128xf32> to vector<48x128xf32>
    %178 = vector.extract_strided_slice %173 {offsets = [0, 2, 0], sizes = [6, 8, 128], strides = [1, 1, 1]} : vector<6x10x128xf32> to vector<6x8x128xf32>
    %179 = vector.shape_cast %178 : vector<6x8x128xf32> to vector<48x128xf32>
    %180 = tpu.concatenate %175, %177, %179 in 1 : vector<48x128xf32>, vector<48x128xf32>, vector<48x128xf32> -> vector<48x384xf32>
    %181 = vector.extract_strided_slice %180 {offsets = [0, 0], sizes = [32, 384], strides = [1, 1]} : vector<48x384xf32> to vector<32x384xf32>
    %c0_135 = arith.constant 0 : index
    %c0_136 = arith.constant 0 : index
    %c0_137 = arith.constant 0 : index
    %182 = vector.load %arg11[%c0_135, %c0_136, %c0_137] : memref<3x384x128xf32, #tpu.memory_space<vmem>>, vector<1x384x128xf32>
    %183 = vector.shape_cast %182 : vector<1x384x128xf32> to vector<384x128xf32>
    %cst_138 = arith.constant dense<0.000000e+00> : vector<32x128xf32>
    %184 = tpu.matmul %181, %183, %cst_138 {dimension_numbers = #tpu.dot_dimension_numbers<[1], [0], [0], [1], [0, 0, 1, 1], [], []>} : vector<32x384xf32>, vector<384x128xf32>, vector<32x128xf32> -> vector<32x128xf32>
    %185 = vector.extract_strided_slice %180 {offsets = [8, 0], sizes = [32, 384], strides = [1, 1]} : vector<48x384xf32> to vector<32x384xf32>
    %c1_139 = arith.constant 1 : index
    %c0_140 = arith.constant 0 : index
    %c0_141 = arith.constant 0 : index
    %186 = vector.load %arg11[%c1_139, %c0_140, %c0_141] : memref<3x384x128xf32, #tpu.memory_space<vmem>>, vector<1x384x128xf32>
    %187 = vector.shape_cast %186 : vector<1x384x128xf32> to vector<384x128xf32>
    %cst_142 = arith.constant dense<0.000000e+00> : vector<32x128xf32>
    %188 = tpu.matmul %185, %187, %cst_142 {dimension_numbers = #tpu.dot_dimension_numbers<[1], [0], [0], [1], [0, 0, 1, 1], [], []>} : vector<32x384xf32>, vector<384x128xf32>, vector<32x128xf32> -> vector<32x128xf32>
    %189 = arith.addf %184, %188 : vector<32x128xf32>
    %190 = vector.extract_strided_slice %180 {offsets = [16, 0], sizes = [32, 384], strides = [1, 1]} : vector<48x384xf32> to vector<32x384xf32>
    %c2_143 = arith.constant 2 : index
    %c0_144 = arith.constant 0 : index
    %c0_145 = arith.constant 0 : index
    %191 = vector.load %arg11[%c2_143, %c0_144, %c0_145] : memref<3x384x128xf32, #tpu.memory_space<vmem>>, vector<1x384x128xf32>
    %192 = vector.shape_cast %191 : vector<1x384x128xf32> to vector<384x128xf32>
    %cst_146 = arith.constant dense<0.000000e+00> : vector<32x128xf32>
    %193 = tpu.matmul %190, %192, %cst_146 {dimension_numbers = #tpu.dot_dimension_numbers<[1], [0], [0], [1], [0, 0, 1, 1], [], []>} : vector<32x384xf32>, vector<384x128xf32>, vector<32x128xf32> -> vector<32x128xf32>
    %194 = arith.addf %189, %193 : vector<32x128xf32>
    %c0_147 = arith.constant 0 : index
    %c0_148 = arith.constant 0 : index
    %195 = vector.load %arg17[%c0_147, %c0_148] : memref<1x128xf32, #tpu.memory_space<vmem>>, vector<1x128xf32>
    %196 = vector.broadcast %195 : vector<1x128xf32> to vector<32x128xf32>
    %197 = arith.addf %194, %196 : vector<32x128xf32>
    %198 = arith.addf %197, %137 : vector<32x128xf32>
    %199 = vector.broadcast %11 : vector<1x128xf32> to vector<32x128xf32>
    %200 = arith.mulf %198, %199 : vector<32x128xf32>
    %201 = vector.shape_cast %200 : vector<32x128xf32> to vector<1x4x8x128xf32>
    %c0_149 = arith.constant 0 : index
    %c0_150 = arith.constant 0 : index
    %c0_151 = arith.constant 0 : index
    %c0_152 = arith.constant 0 : index
    %202 = vector.load %arg18[%c0_149, %c0_150, %c0_151, %c0_152] : memref<1x4x8x128xf32, #tpu.memory_space<vmem>>, vector<1x4x8x128xf32>
    tpu.vector_store %arg18[%c0_149, %c0_150, %c0_151, %c0_152], %201 {strides = array<i32>} : memref<1x4x8x128xf32, #tpu.memory_space<vmem>>, vector<1x4x8x128xf32>,
    return
  }
  func.func @transform_0(%arg0: i32) -> (i32, i32, i32, i32) {
    %c0_i32 = arith.constant 0 : i32
    %c0_i32_0 = arith.constant 0 : i32
    %c0_i32_1 = arith.constant 0 : i32
    %c0_i32_2 = arith.constant 0 : i32
    return %arg0, %c0_i32, %c0_i32_0, %c0_i32_1 : i32, i32, i32, i32
  }
  func.func @transform_1(%arg0: i32) -> (i32, i32, i32) {
    %c0_i32 = arith.constant 0 : i32
    %c0_i32_0 = arith.constant 0 : i32
    %c0_i32_1 = arith.constant 0 : i32
    return %arg0, %c0_i32, %c0_i32_0 : i32, i32, i32
  }
  func.func @transform_2(%arg0: i32) -> (i32, i32, i32) {
    %c0_i32 = arith.constant 0 : i32
    %c0_i32_0 = arith.constant 0 : i32
    %c0_i32_1 = arith.constant 0 : i32
    return %arg0, %c0_i32, %c0_i32_0 : i32, i32, i32
  }
  func.func @transform_3(%arg0: i32) -> (i32, i32, i32) {
    %c0_i32 = arith.constant 0 : i32
    %c0_i32_0 = arith.constant 0 : i32
    %c0_i32_1 = arith.constant 0 : i32
    return %arg0, %c0_i32, %c0_i32_0 : i32, i32, i32
  }
  func.func @transform_4(%arg0: i32) -> (i32, i32, i32) {
    %c0_i32 = arith.constant 0 : i32
    %c0_i32_0 = arith.constant 0 : i32
    %c0_i32_1 = arith.constant 0 : i32
    return %arg0, %c0_i32, %c0_i32_0 : i32, i32, i32
  }
  func.func @transform_5(%arg0: i32) -> (i32, i32, i32) {
    %c0_i32 = arith.constant 0 : i32
    %c0_i32_0 = arith.constant 0 : i32
    %c0_i32_1 = arith.constant 0 : i32
    %c0_i32_2 = arith.constant 0 : i32
    return %c0_i32, %c0_i32_0, %c0_i32_1 : i32, i32, i32
  }
  func.func @transform_6(%arg0: i32) -> (i32, i32, i32) {
    %c0_i32 = arith.constant 0 : i32
    %c0_i32_0 = arith.constant 0 : i32
    %c0_i32_1 = arith.constant 0 : i32
    %c0_i32_2 = arith.constant 0 : i32
    return %c0_i32, %c0_i32_0, %c0_i32_1 : i32, i32, i32
  }
  func.func @transform_7(%arg0: i32) -> (i32, i32, i32) {
    %c0_i32 = arith.constant 0 : i32
    %c0_i32_0 = arith.constant 0 : i32
    %c0_i32_1 = arith.constant 0 : i32
    %c0_i32_2 = arith.constant 0 : i32
    return %c0_i32, %c0_i32_0, %c0_i32_1 : i32, i32, i32
  }
  func.func @transform_8(%arg0: i32) -> (i32, i32, i32) {
    %c0_i32 = arith.constant 0 : i32
    %c0_i32_0 = arith.constant 0 : i32
    %c0_i32_1 = arith.constant 0 : i32
    %c0_i32_2 = arith.constant 0 : i32
    return %c0_i32, %c0_i32_0, %c0_i32_1 : i32, i32, i32
  }
  func.func @transform_9(%arg0: i32) -> (i32, i32, i32) {
    %c0_i32 = arith.constant 0 : i32
    %c0_i32_0 = arith.constant 0 : i32
    %c0_i32_1 = arith.constant 0 : i32
    %c0_i32_2 = arith.constant 0 : i32
    return %c0_i32, %c0_i32_0, %c0_i32_1 : i32, i32, i32
  }
  func.func @transform_10(%arg0: i32) -> (i32, i32, i32) {
    %c0_i32 = arith.constant 0 : i32
    %c0_i32_0 = arith.constant 0 : i32
    %c0_i32_1 = arith.constant 0 : i32
    %c0_i32_2 = arith.constant 0 : i32
    return %c0_i32, %c0_i32_0, %c0_i32_1 : i32, i32, i32
  }
  func.func @transform_11(%arg0: i32) -> (i32, i32) {
    %c0_i32 = arith.constant 0 : i32
    %c0_i32_0 = arith.constant 0 : i32
    %c0_i32_1 = arith.constant 0 : i32
    return %c0_i32, %c0_i32_0 : i32, i32
  }
  func.func @transform_12(%arg0: i32) -> (i32, i32) {
    %c0_i32 = arith.constant 0 : i32
    %c0_i32_0 = arith.constant 0 : i32
    %c0_i32_1 = arith.constant 0 : i32
    return %c0_i32, %c0_i32_0 : i32, i32
  }
  func.func @transform_13(%arg0: i32) -> (i32, i32) {
    %c0_i32 = arith.constant 0 : i32
    %c0_i32_0 = arith.constant 0 : i32
    %c0_i32_1 = arith.constant 0 : i32
    return %c0_i32, %c0_i32_0 : i32, i32
  }
  func.func @transform_14(%arg0: i32) -> (i32, i32) {
    %c0_i32 = arith.constant 0 : i32
    %c0_i32_0 = arith.constant 0 : i32
    %c0_i32_1 = arith.constant 0 : i32
    return %c0_i32, %c0_i32_0 : i32, i32
  }
  func.func @transform_15(%arg0: i32) -> (i32, i32) {
    %c0_i32 = arith.constant 0 : i32
    %c0_i32_0 = arith.constant 0 : i32
    %c0_i32_1 = arith.constant 0 : i32
    return %c0_i32, %c0_i32_0 : i32, i32
  }
  func.func @transform_16(%arg0: i32) -> (i32, i32) {
    %c0_i32 = arith.constant 0 : i32
    %c0_i32_0 = arith.constant 0 : i32
    %c0_i32_1 = arith.constant 0 : i32
    return %c0_i32, %c0_i32_0 : i32, i32
  }
  func.func @transform_17(%arg0: i32) -> (i32, i32, i32, i32) {
    %c0_i32 = arith.constant 0 : i32
    %c0_i32_0 = arith.constant 0 : i32
    %c0_i32_1 = arith.constant 0 : i32
    %c0_i32_2 = arith.constant 0 : i32
    return %arg0, %c0_i32, %c0_i32_0, %c0_i32_1 : i32, i32, i32, i32
  }
}

</mosaic_0001>

<llo_original>
// kernel: tpu_custom_call.1
$region0: #{tpu_custom_call.1}
  #allocation0 [shape = 'u32[]', space=smem, size = 0x4, offset = 0x4, fixed_abs, tag = 'smem constant byte address 0x4 - core index']
  #allocation1 [shape = 'u32[144,128]{1,0:T(1,128)}', space=vmem, size = 0x12000, scoped, tag = 'internal scratch']
  #allocation2 [shape = 'f32[6,10,128]{2,1,0:T(8,128)}', space=vmem, size = 0xc000, scoped, tag = 'scratch operand']
  %s0 = inlined_call_operand.hbm [shape: f32[1,4,8,128], index: 0, kind: input, shape index: {}]
  %s1 = inlined_call_operand.vmem [shape: f32[1,1,128], index: 1, kind: input, shape index: {}]
  %s2 = inlined_call_operand.vmem [shape: f32[1,1,128], index: 2, kind: input, shape index: {}]
  %s3 = inlined_call_operand.vmem [shape: f32[1,1,128], index: 3, kind: input, shape index: {}]
  %s4 = inlined_call_operand.vmem [shape: f32[1,1,128], index: 4, kind: input, shape index: {}]
  %s5 = inlined_call_operand.hbm [shape: f32[3,384,128], index: 5, kind: input, shape index: {}]
  %s6 = inlined_call_operand.hbm [shape: f32[3,384,128], index: 6, kind: input, shape index: {}]
  %s7 = inlined_call_operand.hbm [shape: f32[3,384,128], index: 7, kind: input, shape index: {}]
  %s8 = inlined_call_operand.hbm [shape: f32[3,384,128], index: 8, kind: input, shape index: {}]
  %s9 = inlined_call_operand.hbm [shape: f32[3,384,128], index: 9, kind: input, shape index: {}]
  %s10 = inlined_call_operand.hbm [shape: f32[3,384,128], index: 10, kind: input, shape index: {}]
  %s11 = inlined_call_operand.vmem [shape: f32[1,128], index: 11, kind: input, shape index: {}]
  %s12 = inlined_call_operand.vmem [shape: f32[1,128], index: 12, kind: input, shape index: {}]
  %s13 = inlined_call_operand.vmem [shape: f32[1,128], index: 13, kind: input, shape index: {}]
  %s14 = inlined_call_operand.vmem [shape: f32[1,128], index: 14, kind: input, shape index: {}]
  %s15 = inlined_call_operand.vmem [shape: f32[1,128], index: 15, kind: input, shape index: {}]
  %s16 = inlined_call_operand.vmem [shape: f32[1,128], index: 16, kind: input, shape index: {}]
  %s17 = inlined_call_operand.hbm [shape: f32[1,4,8,128], index: 17, kind: output, shape index: {}]
  %s18 = sld [smem:[#allocation0]]
  $region106: #{tpu_custom_call.1} parent=0
    _
  %s20 = ssub.s32 1, %s18
  %s21 = scalar_select 0, %s20, %s18
  $region1: #{tpu_custom_call.1} parent=0
    #allocation3 [shape = 'u8[16384]{0}', space=vmem, size = 0x4000, scoped, tag = 'input window, operand 0, single buffered']
    #allocation4 [shape = 's32[1]{0}', space=sflag, size = 0x4, scoped, tag = 'scoped memory for tpu_custom_call.1']
    #allocation5 [shape = 's32[1]{0}', space=sflag, size = 0x4, scoped, tag = 'scoped memory for tpu_custom_call.1']
    #allocation6 [shape = 'u8[589824]{0}', space=vmem, size = 0x90000, scoped, tag = 'input window, operand 5, single buffered']
    #allocation7 [shape = 's32[1]{0}', space=sflag, size = 0x4, scoped, tag = 'scoped memory for tpu_custom_call.1']
    #allocation8 [shape = 'u8[589824]{0}', space=vmem, size = 0x90000, scoped, tag = 'input window, operand 6, single buffered']
    #allocation9 [shape = 'u8[589824]{0}', space=vmem, size = 0x90000, scoped, tag = 'input window, operand 7, single buffered']
    #allocation10 [shape = 's32[1]{0}', space=sflag, size = 0x4, scoped, tag = 'scoped memory for tpu_custom_call.1']
    #allocation11 [shape = 'u8[589824]{0}', space=vmem, size = 0x90000, scoped, tag = 'input window, operand 8, single buffered']
    #allocation12 [shape = 'u8[589824]{0}', space=vmem, size = 0x90000, scoped, tag = 'input window, operand 9, single buffered']
    #allocation13 [shape = 's32[1]{0}', space=sflag, size = 0x4, scoped, tag = 'scoped memory for tpu_custom_call.1']
    #allocation14 [shape = 'u8[589824]{0}', space=vmem, size = 0x90000, scoped, tag = 'input window, operand 10, single buffered']
    #allocation15 [shape = 'u8[16384]{0}', space=vmem, size = 0x4000, scoped, tag = 'output window, operand 0, single buffered']
    %22 = vsyncpa [#allocation4], 0
    %23 = vsyncpa [#allocation7], 0
    %24 = vsyncpa [#allocation10], 0
    %25 = vsyncpa [#allocation13], 0
    %26 = vsyncpa [#allocation5], 0
    // Predicated region
    $region2: #{tpu_custom_call.1} parent=1 // pred_check
      _
    $region3: #{tpu_custom_call.1} parent=1 // pred_check_branch
      %28 = sbr.rel (0) target = $region5
    $region4: #{tpu_custom_call.1} parent=1 // pred_region
      %s30 = ssub.s32 512, 512
      %31 = vsyncadd [#allocation4], %s30
      %s32 = sshll.u32 [#allocation3], 4
      %s33 = int_to_ptr.vmem [resolvable:$true] %s32
      %38 = dma.hbm_to_vmem [thread:$0]  %s0, 512, %s33, [#allocation4], 128, 128, 8
    $region5: #{tpu_custom_call.1} parent=1 // pred_fallthru
      _
    // Predicated region
    $region6: #{tpu_custom_call.1} parent=1 // pred_check
      _
    $region7: #{tpu_custom_call.1} parent=1 // pred_check_branch
      %40 = sbr.rel (0) target = $region9
    $region8: #{tpu_custom_call.1} parent=1 // pred_region
      _
    $region9: #{tpu_custom_call.1} parent=1 // pred_fallthru
      _
    // Predicated region
    $region10: #{tpu_custom_call.1} parent=1 // pred_check
      _
    $region11: #{tpu_custom_call.1} parent=1 // pred_check_branch
      %42 = sbr.rel (0) target = $region13
    $region12: #{tpu_custom_call.1} parent=1 // pred_region
      _
    $region13: #{tpu_custom_call.1} parent=1 // pred_fallthru
      _
    // Predicated region
    $region14: #{tpu_custom_call.1} parent=1 // pred_check
      _
    $region15: #{tpu_custom_call.1} parent=1 // pred_check_branch
      %44 = sbr.rel (0) target = $region17
    $region16: #{tpu_custom_call.1} parent=1 // pred_region
      _
    $region17: #{tpu_custom_call.1} parent=1 // pred_fallthru
      _
    // Predicated region
    $region18: #{tpu_custom_call.1} parent=1 // pred_check
      _
    $region19: #{tpu_custom_call.1} parent=1 // pred_check_branch
      %46 = sbr.rel (0) target = $region21
    $region20: #{tpu_custom_call.1} parent=1 // pred_region
      _
    $region21: #{tpu_custom_call.1} parent=1 // pred_fallthru
      _
    // Predicated region
    $region22: #{tpu_custom_call.1} parent=1 // pred_check
      _
    $region23: #{tpu_custom_call.1} parent=1 // pred_check_branch
      %48 = sbr.rel (0) target = $region25
    $region24: #{tpu_custom_call.1} parent=1 // pred_region
      %s50 = ssub.s32 18432, 18432
      %51 = vsyncadd [#allocation7], %s50
      %s52 = sshll.u32 [#allocation6], 4
      %s53 = int_to_ptr.vmem [resolvable:$true] %s52
      %58 = dma.hbm_to_vmem [thread:$0]  %s5, 18432, %s53, [#allocation7], 128, 128, 8
    $region25: #{tpu_custom_call.1} parent=1 // pred_fallthru
      _
    // Predicated region
    $region26: #{tpu_custom_call.1} parent=1 // pred_check
      _
    $region27: #{tpu_custom_call.1} parent=1 // pred_check_branch
      %60 = sbr.rel (0) target = $region29
    $region28: #{tpu_custom_call.1} parent=1 // pred_region
      %s62 = ssub.s32 18432, 18432
      %63 = vsyncadd [#allocation7], %s62
      %s64 = sshll.u32 [#allocation8], 4
      %s65 = int_to_ptr.vmem [resolvable:$true] %s64
      %70 = dma.hbm_to_vmem [thread:$0]  %s6, 18432, %s65, [#allocation7], 128, 128, 8
    $region29: #{tpu_custom_call.1} parent=1 // pred_fallthru
      _
    // Predicated region
    $region30: #{tpu_custom_call.1} parent=1 // pred_check
      _
    $region31: #{tpu_custom_call.1} parent=1 // pred_check_branch
      %72 = sbr.rel (0) target = $region33
    $region32: #{tpu_custom_call.1} parent=1 // pred_region
      %s74 = ssub.s32 18432, 18432
      %75 = vsyncadd [#allocation10], %s74
      %s76 = sshll.u32 [#allocation9], 4
      %s77 = int_to_ptr.vmem [resolvable:$true] %s76
      %82 = dma.hbm_to_vmem [thread:$0]  %s7, 18432, %s77, [#allocation10], 128, 128, 8
    $region33: #{tpu_custom_call.1} parent=1 // pred_fallthru
      _
    // Predicated region
    $region34: #{tpu_custom_call.1} parent=1 // pred_check
      _
    $region35: #{tpu_custom_call.1} parent=1 // pred_check_branch
      %84 = sbr.rel (0) target = $region37
    $region36: #{tpu_custom_call.1} parent=1 // pred_region
      %s86 = ssub.s32 18432, 18432
      %87 = vsyncadd [#allocation10], %s86
      %s88 = sshll.u32 [#allocation11], 4
      %s89 = int_to_ptr.vmem [resolvable:$true] %s88
      %94 = dma.hbm_to_vmem [thread:$0]  %s8, 18432, %s89, [#allocation10], 128, 128, 8
    $region37: #{tpu_custom_call.1} parent=1 // pred_fallthru
      _
    // Predicated region
    $region38: #{tpu_custom_call.1} parent=1 // pred_check
      _
    $region39: #{tpu_custom_call.1} parent=1 // pred_check_branch
      %96 = sbr.rel (0) target = $region41
    $region40: #{tpu_custom_call.1} parent=1 // pred_region
      %s98 = ssub.s32 18432, 18432
      %99 = vsyncadd [#allocation13], %s98
      %s100 = sshll.u32 [#allocation12], 4
      %s101 = int_to_ptr.vmem [resolvable:$true] %s100
      %106 = dma.hbm_to_vmem [thread:$0]  %s9, 18432, %s101, [#allocation13], 128, 128, 8
    $region41: #{tpu_custom_call.1} parent=1 // pred_fallthru
      _
    // Predicated region
    $region42: #{tpu_custom_call.1} parent=1 // pred_check
      _
    $region43: #{tpu_custom_call.1} parent=1 // pred_check_branch
      %108 = sbr.rel (0) target = $region45
    $region44: #{tpu_custom_call.1} parent=1 // pred_region
      %s110 = ssub.s32 18432, 18432
      %111 = vsyncadd [#allocation13], %s110
      %s112 = sshll.u32 [#allocation14], 4
      %s113 = int_to_ptr.vmem [resolvable:$true] %s112
      %118 = dma.hbm_to_vmem [thread:$0]  %s10, 18432, %s113, [#allocation13], 128, 128, 8
    $region45: #{tpu_custom_call.1} parent=1 // pred_fallthru
      _
    // Predicated region
    $region46: #{tpu_custom_call.1} parent=1 // pred_check
      _
    $region47: #{tpu_custom_call.1} parent=1 // pred_check_branch
      %120 = sbr.rel (0) target = $region49
    $region48: #{tpu_custom_call.1} parent=1 // pred_region
      _
    $region49: #{tpu_custom_call.1} parent=1 // pred_fallthru
      _
    // Predicated region
    $region50: #{tpu_custom_call.1} parent=1 // pred_check
      _
    $region51: #{tpu_custom_call.1} parent=1 // pred_check_branch
      %122 = sbr.rel (0) target = $region53
    $region52: #{tpu_custom_call.1} parent=1 // pred_region
      _
    $region53: #{tpu_custom_call.1} parent=1 // pred_fallthru
      _
    // Predicated region
    $region54: #{tpu_custom_call.1} parent=1 // pred_check
      _
    $region55: #{tpu_custom_call.1} parent=1 // pred_check_branch
      %124 = sbr.rel (0) target = $region57
    $region56: #{tpu_custom_call.1} parent=1 // pred_region
      _
    $region57: #{tpu_custom_call.1} parent=1 // pred_fallthru
      _
    // Predicated region
    $region58: #{tpu_custom_call.1} parent=1 // pred_check
      _
    $region59: #{tpu_custom_call.1} parent=1 // pred_check_branch
      %126 = sbr.rel (0) target = $region61
    $region60: #{tpu_custom_call.1} parent=1 // pred_region
      _
    $region61: #{tpu_custom_call.1} parent=1 // pred_fallthru
      _
    // Predicated region
    $region62: #{tpu_custom_call.1} parent=1 // pred_check
      _
    $region63: #{tpu_custom_call.1} parent=1 // pred_check_branch
      %128 = sbr.rel (0) target = $region65
    $region64: #{tpu_custom_call.1} parent=1 // pred_region
      _
    $region65: #{tpu_custom_call.1} parent=1 // pred_fallthru
      _
    // Predicated region
    $region66: #{tpu_custom_call.1} parent=1 // pred_check
      _
    $region67: #{tpu_custom_call.1} parent=1 // pred_check_branch
      %130 = sbr.rel (0) target = $region69
    $region68: #{tpu_custom_call.1} parent=1 // pred_region
      _
    $region69: #{tpu_custom_call.1} parent=1 // pred_fallthru
      _
    // Predicated region
    $region70: #{tpu_custom_call.1} parent=1 // pred_check
      _
    $region71: #{tpu_custom_call.1} parent=1 // pred_check_branch
      %132 = sbr.rel (0) target = $region73
    $region72: #{tpu_custom_call.1} parent=1 // pred_region
      %133 = dma.done [#allocation4], 512
    $region73: #{tpu_custom_call.1} parent=1 // pred_fallthru
      _
    // Predicated region
    $region74: #{tpu_custom_call.1} parent=1 // pred_check
      _
    $region75: #{tpu_custom_call.1} parent=1 // pred_check_branch
      %135 = sbr.rel (0) target = $region77
    $region76: #{tpu_custom_call.1} parent=1 // pred_region
      %136 = dma.done [#allocation7], 18432
    $region77: #{tpu_custom_call.1} parent=1 // pred_fallthru
      _
    // Predicated region
    $region78: #{tpu_custom_call.1} parent=1 // pred_check
      _
    $region79: #{tpu_custom_call.1} parent=1 // pred_check_branch
      %138 = sbr.rel (0) target = $region81
    $region80: #{tpu_custom_call.1} parent=1 // pred_region
      %139 = dma.done [#allocation7], 18432
    $region81: #{tpu_custom_call.1} parent=1 // pred_fallthru
      _
    // Predicated region
    $region82: #{tpu_custom_call.1} parent=1 // pred_check
      _
    $region83: #{tpu_custom_call.1} parent=1 // pred_check_branch
      %141 = sbr.rel (0) target = $region85
    $region84: #{tpu_custom_call.1} parent=1 // pred_region
      %142 = dma.done [#allocation10], 18432
    $region85: #{tpu_custom_call.1} parent=1 // pred_fallthru
      _
    // Predicated region
    $region86: #{tpu_custom_call.1} parent=1 // pred_check
      _
    $region87: #{tpu_custom_call.1} parent=1 // pred_check_branch
      %144 = sbr.rel (0) target = $region89
    $region88: #{tpu_custom_call.1} parent=1 // pred_region
      %145 = dma.done [#allocation10], 18432
    $region89: #{tpu_custom_call.1} parent=1 // pred_fallthru
      _
    // Predicated region
    $region90: #{tpu_custom_call.1} parent=1 // pred_check
      _
    $region91: #{tpu_custom_call.1} parent=1 // pred_check_branch
      %147 = sbr.rel (0) target = $region93
    $region92: #{tpu_custom_call.1} parent=1 // pred_region
      %148 = dma.done [#allocation13], 18432
    $region93: #{tpu_custom_call.1} parent=1 // pred_fallthru
      _
    // Predicated region
    $region94: #{tpu_custom_call.1} parent=1 // pred_check
      _
    $region95: #{tpu_custom_call.1} parent=1 // pred_check_branch
      %150 = sbr.rel (0) target = $region97
    $region96: #{tpu_custom_call.1} parent=1 // pred_region
      %151 = dma.done [#allocation13], 18432
    $region97: #{tpu_custom_call.1} parent=1 // pred_fallthru
      _
    %152 = vst [vmem:[#allocation2] sm:$0xff] 0.0
    %153 = vst [vmem:[#allocation2 + $0x8] sm:$0x3] 0.0
    %s154 = scalar_lea.vmem [#allocation2], 80
    %155 = vst [vmem:[%s154] sm:$0xff] 0.0
    %156 = vst [vmem:[%s154 + $0x8] sm:$0x3] 0.0
    %157 = vst [vmem:[#allocation2] sm:$0x1] 0.0
    %158 = vst [vmem:[#allocation2 + $0x10] sm:$0x1] 0.0
    %159 = vst [vmem:[#allocation2 + $0x20] sm:$0x1] 0.0
    %160 = vst [vmem:[#allocation2 + $0x30] sm:$0x1] 0.0
    %161 = vst [vmem:[#allocation2 + $0x40] sm:$0x1] 0.0
    %162 = vst [vmem:[#allocation2 + $0x50] sm:$0x1] 0.0
    %163 = vst [vmem:[#allocation2 + $0x9] sm:$0x1] 0.0
    %164 = vst [vmem:[#allocation2 + $0x19] sm:$0x1] 0.0
    %165 = vst [vmem:[#allocation2 + $0x29] sm:$0x1] 0.0
    %166 = vst [vmem:[#allocation2 + $0x39] sm:$0x1] 0.0
    %167 = vst [vmem:[#allocation2 + $0x49] sm:$0x1] 0.0
    %168 = vst [vmem:[#allocation2 + $0x59] sm:$0x1] 0.0
    %v169 = vld [vmem:[#allocation3] sm:$0xff]
    %v170 = vld [vmem:[#allocation3 + $0x8] sm:$0xff]
    %v171 = vld [vmem:[#allocation3 + $0x10] sm:$0xff]
    %v172 = vld [vmem:[#allocation3 + $0x18] sm:$0xff]
    %v173 = vld [vmem:[%s1] sm:$0x1]
    %s174 = scalar_lea.vmem [#allocation2], 16
    %175 = vst [vmem:[%s174 + $0x1] sm:$0xff] %v169
    %176 = vst [vmem:[%s174 + $0x11] sm:$0xff] %v170
    %177 = vst [vmem:[%s174 + $0x21] sm:$0xff] %v171
    %178 = vst [vmem:[%s174 + $0x31] sm:$0xff] %v172
    %v179 = vld [vmem:[#allocation2] sm:$0xff]
    %v180 = vld [vmem:[#allocation2 + $0x8] sm:$0x3]
    %v181 = vld [vmem:[#allocation2 + $0x10] sm:$0xff]
    %v182 = vld [vmem:[#allocation2 + $0x18] sm:$0x3]
    %v183 = vld [vmem:[#allocation2 + $0x20] sm:$0xff]
    %v184 = vld [vmem:[#allocation2 + $0x28] sm:$0x3]
    %v185 = vld [vmem:[#allocation2 + $0x30] sm:$0xff]
    %v186 = vld [vmem:[#allocation2 + $0x38] sm:$0x3]
    %v187 = vld [vmem:[#allocation2 + $0x40] sm:$0xff]
    %v188 = vld [vmem:[#allocation2 + $0x48] sm:$0x3]
    %v189 = vld [vmem:[#allocation2 + $0x50] sm:$0xff]
    %v190 = vld [vmem:[#allocation2 + $0x58] sm:$0x3]
    %vm203 = vcmask 1046528
    %v204 = vrot.slane %v179, 1
    %v205 = vrot.slane %v180, 1
    %v206 = vsel %vm203, %v204, %v205
    %v207 = vrot.slane %v181, 1
    %v208 = vrot.slane %v182, 1
    %v209 = vsel %vm203, %v207, %v208
    %v210 = vrot.slane %v183, 1
    %v211 = vrot.slane %v184, 1
    %v212 = vsel %vm203, %v210, %v211
    %v213 = vrot.slane %v185, 1
    %v214 = vrot.slane %v186, 1
    %v215 = vsel %vm203, %v213, %v214
    %v216 = vrot.slane %v187, 1
    %v217 = vrot.slane %v188, 1
    %v218 = vsel %vm203, %v216, %v217
    %v219 = vrot.slane %v189, 1
    %v220 = vrot.slane %v190, 1
    %v221 = vsel %vm203, %v219, %v220
    %vm228 = vcmask 1045504
    %v229 = vrot.slane %v179, 2
    %v230 = vrot.slane %v180, 2
    %v231 = vsel %vm228, %v229, %v230
    %v232 = vrot.slane %v181, 2
    %v233 = vrot.slane %v182, 2
    %v234 = vsel %vm228, %v232, %v233
    %v235 = vrot.slane %v183, 2
    %v236 = vrot.slane %v184, 2
    %v237 = vsel %vm228, %v235, %v236
    %v238 = vrot.slane %v185, 2
    %v239 = vrot.slane %v186, 2
    %v240 = vsel %vm228, %v238, %v239
    %v241 = vrot.slane %v187, 2
    %v242 = vrot.slane %v188, 2
    %v243 = vsel %vm228, %v241, %v242
    %v244 = vrot.slane %v189, 2
    %v245 = vrot.slane %v190, 2
    %v246 = vsel %vm228, %v244, %v245
    %v253 = vld [vmem:[#allocation6] sm:$0xff]
    %v254 = vld [vmem:[#allocation6 + $0x8] sm:$0xff]
    %v255 = vld [vmem:[#allocation6 + $0x10] sm:$0xff]
    %v256 = vld [vmem:[#allocation6 + $0x18] sm:$0xff]
    %v257 = vld [vmem:[#allocation6 + $0x20] sm:$0xff]
    %v258 = vld [vmem:[#allocation6 + $0x28] sm:$0xff]
    %v259 = vld [vmem:[#allocation6 + $0x30] sm:$0xff]
    %v260 = vld [vmem:[#allocation6 + $0x38] sm:$0xff]
    %v261 = vld [vmem:[#allocation6 + $0x40] sm:$0xff]
    %v262 = vld [vmem:[#allocation6 + $0x48] sm:$0xff]
    %v263 = vld [vmem:[#allocation6 + $0x50] sm:$0xff]
    %v264 = vld [vmem:[#allocation6 + $0x58] sm:$0xff]
    %v265 = vld [vmem:[#allocation6 + $0x60] sm:$0xff]
    %v266 = vld [vmem:[#allocation6 + $0x68] sm:$0xff]
    %v267 = vld [vmem:[#allocation6 + $0x70] sm:$0xff]
    %v268 = vld [vmem:[#allocation6 + $0x78] sm:$0xff]
    %v269 = vld [vmem:[#allocation6 + $0x80] sm:$0xff]
    %v270 = vld [vmem:[#allocation6 + $0x88] sm:$0xff]
    %v271 = vld [vmem:[#allocation6 + $0x90] sm:$0xff]
    %v272 = vld [vmem:[#allocation6 + $0x98] sm:$0xff]
    %v273 = vld [vmem:[#allocation6 + $0xa0] sm:$0xff]
    %v274 = vld [vmem:[#allocation6 + $0xa8] sm:$0xff]
    %v275 = vld [vmem:[#allocation6 + $0xb0] sm:$0xff]
    %v276 = vld [vmem:[#allocation6 + $0xb8] sm:$0xff]
    %v277 = vld [vmem:[#allocation6 + $0xc0] sm:$0xff]
    %v278 = vld [vmem:[#allocation6 + $0xc8] sm:$0xff]
    %v279 = vld [vmem:[#allocation6 + $0xd0] sm:$0xff]
    %v280 = vld [vmem:[#allocation6 + $0xd8] sm:$0xff]
    %v281 = vld [vmem:[#allocation6 + $0xe0] sm:$0xff]
    %v282 = vld [vmem:[#allocation6 + $0xe8] sm:$0xff]
    %v283 = vld [vmem:[#allocation6 + $0xf0] sm:$0xff]
    %v284 = vld [vmem:[#allocation6 + $0xf8] sm:$0xff]
    %v285 = vld [vmem:[#allocation6 + $0x100] sm:$0xff]
    %v286 = vld [vmem:[#allocation6 + $0x108] sm:$0xff]
    %v287 = vld [vmem:[#allocation6 + $0x110] sm:$0xff]
    %v288 = vld [vmem:[#allocation6 + $0x118] sm:$0xff]
    %v289 = vld [vmem:[#allocation6 + $0x120] sm:$0xff]
    %v290 = vld [vmem:[#allocation6 + $0x128] sm:$0xff]
    %v291 = vld [vmem:[#allocation6 + $0x130] sm:$0xff]
    %v292 = vld [vmem:[#allocation6 + $0x138] sm:$0xff]
    %v293 = vld [vmem:[#allocation6 + $0x140] sm:$0xff]
    %v294 = vld [vmem:[#allocation6 + $0x148] sm:$0xff]
    %v295 = vld [vmem:[#allocation6 + $0x150] sm:$0xff]
    %v296 = vld [vmem:[#allocation6 + $0x158] sm:$0xff]
    %v297 = vld [vmem:[#allocation6 + $0x160] sm:$0xff]
    %v298 = vld [vmem:[#allocation6 + $0x168] sm:$0xff]
    %v299 = vld [vmem:[#allocation6 + $0x170] sm:$0xff]
    %v300 = vld [vmem:[#allocation6 + $0x178] sm:$0xff]
    %s301 = scalar_lea.vmem [#allocation6], 384
    %v302 = vld [vmem:[%s301] sm:$0xff]
    %v303 = vld [vmem:[%s301 + $0x8] sm:$0xff]
    %v304 = vld [vmem:[%s301 + $0x10] sm:$0xff]
    %v305 = vld [vmem:[%s301 + $0x18] sm:$0xff]
    %v306 = vld [vmem:[%s301 + $0x20] sm:$0xff]
    %v307 = vld [vmem:[%s301 + $0x28] sm:$0xff]
    %v308 = vld [vmem:[%s301 + $0x30] sm:$0xff]
    %v309 = vld [vmem:[%s301 + $0x38] sm:$0xff]
    %v310 = vld [vmem:[%s301 + $0x40] sm:$0xff]
    %v311 = vld [vmem:[%s301 + $0x48] sm:$0xff]
    %v312 = vld [vmem:[%s301 + $0x50] sm:$0xff]
    %v313 = vld [vmem:[%s301 + $0x58] sm:$0xff]
    %v314 = vld [vmem:[%s301 + $0x60] sm:$0xff]
    %v315 = vld [vmem:[%s301 + $0x68] sm:$0xff]
    %v316 = vld [vmem:[%s301 + $0x70] sm:$0xff]
    %v317 = vld [vmem:[%s301 + $0x78] sm:$0xff]
    %v318 = vld [vmem:[%s301 + $0x80] sm:$0xff]
    %v319 = vld [vmem:[%s301 + $0x88] sm:$0xff]
    %v320 = vld [vmem:[%s301 + $0x90] sm:$0xff]
    %v321 = vld [vmem:[%s301 + $0x98] sm:$0xff]
    %v322 = vld [vmem:[%s301 + $0xa0] sm:$0xff]
    %v323 = vld [vmem:[%s301 + $0xa8] sm:$0xff]
    %v324 = vld [vmem:[%s301 + $0xb0] sm:$0xff]
    %v325 = vld [vmem:[%s301 + $0xb8] sm:$0xff]
    %v326 = vld [vmem:[%s301 + $0xc0] sm:$0xff]
    %v327 = vld [vmem:[%s301 + $0xc8] sm:$0xff]
    %v328 = vld [vmem:[%s301 + $0xd0] sm:$0xff]
    %v329 = vld [vmem:[%s301 + $0xd8] sm:$0xff]
    %v330 = vld [vmem:[%s301 + $0xe0] sm:$0xff]
    %v331 = vld [vmem:[%s301 + $0xe8] sm:$0xff]
    %v332 = vld [vmem:[%s301 + $0xf0] sm:$0xff]
    %v333 = vld [vmem:[%s301 + $0xf8] sm:$0xff]
    %v334 = vld [vmem:[%s301 + $0x100] sm:$0xff]
    %v335 = vld [vmem:[%s301 + $0x108] sm:$0xff]
    %v336 = vld [vmem:[%s301 + $0x110] sm:$0xff]
    %v337 = vld [vmem:[%s301 + $0x118] sm:$0xff]
    %v338 = vld [vmem:[%s301 + $0x120] sm:$0xff]
    %v339 = vld [vmem:[%s301 + $0x128] sm:$0xff]
    %v340 = vld [vmem:[%s301 + $0x130] sm:$0xff]
    %v341 = vld [vmem:[%s301 + $0x138] sm:$0xff]
    %v342 = vld [vmem:[%s301 + $0x140] sm:$0xff]
    %v343 = vld [vmem:[%s301 + $0x148] sm:$0xff]
    %v344 = vld [vmem:[%s301 + $0x150] sm:$0xff]
    %v345 = vld [vmem:[%s301 + $0x158] sm:$0xff]
    %v346 = vld [vmem:[%s301 + $0x160] sm:$0xff]
    %v347 = vld [vmem:[%s301 + $0x168] sm:$0xff]
    %v348 = vld [vmem:[%s301 + $0x170] sm:$0xff]
    %v349 = vld [vmem:[%s301 + $0x178] sm:$0xff]
    %350 = vmatprep.subr.mxu0 0.0
    %351 = vmatpush1.msra.mxu0 %v317
    %352 = vmatprep.subr.mxu0 0.0
    %353 = vmatpush1.msra.mxu0 %v316
    %354 = vmatprep.subr.mxu0 0.0
    %355 = vmatpush1.msra.mxu0 %v315
    %356 = vmatprep.subr.mxu0 0.0
    %357 = vmatpush1.msra.mxu0 %v314
    %358 = vmatprep.subr.mxu0 0.0
    %359 = vmatpush1.msra.mxu0 %v313
    %360 = vmatprep.subr.mxu0 0.0
    %361 = vmatpush1.msra.mxu0 %v312
    %362 = vmatprep.subr.mxu0 0.0
    %363 = vmatpush1.msra.mxu0 %v311
    %364 = vmatprep.subr.mxu0 0.0
    %365 = vmatpush1.msra.mxu0 %v310
    %366 = vmatprep.subr.mxu0 0.0
    %367 = vmatpush1.msra.mxu0 %v309
    %368 = vmatprep.subr.mxu0 0.0
    %369 = vmatpush1.msra.mxu0 %v308
    %370 = vmatprep.subr.mxu0 0.0
    %371 = vmatpush1.msra.mxu0 %v307
    %372 = vmatprep.subr.mxu0 0.0
    %373 = vmatpush1.msra.mxu0 %v306
    %374 = vmatprep.subr.mxu0 0.0
    %375 = vmatpush1.msra.mxu0 %v305
    %376 = vmatprep.subr.mxu0 0.0
    %377 = vmatpush1.msra.mxu0 %v304
    %378 = vmatprep.subr.mxu0 0.0
    %379 = vmatpush1.msra.mxu0 %v303
    %380 = vmatprep.subr.mxu0 0.0
    %381 = vmatpush1.msra.mxu0 %v302
    %382 = vmatprep.subr.mxu0 0.0
    %383 = vmatpush2.msra.mxu0 %v333
    %384 = vmatprep.subr.mxu0 0.0
    %385 = vmatpush2.msra.mxu0 %v332
    %386 = vmatprep.subr.mxu0 0.0
    %387 = vmatpush2.msra.mxu0 %v331
    %388 = vmatprep.subr.mxu0 0.0
    %389 = vmatpush2.msra.mxu0 %v330
    %390 = vmatprep.subr.mxu0 0.0
    %391 = vmatpush2.msra.mxu0 %v329
    %392 = vmatprep.subr.mxu0 0.0
    %393 = vmatpush2.msra.mxu0 %v328
    %394 = vmatprep.subr.mxu0 0.0
    %395 = vmatpush2.msra.mxu0 %v327
    %396 = vmatprep.subr.mxu0 0.0
    %397 = vmatpush2.msra.mxu0 %v326
    %398 = vmatprep.subr.mxu0 0.0
    %399 = vmatpush2.msra.mxu0 %v325
    %400 = vmatprep.subr.mxu0 0.0
    %401 = vmatpush2.msra.mxu0 %v324
    %402 = vmatprep.subr.mxu0 0.0
    %403 = vmatpush2.msra.mxu0 %v323
    %404 = vmatprep.subr.mxu0 0.0
    %405 = vmatpush2.msra.mxu0 %v322
    %406 = vmatprep.subr.mxu0 0.0
    %407 = vmatpush2.msra.mxu0 %v321
    %408 = vmatprep.subr.mxu0 0.0
    %409 = vmatpush2.msra.mxu0 %v320
    %410 = vmatprep.subr.mxu0 0.0
    %411 = vmatpush2.msra.mxu0 %v319
    %412 = vmatprep.subr.mxu0 0.0
    %413 = vmatpush2.msra.mxu0 %v318
    %414 = vmatprep.mubr.f32.mxu0 %v209
    %415 = vmatmul.mubr.f32.gmra.mxu0 %v181
    %v416 = vpop.f32.mrf.mxu0
    %v417 = vadd.f32 0.0, %v416
    %v418 = vpop.f32.mrf.mxu0
    %419 = vmatprep.mubr.f32.mxu0 %v212
    %420 = vmatmul.mubr.f32.gmra.mxu0 %v183
    %v421 = vpop.f32.mrf.mxu0
    %v422 = vadd.f32 0.0, %v421
    %v423 = vpop.f32.mrf.mxu0
    %424 = vmatprep.mubr.f32.mxu0 %v215
    %425 = vmatmul.mubr.f32.gmra.mxu0 %v185
    %v426 = vpop.f32.mrf.mxu0
    %v427 = vadd.f32 0.0, %v426
    %v428 = vpop.f32.mrf.mxu0
    %429 = vmatprep.mubr.f32.mxu0 %v218
    %430 = vmatmul.mubr.f32.gmra.mxu0 %v187
    %v431 = vpop.f32.mrf.mxu0
    %v432 = vadd.f32 0.0, %v431
    %v433 = vpop.f32.mrf.mxu0
    %434 = vdwg.mxu0
    %435 = vmatprep.subr.mxu0 0.0
    %436 = vmatpush1.msra.mxu0 %v349
    %437 = vmatprep.subr.mxu0 0.0
    %438 = vmatpush1.msra.mxu0 %v348
    %439 = vmatprep.subr.mxu0 0.0
    %440 = vmatpush1.msra.mxu0 %v347
    %441 = vmatprep.subr.mxu0 0.0
    %442 = vmatpush1.msra.mxu0 %v346
    %443 = vmatprep.subr.mxu0 0.0
    %444 = vmatpush1.msra.mxu0 %v345
    %445 = vmatprep.subr.mxu0 0.0
    %446 = vmatpush1.msra.mxu0 %v344
    %447 = vmatprep.subr.mxu0 0.0
    %448 = vmatpush1.msra.mxu0 %v343
    %449 = vmatprep.subr.mxu0 0.0
    %450 = vmatpush1.msra.mxu0 %v342
    %451 = vmatprep.subr.mxu0 0.0
    %452 = vmatpush1.msra.mxu0 %v341
    %453 = vmatprep.subr.mxu0 0.0
    %454 = vmatpush1.msra.mxu0 %v340
    %455 = vmatprep.subr.mxu0 0.0
    %456 = vmatpush1.msra.mxu0 %v339
    %457 = vmatprep.subr.mxu0 0.0
    %458 = vmatpush1.msra.mxu0 %v338
    %459 = vmatprep.subr.mxu0 0.0
    %460 = vmatpush1.msra.mxu0 %v337
    %461 = vmatprep.subr.mxu0 0.0
    %462 = vmatpush1.msra.mxu0 %v336
    %463 = vmatprep.subr.mxu0 0.0
    %464 = vmatpush1.msra.mxu0 %v335
    %465 = vmatprep.subr.mxu0 0.0
    %466 = vmatpush1.msra.mxu0 %v334
    %467 = vmatprep.subr.mxu0 0.0
    %468 = vmatpush2.msra.mxu0 0.0
    %469 = vmatprep.subr.mxu0 0.0
    %470 = vmatpush2.msra.mxu0 0.0
    %471 = vmatprep.subr.mxu0 0.0
    %472 = vmatpush2.msra.mxu0 0.0
    %473 = vmatprep.subr.mxu0 0.0
    %474 = vmatpush2.msra.mxu0 0.0
    %475 = vmatprep.subr.mxu0 0.0
    %476 = vmatpush2.msra.mxu0 0.0
    %477 = vmatprep.subr.mxu0 0.0
    %478 = vmatpush2.msra.mxu0 0.0
    %479 = vmatprep.subr.mxu0 0.0
    %480 = vmatpush2.msra.mxu0 0.0
    %481 = vmatprep.subr.mxu0 0.0
    %482 = vmatpush2.msra.mxu0 0.0
    %483 = vmatprep.subr.mxu0 0.0
    %484 = vmatpush2.msra.mxu0 0.0
    %485 = vmatprep.subr.mxu0 0.0
    %486 = vmatpush2.msra.mxu0 0.0
    %487 = vmatprep.subr.mxu0 0.0
    %488 = vmatpush2.msra.mxu0 0.0
    %489 = vmatprep.subr.mxu0 0.0
    %490 = vmatpush2.msra.mxu0 0.0
    %491 = vmatprep.subr.mxu0 0.0
    %492 = vmatpush2.msra.mxu0 0.0
    %493 = vmatprep.subr.mxu0 0.0
    %494 = vmatpush2.msra.mxu0 0.0
    %495 = vmatprep.subr.mxu0 0.0
    %496 = vmatpush2.msra.mxu0 0.0
    %497 = vmatprep.subr.mxu0 0.0
    %498 = vmatpush2.msra.mxu0 0.0
    %499 = vmatprep.mubr.f32.mxu0 0.0
    %500 = vmatmul.mubr.f32.gmra.mxu0 %v234
    %v501 = vpop.f32.mrf.mxu0
    %v502 = vadd.f32 %v417, %v501
    %v503 = vpop.f32.mrf.mxu0
    %504 = vmatprep.mubr.f32.mxu0 0.0
    %505 = vmatmul.mubr.f32.gmra.mxu0 %v237
    %v506 = vpop.f32.mrf.mxu0
    %v507 = vadd.f32 %v422, %v506
    %v508 = vpop.f32.mrf.mxu0
    %509 = vmatprep.mubr.f32.mxu0 0.0
    %510 = vmatmul.mubr.f32.gmra.mxu0 %v240
    %v511 = vpop.f32.mrf.mxu0
    %v512 = vadd.f32 %v427, %v511
    %v513 = vpop.f32.mrf.mxu0
    %514 = vmatprep.mubr.f32.mxu0 0.0
    %515 = vmatmul.mubr.f32.gmra.mxu0 %v243
    %v516 = vpop.f32.mrf.mxu0
    %v517 = vadd.f32 %v432, %v516
    %v518 = vpop.f32.mrf.mxu0
    %519 = vdwg.mxu0
    %520 = vmatprep.subr.mxu0 0.0
    %521 = vmatpush1.msra.mxu0 %v268
    %522 = vmatprep.subr.mxu0 0.0
    %523 = vmatpush1.msra.mxu0 %v267
    %524 = vmatprep.subr.mxu0 0.0
    %525 = vmatpush1.msra.mxu0 %v266
    %526 = vmatprep.subr.mxu0 0.0
    %527 = vmatpush1.msra.mxu0 %v265
    %528 = vmatprep.subr.mxu0 0.0
    %529 = vmatpush1.msra.mxu0 %v264
    %530 = vmatprep.subr.mxu0 0.0
    %531 = vmatpush1.msra.mxu0 %v263
    %532 = vmatprep.subr.mxu0 0.0
    %533 = vmatpush1.msra.mxu0 %v262
    %534 = vmatprep.subr.mxu0 0.0
    %535 = vmatpush1.msra.mxu0 %v261
    %536 = vmatprep.subr.mxu0 0.0
    %537 = vmatpush1.msra.mxu0 %v260
    %538 = vmatprep.subr.mxu0 0.0
    %539 = vmatpush1.msra.mxu0 %v259
    %540 = vmatprep.subr.mxu0 0.0
    %541 = vmatpush1.msra.mxu0 %v258
    %542 = vmatprep.subr.mxu0 0.0
    %543 = vmatpush1.msra.mxu0 %v257
    %544 = vmatprep.subr.mxu0 0.0
    %545 = vmatpush1.msra.mxu0 %v256
    %546 = vmatprep.subr.mxu0 0.0
    %547 = vmatpush1.msra.mxu0 %v255
    %548 = vmatprep.subr.mxu0 0.0
    %549 = vmatpush1.msra.mxu0 %v254
    %550 = vmatprep.subr.mxu0 0.0
    %551 = vmatpush1.msra.mxu0 %v253
    %552 = vmatprep.subr.mxu0 0.0
    %553 = vmatpush2.msra.mxu0 %v284
    %554 = vmatprep.subr.mxu0 0.0
    %555 = vmatpush2.msra.mxu0 %v283
    %556 = vmatprep.subr.mxu0 0.0
    %557 = vmatpush2.msra.mxu0 %v282
    %558 = vmatprep.subr.mxu0 0.0
    %559 = vmatpush2.msra.mxu0 %v281
    %560 = vmatprep.subr.mxu0 0.0
    %561 = vmatpush2.msra.mxu0 %v280
    %562 = vmatprep.subr.mxu0 0.0
    %563 = vmatpush2.msra.mxu0 %v279
    %564 = vmatprep.subr.mxu0 0.0
    %565 = vmatpush2.msra.mxu0 %v278
    %566 = vmatprep.subr.mxu0 0.0
    %567 = vmatpush2.msra.mxu0 %v277
    %568 = vmatprep.subr.mxu0 0.0
    %569 = vmatpush2.msra.mxu0 %v276
    %570 = vmatprep.subr.mxu0 0.0
    %571 = vmatpush2.msra.mxu0 %v275
    %572 = vmatprep.subr.mxu0 0.0
    %573 = vmatpush2.msra.mxu0 %v274
    %574 = vmatprep.subr.mxu0 0.0
    %575 = vmatpush2.msra.mxu0 %v273
    %576 = vmatprep.subr.mxu0 0.0
    %577 = vmatpush2.msra.mxu0 %v272
    %578 = vmatprep.subr.mxu0 0.0
    %579 = vmatpush2.msra.mxu0 %v271
    %580 = vmatprep.subr.mxu0 0.0
    %581 = vmatpush2.msra.mxu0 %v270
    %582 = vmatprep.subr.mxu0 0.0
    %583 = vmatpush2.msra.mxu0 %v269
    %584 = vmatprep.mubr.f32.mxu0 %v206
    %585 = vmatmul.mubr.f32.gmra.mxu0 %v179
    %v586 = vpop.f32.mrf.mxu0
    %v587 = vadd.f32 %v502, %v586
    %v588 = vpop.f32.mrf.mxu0
    %589 = vmatprep.mubr.f32.mxu0 %v209
    %590 = vmatmul.mubr.f32.gmra.mxu0 %v181
    %v591 = vpop.f32.mrf.mxu0
    %v592 = vadd.f32 %v507, %v591
    %v593 = vpop.f32.mrf.mxu0
    %594 = vmatprep.mubr.f32.mxu0 %v212
    %595 = vmatmul.mubr.f32.gmra.mxu0 %v183
    %v596 = vpop.f32.mrf.mxu0
    %v597 = vadd.f32 %v512, %v596
    %v598 = vpop.f32.mrf.mxu0
    %599 = vmatprep.mubr.f32.mxu0 %v215
    %600 = vmatmul.mubr.f32.gmra.mxu0 %v185
    %v601 = vpop.f32.mrf.mxu0
    %v602 = vadd.f32 %v517, %v601
    %v603 = vpop.f32.mrf.mxu0
    %604 = vdwg.mxu0
    %605 = vmatprep.subr.mxu0 0.0
    %606 = vmatpush1.msra.mxu0 %v300
    %607 = vmatprep.subr.mxu0 0.0
    %608 = vmatpush1.msra.mxu0 %v299
    %609 = vmatprep.subr.mxu0 0.0
    %610 = vmatpush1.msra.mxu0 %v298
    %611 = vmatprep.subr.mxu0 0.0
    %612 = vmatpush1.msra.mxu0 %v297
    %613 = vmatprep.subr.mxu0 0.0
    %614 = vmatpush1.msra.mxu0 %v296
    %615 = vmatprep.subr.mxu0 0.0
    %616 = vmatpush1.msra.mxu0 %v295
    %617 = vmatprep.subr.mxu0 0.0
    %618 = vmatpush1.msra.mxu0 %v294
    %619 = vmatprep.subr.mxu0 0.0
    %620 = vmatpush1.msra.mxu0 %v293
    %621 = vmatprep.subr.mxu0 0.0
    %622 = vmatpush1.msra.mxu0 %v292
    %623 = vmatprep.subr.mxu0 0.0
    %624 = vmatpush1.msra.mxu0 %v291
    %625 = vmatprep.subr.mxu0 0.0
    %626 = vmatpush1.msra.mxu0 %v290
    %627 = vmatprep.subr.mxu0 0.0
    %628 = vmatpush1.msra.mxu0 %v289
    %629 = vmatprep.subr.mxu0 0.0
    %630 = vmatpush1.msra.mxu0 %v288
    %631 = vmatprep.subr.mxu0 0.0
    %632 = vmatpush1.msra.mxu0 %v287
    %633 = vmatprep.subr.mxu0 0.0
    %634 = vmatpush1.msra.mxu0 %v286
    %635 = vmatprep.subr.mxu0 0.0
    %636 = vmatpush1.msra.mxu0 %v285
    %637 = vmatprep.subr.mxu0 0.0
    %638 = vmatpush2.msra.mxu0 0.0
    %639 = vmatprep.subr.mxu0 0.0
    %640 = vmatpush2.msra.mxu0 0.0
    %641 = vmatprep.subr.mxu0 0.0
    %642 = vmatpush2.msra.mxu0 0.0
    %643 = vmatprep.subr.mxu0 0.0
    %644 = vmatpush2.msra.mxu0 0.0
    %645 = vmatprep.subr.mxu0 0.0
    %646 = vmatpush2.msra.mxu0 0.0
    %647 = vmatprep.subr.mxu0 0.0
    %648 = vmatpush2.msra.mxu0 0.0
    %649 = vmatprep.subr.mxu0 0.0
    %650 = vmatpush2.msra.mxu0 0.0
    %651 = vmatprep.subr.mxu0 0.0
    %652 = vmatpush2.msra.mxu0 0.0
    %653 = vmatprep.subr.mxu0 0.0
    %654 = vmatpush2.msra.mxu0 0.0
    %655 = vmatprep.subr.mxu0 0.0
    %656 = vmatpush2.msra.mxu0 0.0
    %657 = vmatprep.subr.mxu0 0.0
    %658 = vmatpush2.msra.mxu0 0.0
    %659 = vmatprep.subr.mxu0 0.0
    %660 = vmatpush2.msra.mxu0 0.0
    %661 = vmatprep.subr.mxu0 0.0
    %662 = vmatpush2.msra.mxu0 0.0
    %663 = vmatprep.subr.mxu0 0.0
    %664 = vmatpush2.msra.mxu0 0.0
    %665 = vmatprep.subr.mxu0 0.0
    %666 = vmatpush2.msra.mxu0 0.0
    %667 = vmatprep.subr.mxu0 0.0
    %668 = vmatpush2.msra.mxu0 0.0
    %669 = vmatprep.mubr.f32.mxu0 0.0
    %670 = vmatmul.mubr.f32.gmra.mxu0 %v231
    %v671 = vpop.f32.mrf.mxu0
    %v672 = vadd.f32 %v587, %v671
    %v673 = vpop.f32.mrf.mxu0
    %674 = vmatprep.mubr.f32.mxu0 0.0
    %675 = vmatmul.mubr.f32.gmra.mxu0 %v234
    %v676 = vpop.f32.mrf.mxu0
    %v677 = vadd.f32 %v592, %v676
    %v678 = vpop.f32.mrf.mxu0
    %679 = vmatprep.mubr.f32.mxu0 0.0
    %680 = vmatmul.mubr.f32.gmra.mxu0 %v237
    %v681 = vpop.f32.mrf.mxu0
    %v682 = vadd.f32 %v597, %v681
    %v683 = vpop.f32.mrf.mxu0
    %684 = vmatprep.mubr.f32.mxu0 0.0
    %685 = vmatmul.mubr.f32.gmra.mxu0 %v240
    %v686 = vpop.f32.mrf.mxu0
    %v687 = vadd.f32 %v602, %v686
    %v688 = vpop.f32.mrf.mxu0
    %689 = vdwg.mxu0
    %s690 = scalar_lea.vmem [#allocation6], 768
    %v691 = vld [vmem:[%s690] sm:$0xff]
    %v692 = vld [vmem:[%s690 + $0x8] sm:$0xff]
    %v693 = vld [vmem:[%s690 + $0x10] sm:$0xff]
    %v694 = vld [vmem:[%s690 + $0x18] sm:$0xff]
    %v695 = vld [vmem:[%s690 + $0x20] sm:$0xff]
    %v696 = vld [vmem:[%s690 + $0x28] sm:$0xff]
    %v697 = vld [vmem:[%s690 + $0x30] sm:$0xff]
    %v698 = vld [vmem:[%s690 + $0x38] sm:$0xff]
    %v699 = vld [vmem:[%s690 + $0x40] sm:$0xff]
    %v700 = vld [vmem:[%s690 + $0x48] sm:$0xff]
    %v701 = vld [vmem:[%s690 + $0x50] sm:$0xff]
    %v702 = vld [vmem:[%s690 + $0x58] sm:$0xff]
    %v703 = vld [vmem:[%s690 + $0x60] sm:$0xff]
    %v704 = vld [vmem:[%s690 + $0x68] sm:$0xff]
    %v705 = vld [vmem:[%s690 + $0x70] sm:$0xff]
    %v706 = vld [vmem:[%s690 + $0x78] sm:$0xff]
    %v707 = vld [vmem:[%s690 + $0x80] sm:$0xff]
    %v708 = vld [vmem:[%s690 + $0x88] sm:$0xff]
    %v709 = vld [vmem:[%s690 + $0x90] sm:$0xff]
    %v710 = vld [vmem:[%s690 + $0x98] sm:$0xff]
    %v711 = vld [vmem:[%s690 + $0xa0] sm:$0xff]
    %v712 = vld [vmem:[%s690 + $0xa8] sm:$0xff]
    %v713 = vld [vmem:[%s690 + $0xb0] sm:$0xff]
    %v714 = vld [vmem:[%s690 + $0xb8] sm:$0xff]
    %v715 = vld [vmem:[%s690 + $0xc0] sm:$0xff]
    %v716 = vld [vmem:[%s690 + $0xc8] sm:$0xff]
    %v717 = vld [vmem:[%s690 + $0xd0] sm:$0xff]
    %v718 = vld [vmem:[%s690 + $0xd8] sm:$0xff]
    %v719 = vld [vmem:[%s690 + $0xe0] sm:$0xff]
    %v720 = vld [vmem:[%s690 + $0xe8] sm:$0xff]
    %v721 = vld [vmem:[%s690 + $0xf0] sm:$0xff]
    %v722 = vld [vmem:[%s690 + $0xf8] sm:$0xff]
    %v723 = vld [vmem:[%s690 + $0x100] sm:$0xff]
    %v724 = vld [vmem:[%s690 + $0x108] sm:$0xff]
    %v725 = vld [vmem:[%s690 + $0x110] sm:$0xff]
    %v726 = vld [vmem:[%s690 + $0x118] sm:$0xff]
    %v727 = vld [vmem:[%s690 + $0x120] sm:$0xff]
    %v728 = vld [vmem:[%s690 + $0x128] sm:$0xff]
    %v729 = vld [vmem:[%s690 + $0x130] sm:$0xff]
    %v730 = vld [vmem:[%s690 + $0x138] sm:$0xff]
    %v731 = vld [vmem:[%s690 + $0x140] sm:$0xff]
    %v732 = vld [vmem:[%s690 + $0x148] sm:$0xff]
    %v733 = vld [vmem:[%s690 + $0x150] sm:$0xff]
    %v734 = vld [vmem:[%s690 + $0x158] sm:$0xff]
    %v735 = vld [vmem:[%s690 + $0x160] sm:$0xff]
    %v736 = vld [vmem:[%s690 + $0x168] sm:$0xff]
    %v737 = vld [vmem:[%s690 + $0x170] sm:$0xff]
    %v738 = vld [vmem:[%s690 + $0x178] sm:$0xff]
    %739 = vmatprep.subr.mxu0 0.0
    %740 = vmatpush1.msra.mxu0 %v706
    %741 = vmatprep.subr.mxu0 0.0
    %742 = vmatpush1.msra.mxu0 %v705
    %743 = vmatprep.subr.mxu0 0.0
    %744 = vmatpush1.msra.mxu0 %v704
    %745 = vmatprep.subr.mxu0 0.0
    %746 = vmatpush1.msra.mxu0 %v703
    %747 = vmatprep.subr.mxu0 0.0
    %748 = vmatpush1.msra.mxu0 %v702
    %749 = vmatprep.subr.mxu0 0.0
    %750 = vmatpush1.msra.mxu0 %v701
    %751 = vmatprep.subr.mxu0 0.0
    %752 = vmatpush1.msra.mxu0 %v700
    %753 = vmatprep.subr.mxu0 0.0
    %754 = vmatpush1.msra.mxu0 %v699
    %755 = vmatprep.subr.mxu0 0.0
    %756 = vmatpush1.msra.mxu0 %v698
    %757 = vmatprep.subr.mxu0 0.0
    %758 = vmatpush1.msra.mxu0 %v697
    %759 = vmatprep.subr.mxu0 0.0
    %760 = vmatpush1.msra.mxu0 %v696
    %761 = vmatprep.subr.mxu0 0.0
    %762 = vmatpush1.msra.mxu0 %v695
    %763 = vmatprep.subr.mxu0 0.0
    %764 = vmatpush1.msra.mxu0 %v694
    %765 = vmatprep.subr.mxu0 0.0
    %766 = vmatpush1.msra.mxu0 %v693
    %767 = vmatprep.subr.mxu0 0.0
    %768 = vmatpush1.msra.mxu0 %v692
    %769 = vmatprep.subr.mxu0 0.0
    %770 = vmatpush1.msra.mxu0 %v691
    %771 = vmatprep.subr.mxu0 0.0
    %772 = vmatpush2.msra.mxu0 %v722
    %773 = vmatprep.subr.mxu0 0.0
    %774 = vmatpush2.msra.mxu0 %v721
    %775 = vmatprep.subr.mxu0 0.0
    %776 = vmatpush2.msra.mxu0 %v720
    %777 = vmatprep.subr.mxu0 0.0
    %778 = vmatpush2.msra.mxu0 %v719
    %779 = vmatprep.subr.mxu0 0.0
    %780 = vmatpush2.msra.mxu0 %v718
    %781 = vmatprep.subr.mxu0 0.0
    %782 = vmatpush2.msra.mxu0 %v717
    %783 = vmatprep.subr.mxu0 0.0
    %784 = vmatpush2.msra.mxu0 %v716
    %785 = vmatprep.subr.mxu0 0.0
    %786 = vmatpush2.msra.mxu0 %v715
    %787 = vmatprep.subr.mxu0 0.0
    %788 = vmatpush2.msra.mxu0 %v714
    %789 = vmatprep.subr.mxu0 0.0
    %790 = vmatpush2.msra.mxu0 %v713
    %791 = vmatprep.subr.mxu0 0.0
    %792 = vmatpush2.msra.mxu0 %v712
    %793 = vmatprep.subr.mxu0 0.0
    %794 = vmatpush2.msra.mxu0 %v711
    %795 = vmatprep.subr.mxu0 0.0
    %796 = vmatpush2.msra.mxu0 %v710
    %797 = vmatprep.subr.mxu0 0.0
    %798 = vmatpush2.msra.mxu0 %v709
    %799 = vmatprep.subr.mxu0 0.0
    %800 = vmatpush2.msra.mxu0 %v708
    %801 = vmatprep.subr.mxu0 0.0
    %802 = vmatpush2.msra.mxu0 %v707
    %803 = vmatprep.mubr.f32.mxu0 %v212
    %804 = vmatmul.mubr.f32.gmra.mxu0 %v183
    %v805 = vpop.f32.mrf.mxu0
    %v806 = vadd.f32 0.0, %v805
    %v807 = vpop.f32.mrf.mxu0
    %808 = vmatprep.mubr.f32.mxu0 %v215
    %809 = vmatmul.mubr.f32.gmra.mxu0 %v185
    %v810 = vpop.f32.mrf.mxu0
    %v811 = vadd.f32 0.0, %v810
    %v812 = vpop.f32.mrf.mxu0
    %813 = vmatprep.mubr.f32.mxu0 %v218
    %814 = vmatmul.mubr.f32.gmra.mxu0 %v187
    %v815 = vpop.f32.mrf.mxu0
    %v816 = vadd.f32 0.0, %v815
    %v817 = vpop.f32.mrf.mxu0
    %818 = vmatprep.mubr.f32.mxu0 %v221
    %819 = vmatmul.mubr.f32.gmra.mxu0 %v189
    %v820 = vpop.f32.mrf.mxu0
    %v821 = vadd.f32 0.0, %v820
    %v822 = vpop.f32.mrf.mxu0
    %823 = vdwg.mxu0
    %824 = vmatprep.subr.mxu0 0.0
    %825 = vmatpush1.msra.mxu0 %v738
    %826 = vmatprep.subr.mxu0 0.0
    %827 = vmatpush1.msra.mxu0 %v737
    %828 = vmatprep.subr.mxu0 0.0
    %829 = vmatpush1.msra.mxu0 %v736
    %830 = vmatprep.subr.mxu0 0.0
    %831 = vmatpush1.msra.mxu0 %v735
    %832 = vmatprep.subr.mxu0 0.0
    %833 = vmatpush1.msra.mxu0 %v734
    %834 = vmatprep.subr.mxu0 0.0
    %835 = vmatpush1.msra.mxu0 %v733
    %836 = vmatprep.subr.mxu0 0.0
    %837 = vmatpush1.msra.mxu0 %v732
    %838 = vmatprep.subr.mxu0 0.0
    %839 = vmatpush1.msra.mxu0 %v731
    %840 = vmatprep.subr.mxu0 0.0
    %841 = vmatpush1.msra.mxu0 %v730
    %842 = vmatprep.subr.mxu0 0.0
    %843 = vmatpush1.msra.mxu0 %v729
    %844 = vmatprep.subr.mxu0 0.0
    %845 = vmatpush1.msra.mxu0 %v728
    %846 = vmatprep.subr.mxu0 0.0
    %847 = vmatpush1.msra.mxu0 %v727
    %848 = vmatprep.subr.mxu0 0.0
    %849 = vmatpush1.msra.mxu0 %v726
    %850 = vmatprep.subr.mxu0 0.0
    %851 = vmatpush1.msra.mxu0 %v725
    %852 = vmatprep.subr.mxu0 0.0
    %853 = vmatpush1.msra.mxu0 %v724
    %854 = vmatprep.subr.mxu0 0.0
    %855 = vmatpush1.msra.mxu0 %v723
    %856 = vmatprep.subr.mxu0 0.0
    %857 = vmatpush2.msra.mxu0 0.0
    %858 = vmatprep.subr.mxu0 0.0
    %859 = vmatpush2.msra.mxu0 0.0
    %860 = vmatprep.subr.mxu0 0.0
    %861 = vmatpush2.msra.mxu0 0.0
    %862 = vmatprep.subr.mxu0 0.0
    %863 = vmatpush2.msra.mxu0 0.0
    %864 = vmatprep.subr.mxu0 0.0
    %865 = vmatpush2.msra.mxu0 0.0
    %866 = vmatprep.subr.mxu0 0.0
    %867 = vmatpush2.msra.mxu0 0.0
    %868 = vmatprep.subr.mxu0 0.0
    %869 = vmatpush2.msra.mxu0 0.0
    %870 = vmatprep.subr.mxu0 0.0
    %871 = vmatpush2.msra.mxu0 0.0
    %872 = vmatprep.subr.mxu0 0.0
    %873 = vmatpush2.msra.mxu0 0.0
    %874 = vmatprep.subr.mxu0 0.0
    %875 = vmatpush2.msra.mxu0 0.0
    %876 = vmatprep.subr.mxu0 0.0
    %877 = vmatpush2.msra.mxu0 0.0
    %878 = vmatprep.subr.mxu0 0.0
    %879 = vmatpush2.msra.mxu0 0.0
    %880 = vmatprep.subr.mxu0 0.0
    %881 = vmatpush2.msra.mxu0 0.0
    %882 = vmatprep.subr.mxu0 0.0
    %883 = vmatpush2.msra.mxu0 0.0
    %884 = vmatprep.subr.mxu0 0.0
    %885 = vmatpush2.msra.mxu0 0.0
    %886 = vmatprep.subr.mxu0 0.0
    %887 = vmatpush2.msra.mxu0 0.0
    %888 = vmatprep.mubr.f32.mxu0 0.0
    %889 = vmatmul.mubr.f32.gmra.mxu0 %v237
    %v890 = vpop.f32.mrf.mxu0
    %v891 = vadd.f32 %v806, %v890
    %v892 = vpop.f32.mrf.mxu0
    %893 = vmatprep.mubr.f32.mxu0 0.0
    %894 = vmatmul.mubr.f32.gmra.mxu0 %v240
    %v895 = vpop.f32.mrf.mxu0
    %v896 = vadd.f32 %v811, %v895
    %v897 = vpop.f32.mrf.mxu0
    %898 = vmatprep.mubr.f32.mxu0 0.0
    %899 = vmatmul.mubr.f32.gmra.mxu0 %v243
    %v900 = vpop.f32.mrf.mxu0
    %v901 = vadd.f32 %v816, %v900
    %v902 = vpop.f32.mrf.mxu0
    %903 = vmatprep.mubr.f32.mxu0 0.0
    %904 = vmatmul.mubr.f32.gmra.mxu0 %v246
    %v905 = vpop.f32.mrf.mxu0
    %v906 = vadd.f32 %v821, %v905
    %v907 = vpop.f32.mrf.mxu0
    %908 = vdwg.mxu0
    %v909 = vadd.f32 %v672, %v891
    %v910 = vadd.f32 %v677, %v896
    %v911 = vadd.f32 %v682, %v901
    %v912 = vadd.f32 %v687, %v906
    %v913 = vld [vmem:[%s11] sm:$0x1]
    %v915 = vlaneseq
    %v916 = vshrl.u32 %v915, 7
    %v917 = vsub.s32 0, %v916
    %v918 = vrot.slane %v913, %v917
    %v920 = vadd.f32 %v909, %v918
    %v921 = vadd.f32 %v910, %v918
    %v922 = vadd.f32 %v911, %v918
    %v923 = vadd.f32 %v912, %v918
    %v924 = vmax.f32 %v920, 0.0
    %v925 = vmax.f32 %v921, 0.0
    %v926 = vmax.f32 %v922, 0.0
    %v927 = vmax.f32 %v923, 0.0
    %v928 = vld [vmem:[%s2] sm:$0x1]
    %v930 = vlaneseq
    %v931 = vshrl.u32 %v930, 7
    %v932 = vsub.s32 0, %v931
    %v933 = vrot.slane %v928, %v932
    %v935 = vmul.f32 %v924, %v933
    %v936 = vmul.f32 %v925, %v933
    %v937 = vmul.f32 %v926, %v933
    %v938 = vmul.f32 %v927, %v933
    %939 = vst [vmem:[%s174 + $0x1] sm:$0xff] %v935
    %940 = vst [vmem:[%s174 + $0x11] sm:$0xff] %v936
    %941 = vst [vmem:[%s174 + $0x21] sm:$0xff] %v937
    %942 = vst [vmem:[%s174 + $0x31] sm:$0xff] %v938
    %v943 = vld [vmem:[#allocation2] sm:$0xff]
    %v944 = vld [vmem:[#allocation2 + $0x8] sm:$0x3]
    %v945 = vld [vmem:[#allocation2 + $0x10] sm:$0xff]
    %v946 = vld [vmem:[#allocation2 + $0x18] sm:$0x3]
    %v947 = vld [vmem:[#allocation2 + $0x20] sm:$0xff]
    %v948 = vld [vmem:[#allocation2 + $0x28] sm:$0x3]
    %v949 = vld [vmem:[#allocation2 + $0x30] sm:$0xff]
    %v950 = vld [vmem:[#allocation2 + $0x38] sm:$0x3]
    %v951 = vld [vmem:[#allocation2 + $0x40] sm:$0xff]
    %v952 = vld [vmem:[#allocation2 + $0x48] sm:$0x3]
    %v953 = vld [vmem:[#allocation2 + $0x50] sm:$0xff]
    %v954 = vld [vmem:[#allocation2 + $0x58] sm:$0x3]
    %v967 = vrot.slane %v943, 1
    %v968 = vrot.slane %v944, 1
    %v969 = vsel %vm203, %v967, %v968
    %v970 = vrot.slane %v945, 1
    %v971 = vrot.slane %v946, 1
    %v972 = vsel %vm203, %v970, %v971
    %v973 = vrot.slane %v947, 1
    %v974 = vrot.slane %v948, 1
    %v975 = vsel %vm203, %v973, %v974
    %v976 = vrot.slane %v949, 1
    %v977 = vrot.slane %v950, 1
    %v978 = vsel %vm203, %v976, %v977
    %v979 = vrot.slane %v951, 1
    %v980 = vrot.slane %v952, 1
    %v981 = vsel %vm203, %v979, %v980
    %v982 = vrot.slane %v953, 1
    %v983 = vrot.slane %v954, 1
    %v984 = vsel %vm203, %v982, %v983
    %v991 = vrot.slane %v943, 2
    %v992 = vrot.slane %v944, 2
    %v993 = vsel %vm228, %v991, %v992
    %v994 = vrot.slane %v945, 2
    %v995 = vrot.slane %v946, 2
    %v996 = vsel %vm228, %v994, %v995
    %v997 = vrot.slane %v947, 2
    %v998 = vrot.slane %v948, 2
    %v999 = vsel %vm228, %v997, %v998
    %v1000 = vrot.slane %v949, 2
    %v1001 = vrot.slane %v950, 2
    %v1002 = vsel %vm228, %v1000, %v1001
    %v1003 = vrot.slane %v951, 2
    %v1004 = vrot.slane %v952, 2
    %v1005 = vsel %vm228, %v1003, %v1004
    %v1006 = vrot.slane %v953, 2
    %v1007 = vrot.slane %v954, 2
    %v1008 = vsel %vm228, %v1006, %v1007
    %v1015 = vld [vmem:[#allocation8] sm:$0xff]
    %v1016 = vld [vmem:[#allocation8 + $0x8] sm:$0xff]
    %v1017 = vld [vmem:[#allocation8 + $0x10] sm:$0xff]
    %v1018 = vld [vmem:[#allocation8 + $0x18] sm:$0xff]
    %v1019 = vld [vmem:[#allocation8 + $0x20] sm:$0xff]
    %v1020 = vld [vmem:[#allocation8 + $0x28] sm:$0xff]
    %v1021 = vld [vmem:[#allocation8 + $0x30] sm:$0xff]
    %v1022 = vld [vmem:[#allocation8 + $0x38] sm:$0xff]
    %v1023 = vld [vmem:[#allocation8 + $0x40] sm:$0xff]
    %v1024 = vld [vmem:[#allocation8 + $0x48] sm:$0xff]
    %v1025 = vld [vmem:[#allocation8 + $0x50] sm:$0xff]
    %v1026 = vld [vmem:[#allocation8 + $0x58] sm:$0xff]
    %v1027 = vld [vmem:[#allocation8 + $0x60] sm:$0xff]
    %v1028 = vld [vmem:[#allocation8 + $0x68] sm:$0xff]
    %v1029 = vld [vmem:[#allocation8 + $0x70] sm:$0xff]
    %v1030 = vld [vmem:[#allocation8 + $0x78] sm:$0xff]
    %v1031 = vld [vmem:[#allocation8 + $0x80] sm:$0xff]
    %v1032 = vld [vmem:[#allocation8 + $0x88] sm:$0xff]
    %v1033 = vld [vmem:[#allocation8 + $0x90] sm:$0xff]
    %v1034 = vld [vmem:[#allocation8 + $0x98] sm:$0xff]
    %v1035 = vld [vmem:[#allocation8 + $0xa0] sm:$0xff]
    %v1036 = vld [vmem:[#allocation8 + $0xa8] sm:$0xff]
    %v1037 = vld [vmem:[#allocation8 + $0xb0] sm:$0xff]
    %v1038 = vld [vmem:[#allocation8 + $0xb8] sm:$0xff]
    %v1039 = vld [vmem:[#allocation8 + $0xc0] sm:$0xff]
    %v1040 = vld [vmem:[#allocation8 + $0xc8] sm:$0xff]
    %v1041 = vld [vmem:[#allocation8 + $0xd0] sm:$0xff]
    %v1042 = vld [vmem:[#allocation8 + $0xd8] sm:$0xff]
    %v1043 = vld [vmem:[#allocation8 + $0xe0] sm:$0xff]
    %v1044 = vld [vmem:[#allocation8 + $0xe8] sm:$0xff]
    %v1045 = vld [vmem:[#allocation8 + $0xf0] sm:$0xff]
    %v1046 = vld [vmem:[#allocation8 + $0xf8] sm:$0xff]
    %v1047 = vld [vmem:[#allocation8 + $0x100] sm:$0xff]
    %v1048 = vld [vmem:[#allocation8 + $0x108] sm:$0xff]
    %v1049 = vld [vmem:[#allocation8 + $0x110] sm:$0xff]
    %v1050 = vld [vmem:[#allocation8 + $0x118] sm:$0xff]
    %v1051 = vld [vmem:[#allocation8 + $0x120] sm:$0xff]
    %v1052 = vld [vmem:[#allocation8 + $0x128] sm:$0xff]
    %v1053 = vld [vmem:[#allocation8 + $0x130] sm:$0xff]
    %v1054 = vld [vmem:[#allocation8 + $0x138] sm:$0xff]
    %v1055 = vld [vmem:[#allocation8 + $0x140] sm:$0xff]
    %v1056 = vld [vmem:[#allocation8 + $0x148] sm:$0xff]
    %v1057 = vld [vmem:[#allocation8 + $0x150] sm:$0xff]
    %v1058 = vld [vmem:[#allocation8 + $0x158] sm:$0xff]
    %v1059 = vld [vmem:[#allocation8 + $0x160] sm:$0xff]
    %v1060 = vld [vmem:[#allocation8 + $0x168] sm:$0xff]
    %v1061 = vld [vmem:[#allocation8 + $0x170] sm:$0xff]
    %v1062 = vld [vmem:[#allocation8 + $0x178] sm:$0xff]
    %s1063 = scalar_lea.vmem [#allocation8], 384
    %v1064 = vld [vmem:[%s1063] sm:$0xff]
    %v1065 = vld [vmem:[%s1063 + $0x8] sm:$0xff]
    %v1066 = vld [vmem:[%s1063 + $0x10] sm:$0xff]
    %v1067 = vld [vmem:[%s1063 + $0x18] sm:$0xff]
    %v1068 = vld [vmem:[%s1063 + $0x20] sm:$0xff]
    %v1069 = vld [vmem:[%s1063 + $0x28] sm:$0xff]
    %v1070 = vld [vmem:[%s1063 + $0x30] sm:$0xff]
    %v1071 = vld [vmem:[%s1063 + $0x38] sm:$0xff]
    %v1072 = vld [vmem:[%s1063 + $0x40] sm:$0xff]
    %v1073 = vld [vmem:[%s1063 + $0x48] sm:$0xff]
    %v1074 = vld [vmem:[%s1063 + $0x50] sm:$0xff]
    %v1075 = vld [vmem:[%s1063 + $0x58] sm:$0xff]
    %v1076 = vld [vmem:[%s1063 + $0x60] sm:$0xff]
    %v1077 = vld [vmem:[%s1063 + $0x68] sm:$0xff]
    %v1078 = vld [vmem:[%s1063 + $0x70] sm:$0xff]
    %v1079 = vld [vmem:[%s1063 + $0x78] sm:$0xff]
    %v1080 = vld [vmem:[%s1063 + $0x80] sm:$0xff]
    %v1081 = vld [vmem:[%s1063 + $0x88] sm:$0xff]
    %v1082 = vld [vmem:[%s1063 + $0x90] sm:$0xff]
    %v1083 = vld [vmem:[%s1063 + $0x98] sm:$0xff]
    %v1084 = vld [vmem:[%s1063 + $0xa0] sm:$0xff]
    %v1085 = vld [vmem:[%s1063 + $0xa8] sm:$0xff]
    %v1086 = vld [vmem:[%s1063 + $0xb0] sm:$0xff]
    %v1087 = vld [vmem:[%s1063 + $0xb8] sm:$0xff]
    %v1088 = vld [vmem:[%s1063 + $0xc0] sm:$0xff]
    %v1089 = vld [vmem:[%s1063 + $0xc8] sm:$0xff]
    %v1090 = vld [vmem:[%s1063 + $0xd0] sm:$0xff]
    %v1091 = vld [vmem:[%s1063 + $0xd8] sm:$0xff]
    %v1092 = vld [vmem:[%s1063 + $0xe0] sm:$0xff]
    %v1093 = vld [vmem:[%s1063 + $0xe8] sm:$0xff]
    %v1094 = vld [vmem:[%s1063 + $0xf0] sm:$0xff]
    %v1095 = vld [vmem:[%s1063 + $0xf8] sm:$0xff]
    %v1096 = vld [vmem:[%s1063 + $0x100] sm:$0xff]
    %v1097 = vld [vmem:[%s1063 + $0x108] sm:$0xff]
    %v1098 = vld [vmem:[%s1063 + $0x110] sm:$0xff]
    %v1099 = vld [vmem:[%s1063 + $0x118] sm:$0xff]
    %v1100 = vld [vmem:[%s1063 + $0x120] sm:$0xff]
    %v1101 = vld [vmem:[%s1063 + $0x128] sm:$0xff]
    %v1102 = vld [vmem:[%s1063 + $0x130] sm:$0xff]
    %v1103 = vld [vmem:[%s1063 + $0x138] sm:$0xff]
    %v1104 = vld [vmem:[%s1063 + $0x140] sm:$0xff]
    %v1105 = vld [vmem:[%s1063 + $0x148] sm:$0xff]
    %v1106 = vld [vmem:[%s1063 + $0x150] sm:$0xff]
    %v1107 = vld [vmem:[%s1063 + $0x158] sm:$0xff]
    %v1108 = vld [vmem:[%s1063 + $0x160] sm:$0xff]
    %v1109 = vld [vmem:[%s1063 + $0x168] sm:$0xff]
    %v1110 = vld [vmem:[%s1063 + $0x170] sm:$0xff]
    %v1111 = vld [vmem:[%s1063 + $0x178] sm:$0xff]
    %1112 = vmatprep.subr.mxu0 0.0
    %1113 = vmatpush1.msra.mxu0 %v1079
    %1114 = vmatprep.subr.mxu0 0.0
    %1115 = vmatpush1.msra.mxu0 %v1078
    %1116 = vmatprep.subr.mxu0 0.0
    %1117 = vmatpush1.msra.mxu0 %v1077
    %1118 = vmatprep.subr.mxu0 0.0
    %1119 = vmatpush1.msra.mxu0 %v1076
    %1120 = vmatprep.subr.mxu0 0.0
    %1121 = vmatpush1.msra.mxu0 %v1075
    %1122 = vmatprep.subr.mxu0 0.0
    %1123 = vmatpush1.msra.mxu0 %v1074
    %1124 = vmatprep.subr.mxu0 0.0
    %1125 = vmatpush1.msra.mxu0 %v1073
    %1126 = vmatprep.subr.mxu0 0.0
    %1127 = vmatpush1.msra.mxu0 %v1072
    %1128 = vmatprep.subr.mxu0 0.0
    %1129 = vmatpush1.msra.mxu0 %v1071
    %1130 = vmatprep.subr.mxu0 0.0
    %1131 = vmatpush1.msra.mxu0 %v1070
    %1132 = vmatprep.subr.mxu0 0.0
    %1133 = vmatpush1.msra.mxu0 %v1069
    %1134 = vmatprep.subr.mxu0 0.0
    %1135 = vmatpush1.msra.mxu0 %v1068
    %1136 = vmatprep.subr.mxu0 0.0
    %1137 = vmatpush1.msra.mxu0 %v1067
    %1138 = vmatprep.subr.mxu0 0.0
    %1139 = vmatpush1.msra.mxu0 %v1066
    %1140 = vmatprep.subr.mxu0 0.0
    %1141 = vmatpush1.msra.mxu0 %v1065
    %1142 = vmatprep.subr.mxu0 0.0
    %1143 = vmatpush1.msra.mxu0 %v1064
    %1144 = vmatprep.subr.mxu0 0.0
    %1145 = vmatpush2.msra.mxu0 %v1095
    %1146 = vmatprep.subr.mxu0 0.0
    %1147 = vmatpush2.msra.mxu0 %v1094
    %1148 = vmatprep.subr.mxu0 0.0
    %1149 = vmatpush2.msra.mxu0 %v1093
    %1150 = vmatprep.subr.mxu0 0.0
    %1151 = vmatpush2.msra.mxu0 %v1092
    %1152 = vmatprep.subr.mxu0 0.0
    %1153 = vmatpush2.msra.mxu0 %v1091
    %1154 = vmatprep.subr.mxu0 0.0
    %1155 = vmatpush2.msra.mxu0 %v1090
    %1156 = vmatprep.subr.mxu0 0.0
    %1157 = vmatpush2.msra.mxu0 %v1089
    %1158 = vmatprep.subr.mxu0 0.0
    %1159 = vmatpush2.msra.mxu0 %v1088
    %1160 = vmatprep.subr.mxu0 0.0
    %1161 = vmatpush2.msra.mxu0 %v1087
    %1162 = vmatprep.subr.mxu0 0.0
    %1163 = vmatpush2.msra.mxu0 %v1086
    %1164 = vmatprep.subr.mxu0 0.0
    %1165 = vmatpush2.msra.mxu0 %v1085
    %1166 = vmatprep.subr.mxu0 0.0
    %1167 = vmatpush2.msra.mxu0 %v1084
    %1168 = vmatprep.subr.mxu0 0.0
    %1169 = vmatpush2.msra.mxu0 %v1083
    %1170 = vmatprep.subr.mxu0 0.0
    %1171 = vmatpush2.msra.mxu0 %v1082
    %1172 = vmatprep.subr.mxu0 0.0
    %1173 = vmatpush2.msra.mxu0 %v1081
    %1174 = vmatprep.subr.mxu0 0.0
    %1175 = vmatpush2.msra.mxu0 %v1080
    %1176 = vmatprep.mubr.f32.mxu0 %v972
    %1177 = vmatmul.mubr.f32.gmra.mxu0 %v945
    %v1178 = vpop.f32.mrf.mxu0
    %v1179 = vadd.f32 0.0, %v1178
    %v1180 = vpop.f32.mrf.mxu0
    %1181 = vmatprep.mubr.f32.mxu0 %v975
    %1182 = vmatmul.mubr.f32.gmra.mxu0 %v947
    %v1183 = vpop.f32.mrf.mxu0
    %v1184 = vadd.f32 0.0, %v1183
    %v1185 = vpop.f32.mrf.mxu0
    %1186 = vmatprep.mubr.f32.mxu0 %v978
    %1187 = vmatmul.mubr.f32.gmra.mxu0 %v949
    %v1188 = vpop.f32.mrf.mxu0
    %v1189 = vadd.f32 0.0, %v1188
    %v1190 = vpop.f32.mrf.mxu0
    %1191 = vmatprep.mubr.f32.mxu0 %v981
    %1192 = vmatmul.mubr.f32.gmra.mxu0 %v951
    %v1193 = vpop.f32.mrf.mxu0
    %v1194 = vadd.f32 0.0, %v1193
    %v1195 = vpop.f32.mrf.mxu0
    %1196 = vdwg.mxu0
    %1197 = vmatprep.subr.mxu0 0.0
    %1198 = vmatpush1.msra.mxu0 %v1111
    %1199 = vmatprep.subr.mxu0 0.0
    %1200 = vmatpush1.msra.mxu0 %v1110
    %1201 = vmatprep.subr.mxu0 0.0
    %1202 = vmatpush1.msra.mxu0 %v1109
    %1203 = vmatprep.subr.mxu0 0.0
    %1204 = vmatpush1.msra.mxu0 %v1108
    %1205 = vmatprep.subr.mxu0 0.0
    %1206 = vmatpush1.msra.mxu0 %v1107
    %1207 = vmatprep.subr.mxu0 0.0
    %1208 = vmatpush1.msra.mxu0 %v1106
    %1209 = vmatprep.subr.mxu0 0.0
    %1210 = vmatpush1.msra.mxu0 %v1105
    %1211 = vmatprep.subr.mxu0 0.0
    %1212 = vmatpush1.msra.mxu0 %v1104
    %1213 = vmatprep.subr.mxu0 0.0
    %1214 = vmatpush1.msra.mxu0 %v1103
    %1215 = vmatprep.subr.mxu0 0.0
    %1216 = vmatpush1.msra.mxu0 %v1102
    %1217 = vmatprep.subr.mxu0 0.0
    %1218 = vmatpush1.msra.mxu0 %v1101
    %1219 = vmatprep.subr.mxu0 0.0
    %1220 = vmatpush1.msra.mxu0 %v1100
    %1221 = vmatprep.subr.mxu0 0.0
    %1222 = vmatpush1.msra.mxu0 %v1099
    %1223 = vmatprep.subr.mxu0 0.0
    %1224 = vmatpush1.msra.mxu0 %v1098
    %1225 = vmatprep.subr.mxu0 0.0
    %1226 = vmatpush1.msra.mxu0 %v1097
    %1227 = vmatprep.subr.mxu0 0.0
    %1228 = vmatpush1.msra.mxu0 %v1096
    %1229 = vmatprep.subr.mxu0 0.0
    %1230 = vmatpush2.msra.mxu0 0.0
    %1231 = vmatprep.subr.mxu0 0.0
    %1232 = vmatpush2.msra.mxu0 0.0
    %1233 = vmatprep.subr.mxu0 0.0
    %1234 = vmatpush2.msra.mxu0 0.0
    %1235 = vmatprep.subr.mxu0 0.0
    %1236 = vmatpush2.msra.mxu0 0.0
    %1237 = vmatprep.subr.mxu0 0.0
    %1238 = vmatpush2.msra.mxu0 0.0
    %1239 = vmatprep.subr.mxu0 0.0
    %1240 = vmatpush2.msra.mxu0 0.0
    %1241 = vmatprep.subr.mxu0 0.0
    %1242 = vmatpush2.msra.mxu0 0.0
    %1243 = vmatprep.subr.mxu0 0.0
    %1244 = vmatpush2.msra.mxu0 0.0
    %1245 = vmatprep.subr.mxu0 0.0
    %1246 = vmatpush2.msra.mxu0 0.0
    %1247 = vmatprep.subr.mxu0 0.0
    %1248 = vmatpush2.msra.mxu0 0.0
    %1249 = vmatprep.subr.mxu0 0.0
    %1250 = vmatpush2.msra.mxu0 0.0
    %1251 = vmatprep.subr.mxu0 0.0
    %1252 = vmatpush2.msra.mxu0 0.0
    %1253 = vmatprep.subr.mxu0 0.0
    %1254 = vmatpush2.msra.mxu0 0.0
    %1255 = vmatprep.subr.mxu0 0.0
    %1256 = vmatpush2.msra.mxu0 0.0
    %1257 = vmatprep.subr.mxu0 0.0
    %1258 = vmatpush2.msra.mxu0 0.0
    %1259 = vmatprep.subr.mxu0 0.0
    %1260 = vmatpush2.msra.mxu0 0.0
    %1261 = vmatprep.mubr.f32.mxu0 0.0
    %1262 = vmatmul.mubr.f32.gmra.mxu0 %v996
    %v1263 = vpop.f32.mrf.mxu0
    %v1264 = vadd.f32 %v1179, %v1263
    %v1265 = vpop.f32.mrf.mxu0
    %1266 = vmatprep.mubr.f32.mxu0 0.0
    %1267 = vmatmul.mubr.f32.gmra.mxu0 %v999
    %v1268 = vpop.f32.mrf.mxu0
    %v1269 = vadd.f32 %v1184, %v1268
    %v1270 = vpop.f32.mrf.mxu0
    %1271 = vmatprep.mubr.f32.mxu0 0.0
    %1272 = vmatmul.mubr.f32.gmra.mxu0 %v1002
    %v1273 = vpop.f32.mrf.mxu0
    %v1274 = vadd.f32 %v1189, %v1273
    %v1275 = vpop.f32.mrf.mxu0
    %1276 = vmatprep.mubr.f32.mxu0 0.0
    %1277 = vmatmul.mubr.f32.gmra.mxu0 %v1005
    %v1278 = vpop.f32.mrf.mxu0
    %v1279 = vadd.f32 %v1194, %v1278
    %v1280 = vpop.f32.mrf.mxu0
    %1281 = vdwg.mxu0
    %1282 = vmatprep.subr.mxu0 0.0
    %1283 = vmatpush1.msra.mxu0 %v1030
    %1284 = vmatprep.subr.mxu0 0.0
    %1285 = vmatpush1.msra.mxu0 %v1029
    %1286 = vmatprep.subr.mxu0 0.0
    %1287 = vmatpush1.msra.mxu0 %v1028
    %1288 = vmatprep.subr.mxu0 0.0
    %1289 = vmatpush1.msra.mxu0 %v1027
    %1290 = vmatprep.subr.mxu0 0.0
    %1291 = vmatpush1.msra.mxu0 %v1026
    %1292 = vmatprep.subr.mxu0 0.0
    %1293 = vmatpush1.msra.mxu0 %v1025
    %1294 = vmatprep.subr.mxu0 0.0
    %1295 = vmatpush1.msra.mxu0 %v1024
    %1296 = vmatprep.subr.mxu0 0.0
    %1297 = vmatpush1.msra.mxu0 %v1023
    %1298 = vmatprep.subr.mxu0 0.0
    %1299 = vmatpush1.msra.mxu0 %v1022
    %1300 = vmatprep.subr.mxu0 0.0
    %1301 = vmatpush1.msra.mxu0 %v1021
    %1302 = vmatprep.subr.mxu0 0.0
    %1303 = vmatpush1.msra.mxu0 %v1020
    %1304 = vmatprep.subr.mxu0 0.0
    %1305 = vmatpush1.msra.mxu0 %v1019
    %1306 = vmatprep.subr.mxu0 0.0
    %1307 = vmatpush1.msra.mxu0 %v1018
    %1308 = vmatprep.subr.mxu0 0.0
    %1309 = vmatpush1.msra.mxu0 %v1017
    %1310 = vmatprep.subr.mxu0 0.0
    %1311 = vmatpush1.msra.mxu0 %v1016
    %1312 = vmatprep.subr.mxu0 0.0
    %1313 = vmatpush1.msra.mxu0 %v1015
    %1314 = vmatprep.subr.mxu0 0.0
    %1315 = vmatpush2.msra.mxu0 %v1046
    %1316 = vmatprep.subr.mxu0 0.0
    %1317 = vmatpush2.msra.mxu0 %v1045
    %1318 = vmatprep.subr.mxu0 0.0
    %1319 = vmatpush2.msra.mxu0 %v1044
    %1320 = vmatprep.subr.mxu0 0.0
    %1321 = vmatpush2.msra.mxu0 %v1043
    %1322 = vmatprep.subr.mxu0 0.0
    %1323 = vmatpush2.msra.mxu0 %v1042
    %1324 = vmatprep.subr.mxu0 0.0
    %1325 = vmatpush2.msra.mxu0 %v1041
    %1326 = vmatprep.subr.mxu0 0.0
    %1327 = vmatpush2.msra.mxu0 %v1040
    %1328 = vmatprep.subr.mxu0 0.0
    %1329 = vmatpush2.msra.mxu0 %v1039
    %1330 = vmatprep.subr.mxu0 0.0
    %1331 = vmatpush2.msra.mxu0 %v1038
    %1332 = vmatprep.subr.mxu0 0.0
    %1333 = vmatpush2.msra.mxu0 %v1037
    %1334 = vmatprep.subr.mxu0 0.0
    %1335 = vmatpush2.msra.mxu0 %v1036
    %1336 = vmatprep.subr.mxu0 0.0
    %1337 = vmatpush2.msra.mxu0 %v1035
    %1338 = vmatprep.subr.mxu0 0.0
    %1339 = vmatpush2.msra.mxu0 %v1034
    %1340 = vmatprep.subr.mxu0 0.0
    %1341 = vmatpush2.msra.mxu0 %v1033
    %1342 = vmatprep.subr.mxu0 0.0
    %1343 = vmatpush2.msra.mxu0 %v1032
    %1344 = vmatprep.subr.mxu0 0.0
    %1345 = vmatpush2.msra.mxu0 %v1031
    %1346 = vmatprep.mubr.f32.mxu0 %v969
    %1347 = vmatmul.mubr.f32.gmra.mxu0 %v943
    %v1348 = vpop.f32.mrf.mxu0
    %v1349 = vadd.f32 %v1264, %v1348
    %v1350 = vpop.f32.mrf.mxu0
    %1351 = vmatprep.mubr.f32.mxu0 %v972
    %1352 = vmatmul.mubr.f32.gmra.mxu0 %v945
    %v1353 = vpop.f32.mrf.mxu0
    %v1354 = vadd.f32 %v1269, %v1353
    %v1355 = vpop.f32.mrf.mxu0
    %1356 = vmatprep.mubr.f32.mxu0 %v975
    %1357 = vmatmul.mubr.f32.gmra.mxu0 %v947
    %v1358 = vpop.f32.mrf.mxu0
    %v1359 = vadd.f32 %v1274, %v1358
    %v1360 = vpop.f32.mrf.mxu0
    %1361 = vmatprep.mubr.f32.mxu0 %v978
    %1362 = vmatmul.mubr.f32.gmra.mxu0 %v949
    %v1363 = vpop.f32.mrf.mxu0
    %v1364 = vadd.f32 %v1279, %v1363
    %v1365 = vpop.f32.mrf.mxu0
    %1366 = vdwg.mxu0
    %1367 = vmatprep.subr.mxu0 0.0
    %1368 = vmatpush1.msra.mxu0 %v1062
    %1369 = vmatprep.subr.mxu0 0.0
    %1370 = vmatpush1.msra.mxu0 %v1061
    %1371 = vmatprep.subr.mxu0 0.0
    %1372 = vmatpush1.msra.mxu0 %v1060
    %1373 = vmatprep.subr.mxu0 0.0
    %1374 = vmatpush1.msra.mxu0 %v1059
    %1375 = vmatprep.subr.mxu0 0.0
    %1376 = vmatpush1.msra.mxu0 %v1058
    %1377 = vmatprep.subr.mxu0 0.0
    %1378 = vmatpush1.msra.mxu0 %v1057
    %1379 = vmatprep.subr.mxu0 0.0
    %1380 = vmatpush1.msra.mxu0 %v1056
    %1381 = vmatprep.subr.mxu0 0.0
    %1382 = vmatpush1.msra.mxu0 %v1055
    %1383 = vmatprep.subr.mxu0 0.0
    %1384 = vmatpush1.msra.mxu0 %v1054
    %1385 = vmatprep.subr.mxu0 0.0
    %1386 = vmatpush1.msra.mxu0 %v1053
    %1387 = vmatprep.subr.mxu0 0.0
    %1388 = vmatpush1.msra.mxu0 %v1052
    %1389 = vmatprep.subr.mxu0 0.0
    %1390 = vmatpush1.msra.mxu0 %v1051
    %1391 = vmatprep.subr.mxu0 0.0
    %1392 = vmatpush1.msra.mxu0 %v1050
    %1393 = vmatprep.subr.mxu0 0.0
    %1394 = vmatpush1.msra.mxu0 %v1049
    %1395 = vmatprep.subr.mxu0 0.0
    %1396 = vmatpush1.msra.mxu0 %v1048
    %1397 = vmatprep.subr.mxu0 0.0
    %1398 = vmatpush1.msra.mxu0 %v1047
    %1399 = vmatprep.subr.mxu0 0.0
    %1400 = vmatpush2.msra.mxu0 0.0
    %1401 = vmatprep.subr.mxu0 0.0
    %1402 = vmatpush2.msra.mxu0 0.0
    %1403 = vmatprep.subr.mxu0 0.0
    %1404 = vmatpush2.msra.mxu0 0.0
    %1405 = vmatprep.subr.mxu0 0.0
    %1406 = vmatpush2.msra.mxu0 0.0
    %1407 = vmatprep.subr.mxu0 0.0
    %1408 = vmatpush2.msra.mxu0 0.0
    %1409 = vmatprep.subr.mxu0 0.0
    %1410 = vmatpush2.msra.mxu0 0.0
    %1411 = vmatprep.subr.mxu0 0.0
    %1412 = vmatpush2.msra.mxu0 0.0
    %1413 = vmatprep.subr.mxu0 0.0
    %1414 = vmatpush2.msra.mxu0 0.0
    %1415 = vmatprep.subr.mxu0 0.0
    %1416 = vmatpush2.msra.mxu0 0.0
    %1417 = vmatprep.subr.mxu0 0.0
    %1418 = vmatpush2.msra.mxu0 0.0
    %1419 = vmatprep.subr.mxu0 0.0
    %1420 = vmatpush2.msra.mxu0 0.0
    %1421 = vmatprep.subr.mxu0 0.0
    %1422 = vmatpush2.msra.mxu0 0.0
    %1423 = vmatprep.subr.mxu0 0.0
    %1424 = vmatpush2.msra.mxu0 0.0
    %1425 = vmatprep.subr.mxu0 0.0
    %1426 = vmatpush2.msra.mxu0 0.0
    %1427 = vmatprep.subr.mxu0 0.0
    %1428 = vmatpush2.msra.mxu0 0.0
    %1429 = vmatprep.subr.mxu0 0.0
    %1430 = vmatpush2.msra.mxu0 0.0
    %1431 = vmatprep.mubr.f32.mxu0 0.0
    %1432 = vmatmul.mubr.f32.gmra.mxu0 %v993
    %v1433 = vpop.f32.mrf.mxu0
    %v1434 = vadd.f32 %v1349, %v1433
    %v1435 = vpop.f32.mrf.mxu0
    %1436 = vmatprep.mubr.f32.mxu0 0.0
    %1437 = vmatmul.mubr.f32.gmra.mxu0 %v996
    %v1438 = vpop.f32.mrf.mxu0
    %v1439 = vadd.f32 %v1354, %v1438
    %v1440 = vpop.f32.mrf.mxu0
    %1441 = vmatprep.mubr.f32.mxu0 0.0
    %1442 = vmatmul.mubr.f32.gmra.mxu0 %v999
    %v1443 = vpop.f32.mrf.mxu0
    %v1444 = vadd.f32 %v1359, %v1443
    %v1445 = vpop.f32.mrf.mxu0
    %1446 = vmatprep.mubr.f32.mxu0 0.0
    %1447 = vmatmul.mubr.f32.gmra.mxu0 %v1002
    %v1448 = vpop.f32.mrf.mxu0
    %v1449 = vadd.f32 %v1364, %v1448
    %v1450 = vpop.f32.mrf.mxu0
    %1451 = vdwg.mxu0
    %s1452 = scalar_lea.vmem [#allocation8], 768
    %v1453 = vld [vmem:[%s1452] sm:$0xff]
    %v1454 = vld [vmem:[%s1452 + $0x8] sm:$0xff]
    %v1455 = vld [vmem:[%s1452 + $0x10] sm:$0xff]
    %v1456 = vld [vmem:[%s1452 + $0x18] sm:$0xff]
    %v1457 = vld [vmem:[%s1452 + $0x20] sm:$0xff]
    %v1458 = vld [vmem:[%s1452 + $0x28] sm:$0xff]
    %v1459 = vld [vmem:[%s1452 + $0x30] sm:$0xff]
    %v1460 = vld [vmem:[%s1452 + $0x38] sm:$0xff]
    %v1461 = vld [vmem:[%s1452 + $0x40] sm:$0xff]
    %v1462 = vld [vmem:[%s1452 + $0x48] sm:$0xff]
    %v1463 = vld [vmem:[%s1452 + $0x50] sm:$0xff]
    %v1464 = vld [vmem:[%s1452 + $0x58] sm:$0xff]
    %v1465 = vld [vmem:[%s1452 + $0x60] sm:$0xff]
    %v1466 = vld [vmem:[%s1452 + $0x68] sm:$0xff]
    %v1467 = vld [vmem:[%s1452 + $0x70] sm:$0xff]
    %v1468 = vld [vmem:[%s1452 + $0x78] sm:$0xff]
    %v1469 = vld [vmem:[%s1452 + $0x80] sm:$0xff]
    %v1470 = vld [vmem:[%s1452 + $0x88] sm:$0xff]
    %v1471 = vld [vmem:[%s1452 + $0x90] sm:$0xff]
    %v1472 = vld [vmem:[%s1452 + $0x98] sm:$0xff]
    %v1473 = vld [vmem:[%s1452 + $0xa0] sm:$0xff]
    %v1474 = vld [vmem:[%s1452 + $0xa8] sm:$0xff]
    %v1475 = vld [vmem:[%s1452 + $0xb0] sm:$0xff]
    %v1476 = vld [vmem:[%s1452 + $0xb8] sm:$0xff]
    %v1477 = vld [vmem:[%s1452 + $0xc0] sm:$0xff]
    %v1478 = vld [vmem:[%s1452 + $0xc8] sm:$0xff]
    %v1479 = vld [vmem:[%s1452 + $0xd0] sm:$0xff]
    %v1480 = vld [vmem:[%s1452 + $0xd8] sm:$0xff]
    %v1481 = vld [vmem:[%s1452 + $0xe0] sm:$0xff]
    %v1482 = vld [vmem:[%s1452 + $0xe8] sm:$0xff]
    %v1483 = vld [vmem:[%s1452 + $0xf0] sm:$0xff]
    %v1484 = vld [vmem:[%s1452 + $0xf8] sm:$0xff]
    %v1485 = vld [vmem:[%s1452 + $0x100] sm:$0xff]
    %v1486 = vld [vmem:[%s1452 + $0x108] sm:$0xff]
    %v1487 = vld [vmem:[%s1452 + $0x110] sm:$0xff]
    %v1488 = vld [vmem:[%s1452 + $0x118] sm:$0xff]
    %v1489 = vld [vmem:[%s1452 + $0x120] sm:$0xff]
    %v1490 = vld [vmem:[%s1452 + $0x128] sm:$0xff]
    %v1491 = vld [vmem:[%s1452 + $0x130] sm:$0xff]
    %v1492 = vld [vmem:[%s1452 + $0x138] sm:$0xff]
    %v1493 = vld [vmem:[%s1452 + $0x140] sm:$0xff]
    %v1494 = vld [vmem:[%s1452 + $0x148] sm:$0xff]
    %v1495 = vld [vmem:[%s1452 + $0x150] sm:$0xff]
    %v1496 = vld [vmem:[%s1452 + $0x158] sm:$0xff]
    %v1497 = vld [vmem:[%s1452 + $0x160] sm:$0xff]
    %v1498 = vld [vmem:[%s1452 + $0x168] sm:$0xff]
    %v1499 = vld [vmem:[%s1452 + $0x170] sm:$0xff]
    %v1500 = vld [vmem:[%s1452 + $0x178] sm:$0xff]
    %1501 = vmatprep.subr.mxu0 0.0
    %1502 = vmatpush1.msra.mxu0 %v1468
    %1503 = vmatprep.subr.mxu0 0.0
    %1504 = vmatpush1.msra.mxu0 %v1467
    %1505 = vmatprep.subr.mxu0 0.0
    %1506 = vmatpush1.msra.mxu0 %v1466
    %1507 = vmatprep.subr.mxu0 0.0
    %1508 = vmatpush1.msra.mxu0 %v1465
    %1509 = vmatprep.subr.mxu0 0.0
    %1510 = vmatpush1.msra.mxu0 %v1464
    %1511 = vmatprep.subr.mxu0 0.0
    %1512 = vmatpush1.msra.mxu0 %v1463
    %1513 = vmatprep.subr.mxu0 0.0
    %1514 = vmatpush1.msra.mxu0 %v1462
    %1515 = vmatprep.subr.mxu0 0.0
    %1516 = vmatpush1.msra.mxu0 %v1461
    %1517 = vmatprep.subr.mxu0 0.0
    %1518 = vmatpush1.msra.mxu0 %v1460
    %1519 = vmatprep.subr.mxu0 0.0
    %1520 = vmatpush1.msra.mxu0 %v1459
    %1521 = vmatprep.subr.mxu0 0.0
    %1522 = vmatpush1.msra.mxu0 %v1458
    %1523 = vmatprep.subr.mxu0 0.0
    %1524 = vmatpush1.msra.mxu0 %v1457
    %1525 = vmatprep.subr.mxu0 0.0
    %1526 = vmatpush1.msra.mxu0 %v1456
    %1527 = vmatprep.subr.mxu0 0.0
    %1528 = vmatpush1.msra.mxu0 %v1455
    %1529 = vmatprep.subr.mxu0 0.0
    %1530 = vmatpush1.msra.mxu0 %v1454
    %1531 = vmatprep.subr.mxu0 0.0
    %1532 = vmatpush1.msra.mxu0 %v1453
    %1533 = vmatprep.subr.mxu0 0.0
    %1534 = vmatpush2.msra.mxu0 %v1484
    %1535 = vmatprep.subr.mxu0 0.0
    %1536 = vmatpush2.msra.mxu0 %v1483
    %1537 = vmatprep.subr.mxu0 0.0
    %1538 = vmatpush2.msra.mxu0 %v1482
    %1539 = vmatprep.subr.mxu0 0.0
    %1540 = vmatpush2.msra.mxu0 %v1481
    %1541 = vmatprep.subr.mxu0 0.0
    %1542 = vmatpush2.msra.mxu0 %v1480
    %1543 = vmatprep.subr.mxu0 0.0
    %1544 = vmatpush2.msra.mxu0 %v1479
    %1545 = vmatprep.subr.mxu0 0.0
    %1546 = vmatpush2.msra.mxu0 %v1478
    %1547 = vmatprep.subr.mxu0 0.0
    %1548 = vmatpush2.msra.mxu0 %v1477
    %1549 = vmatprep.subr.mxu0 0.0
    %1550 = vmatpush2.msra.mxu0 %v1476
    %1551 = vmatprep.subr.mxu0 0.0
    %1552 = vmatpush2.msra.mxu0 %v1475
    %1553 = vmatprep.subr.mxu0 0.0
    %1554 = vmatpush2.msra.mxu0 %v1474
    %1555 = vmatprep.subr.mxu0 0.0
    %1556 = vmatpush2.msra.mxu0 %v1473
    %1557 = vmatprep.subr.mxu0 0.0
    %1558 = vmatpush2.msra.mxu0 %v1472
    %1559 = vmatprep.subr.mxu0 0.0
    %1560 = vmatpush2.msra.mxu0 %v1471
    %1561 = vmatprep.subr.mxu0 0.0
    %1562 = vmatpush2.msra.mxu0 %v1470
    %1563 = vmatprep.subr.mxu0 0.0
    %1564 = vmatpush2.msra.mxu0 %v1469
    %1565 = vmatprep.mubr.f32.mxu0 %v975
    %1566 = vmatmul.mubr.f32.gmra.mxu0 %v947
    %v1567 = vpop.f32.mrf.mxu0
    %v1568 = vadd.f32 0.0, %v1567
    %v1569 = vpop.f32.mrf.mxu0
    %1570 = vmatprep.mubr.f32.mxu0 %v978
    %1571 = vmatmul.mubr.f32.gmra.mxu0 %v949
    %v1572 = vpop.f32.mrf.mxu0
    %v1573 = vadd.f32 0.0, %v1572
    %v1574 = vpop.f32.mrf.mxu0
    %1575 = vmatprep.mubr.f32.mxu0 %v981
    %1576 = vmatmul.mubr.f32.gmra.mxu0 %v951
    %v1577 = vpop.f32.mrf.mxu0
    %v1578 = vadd.f32 0.0, %v1577
    %v1579 = vpop.f32.mrf.mxu0
    %1580 = vmatprep.mubr.f32.mxu0 %v984
    %1581 = vmatmul.mubr.f32.gmra.mxu0 %v953
    %v1582 = vpop.f32.mrf.mxu0
    %v1583 = vadd.f32 0.0, %v1582
    %v1584 = vpop.f32.mrf.mxu0
    %1585 = vdwg.mxu0
    %1586 = vmatprep.subr.mxu0 0.0
    %1587 = vmatpush1.msra.mxu0 %v1500
    %1588 = vmatprep.subr.mxu0 0.0
    %1589 = vmatpush1.msra.mxu0 %v1499
    %1590 = vmatprep.subr.mxu0 0.0
    %1591 = vmatpush1.msra.mxu0 %v1498
    %1592 = vmatprep.subr.mxu0 0.0
    %1593 = vmatpush1.msra.mxu0 %v1497
    %1594 = vmatprep.subr.mxu0 0.0
    %1595 = vmatpush1.msra.mxu0 %v1496
    %1596 = vmatprep.subr.mxu0 0.0
    %1597 = vmatpush1.msra.mxu0 %v1495
    %1598 = vmatprep.subr.mxu0 0.0
    %1599 = vmatpush1.msra.mxu0 %v1494
    %1600 = vmatprep.subr.mxu0 0.0
    %1601 = vmatpush1.msra.mxu0 %v1493
    %1602 = vmatprep.subr.mxu0 0.0
    %1603 = vmatpush1.msra.mxu0 %v1492
    %1604 = vmatprep.subr.mxu0 0.0
    %1605 = vmatpush1.msra.mxu0 %v1491
    %1606 = vmatprep.subr.mxu0 0.0
    %1607 = vmatpush1.msra.mxu0 %v1490
    %1608 = vmatprep.subr.mxu0 0.0
    %1609 = vmatpush1.msra.mxu0 %v1489
    %1610 = vmatprep.subr.mxu0 0.0
    %1611 = vmatpush1.msra.mxu0 %v1488
    %1612 = vmatprep.subr.mxu0 0.0
    %1613 = vmatpush1.msra.mxu0 %v1487
    %1614 = vmatprep.subr.mxu0 0.0
    %1615 = vmatpush1.msra.mxu0 %v1486
    %1616 = vmatprep.subr.mxu0 0.0
    %1617 = vmatpush1.msra.mxu0 %v1485
    %1618 = vmatprep.subr.mxu0 0.0
    %1619 = vmatpush2.msra.mxu0 0.0
    %1620 = vmatprep.subr.mxu0 0.0
    %1621 = vmatpush2.msra.mxu0 0.0
    %1622 = vmatprep.subr.mxu0 0.0
    %1623 = vmatpush2.msra.mxu0 0.0
    %1624 = vmatprep.subr.mxu0 0.0
    %1625 = vmatpush2.msra.mxu0 0.0
    %1626 = vmatprep.subr.mxu0 0.0
    %1627 = vmatpush2.msra.mxu0 0.0
    %1628 = vmatprep.subr.mxu0 0.0
    %1629 = vmatpush2.msra.mxu0 0.0
    %1630 = vmatprep.subr.mxu0 0.0
    %1631 = vmatpush2.msra.mxu0 0.0
    %1632 = vmatprep.subr.mxu0 0.0
    %1633 = vmatpush2.msra.mxu0 0.0
    %1634 = vmatprep.subr.mxu0 0.0
    %1635 = vmatpush2.msra.mxu0 0.0
    %1636 = vmatprep.subr.mxu0 0.0
    %1637 = vmatpush2.msra.mxu0 0.0
    %1638 = vmatprep.subr.mxu0 0.0
    %1639 = vmatpush2.msra.mxu0 0.0
    %1640 = vmatprep.subr.mxu0 0.0
    %1641 = vmatpush2.msra.mxu0 0.0
    %1642 = vmatprep.subr.mxu0 0.0
    %1643 = vmatpush2.msra.mxu0 0.0
    %1644 = vmatprep.subr.mxu0 0.0
    %1645 = vmatpush2.msra.mxu0 0.0
    %1646 = vmatprep.subr.mxu0 0.0
    %1647 = vmatpush2.msra.mxu0 0.0
    %1648 = vmatprep.subr.mxu0 0.0
    %1649 = vmatpush2.msra.mxu0 0.0
    %1650 = vmatprep.mubr.f32.mxu0 0.0
    %1651 = vmatmul.mubr.f32.gmra.mxu0 %v999
    %v1652 = vpop.f32.mrf.mxu0
    %v1653 = vadd.f32 %v1568, %v1652
    %v1654 = vpop.f32.mrf.mxu0
    %1655 = vmatprep.mubr.f32.mxu0 0.0
    %1656 = vmatmul.mubr.f32.gmra.mxu0 %v1002
    %v1657 = vpop.f32.mrf.mxu0
    %v1658 = vadd.f32 %v1573, %v1657
    %v1659 = vpop.f32.mrf.mxu0
    %1660 = vmatprep.mubr.f32.mxu0 0.0
    %1661 = vmatmul.mubr.f32.gmra.mxu0 %v1005
    %v1662 = vpop.f32.mrf.mxu0
    %v1663 = vadd.f32 %v1578, %v1662
    %v1664 = vpop.f32.mrf.mxu0
    %1665 = vmatprep.mubr.f32.mxu0 0.0
    %1666 = vmatmul.mubr.f32.gmra.mxu0 %v1008
    %v1667 = vpop.f32.mrf.mxu0
    %v1668 = vadd.f32 %v1583, %v1667
    %v1669 = vpop.f32.mrf.mxu0
    %1670 = vdwg.mxu0
    %v1671 = vadd.f32 %v1434, %v1653
    %v1672 = vadd.f32 %v1439, %v1658
    %v1673 = vadd.f32 %v1444, %v1663
    %v1674 = vadd.f32 %v1449, %v1668
    %v1675 = vld [vmem:[%s12] sm:$0x1]
    %v1677 = vlaneseq
    %v1678 = vshrl.u32 %v1677, 7
    %v1679 = vsub.s32 0, %v1678
    %v1680 = vrot.slane %v1675, %v1679
    %v1682 = vadd.f32 %v1671, %v1680
    %v1683 = vadd.f32 %v1672, %v1680
    %v1684 = vadd.f32 %v1673, %v1680
    %v1685 = vadd.f32 %v1674, %v1680
    %v1686 = vadd.f32 %v1682, %v169
    %v1687 = vadd.f32 %v1683, %v170
    %v1688 = vadd.f32 %v1684, %v171
    %v1689 = vadd.f32 %v1685, %v172
    %v1691 = vlaneseq
    %v1692 = vshrl.u32 %v1691, 7
    %v1693 = vsub.s32 0, %v1692
    %v1694 = vrot.slane %v173, %v1693
    %v1696 = vmul.f32 %v1686, %v1694
    %v1697 = vmul.f32 %v1687, %v1694
    %v1698 = vmul.f32 %v1688, %v1694
    %v1699 = vmul.f32 %v1689, %v1694
    %1700 = vst [vmem:[%s174 + $0x1] sm:$0xff] %v1696
    %1701 = vst [vmem:[%s174 + $0x11] sm:$0xff] %v1697
    %1702 = vst [vmem:[%s174 + $0x21] sm:$0xff] %v1698
    %1703 = vst [vmem:[%s174 + $0x31] sm:$0xff] %v1699
    %v1704 = vld [vmem:[#allocation2] sm:$0xff]
    %v1705 = vld [vmem:[#allocation2 + $0x8] sm:$0x3]
    %v1706 = vld [vmem:[#allocation2 + $0x10] sm:$0xff]
    %v1707 = vld [vmem:[#allocation2 + $0x18] sm:$0x3]
    %v1708 = vld [vmem:[#allocation2 + $0x20] sm:$0xff]
    %v1709 = vld [vmem:[#allocation2 + $0x28] sm:$0x3]
    %v1710 = vld [vmem:[#allocation2 + $0x30] sm:$0xff]
    %v1711 = vld [vmem:[#allocation2 + $0x38] sm:$0x3]
    %v1712 = vld [vmem:[#allocation2 + $0x40] sm:$0xff]
    %v1713 = vld [vmem:[#allocation2 + $0x48] sm:$0x3]
    %v1714 = vld [vmem:[#allocation2 + $0x50] sm:$0xff]
    %v1715 = vld [vmem:[#allocation2 + $0x58] sm:$0x3]
    %v1728 = vrot.slane %v1704, 1
    %v1729 = vrot.slane %v1705, 1
    %v1730 = vsel %vm203, %v1728, %v1729
    %v1731 = vrot.slane %v1706, 1
    %v1732 = vrot.slane %v1707, 1
    %v1733 = vsel %vm203, %v1731, %v1732
    %v1734 = vrot.slane %v1708, 1
    %v1735 = vrot.slane %v1709, 1
    %v1736 = vsel %vm203, %v1734, %v1735
    %v1737 = vrot.slane %v1710, 1
    %v1738 = vrot.slane %v1711, 1
    %v1739 = vsel %vm203, %v1737, %v1738
    %v1740 = vrot.slane %v1712, 1
    %v1741 = vrot.slane %v1713, 1
    %v1742 = vsel %vm203, %v1740, %v1741
    %v1743 = vrot.slane %v1714, 1
    %v1744 = vrot.slane %v1715, 1
    %v1745 = vsel %vm203, %v1743, %v1744
    %v1752 = vrot.slane %v1704, 2
    %v1753 = vrot.slane %v1705, 2
    %v1754 = vsel %vm228, %v1752, %v1753
    %v1755 = vrot.slane %v1706, 2
    %v1756 = vrot.slane %v1707, 2
    %v1757 = vsel %vm228, %v1755, %v1756
    %v1758 = vrot.slane %v1708, 2
    %v1759 = vrot.slane %v1709, 2
    %v1760 = vsel %vm228, %v1758, %v1759
    %v1761 = vrot.slane %v1710, 2
    %v1762 = vrot.slane %v1711, 2
    %v1763 = vsel %vm228, %v1761, %v1762
    %v1764 = vrot.slane %v1712, 2
    %v1765 = vrot.slane %v1713, 2
    %v1766 = vsel %vm228, %v1764, %v1765
    %v1767 = vrot.slane %v1714, 2
    %v1768 = vrot.slane %v1715, 2
    %v1769 = vsel %vm228, %v1767, %v1768
    %v1776 = vld [vmem:[#allocation9] sm:$0xff]
    %v1777 = vld [vmem:[#allocation9 + $0x8] sm:$0xff]
    %v1778 = vld [vmem:[#allocation9 + $0x10] sm:$0xff]
    %v1779 = vld [vmem:[#allocation9 + $0x18] sm:$0xff]
    %v1780 = vld [vmem:[#allocation9 + $0x20] sm:$0xff]
    %v1781 = vld [vmem:[#allocation9 + $0x28] sm:$0xff]
    %v1782 = vld [vmem:[#allocation9 + $0x30] sm:$0xff]
    %v1783 = vld [vmem:[#allocation9 + $0x38] sm:$0xff]
    %v1784 = vld [vmem:[#allocation9 + $0x40] sm:$0xff]
    %v1785 = vld [vmem:[#allocation9 + $0x48] sm:$0xff]
    %v1786 = vld [vmem:[#allocation9 + $0x50] sm:$0xff]
    %v1787 = vld [vmem:[#allocation9 + $0x58] sm:$0xff]
    %v1788 = vld [vmem:[#allocation9 + $0x60] sm:$0xff]
    %v1789 = vld [vmem:[#allocation9 + $0x68] sm:$0xff]
    %v1790 = vld [vmem:[#allocation9 + $0x70] sm:$0xff]
    %v1791 = vld [vmem:[#allocation9 + $0x78] sm:$0xff]
    %v1792 = vld [vmem:[#allocation9 + $0x80] sm:$0xff]
    %v1793 = vld [vmem:[#allocation9 + $0x88] sm:$0xff]
    %v1794 = vld [vmem:[#allocation9 + $0x90] sm:$0xff]
    %v1795 = vld [vmem:[#allocation9 + $0x98] sm:$0xff]
    %v1796 = vld [vmem:[#allocation9 + $0xa0] sm:$0xff]
    %v1797 = vld [vmem:[#allocation9 + $0xa8] sm:$0xff]
    %v1798 = vld [vmem:[#allocation9 + $0xb0] sm:$0xff]
    %v1799 = vld [vmem:[#allocation9 + $0xb8] sm:$0xff]
    %v1800 = vld [vmem:[#allocation9 + $0xc0] sm:$0xff]
    %v1801 = vld [vmem:[#allocation9 + $0xc8] sm:$0xff]
    %v1802 = vld [vmem:[#allocation9 + $0xd0] sm:$0xff]
    %v1803 = vld [vmem:[#allocation9 + $0xd8] sm:$0xff]
    %v1804 = vld [vmem:[#allocation9 + $0xe0] sm:$0xff]
    %v1805 = vld [vmem:[#allocation9 + $0xe8] sm:$0xff]
    %v1806 = vld [vmem:[#allocation9 + $0xf0] sm:$0xff]
    %v1807 = vld [vmem:[#allocation9 + $0xf8] sm:$0xff]
    %v1808 = vld [vmem:[#allocation9 + $0x100] sm:$0xff]
    %v1809 = vld [vmem:[#allocation9 + $0x108] sm:$0xff]
    %v1810 = vld [vmem:[#allocation9 + $0x110] sm:$0xff]
    %v1811 = vld [vmem:[#allocation9 + $0x118] sm:$0xff]
    %v1812 = vld [vmem:[#allocation9 + $0x120] sm:$0xff]
    %v1813 = vld [vmem:[#allocation9 + $0x128] sm:$0xff]
    %v1814 = vld [vmem:[#allocation9 + $0x130] sm:$0xff]
    %v1815 = vld [vmem:[#allocation9 + $0x138] sm:$0xff]
    %v1816 = vld [vmem:[#allocation9 + $0x140] sm:$0xff]
    %v1817 = vld [vmem:[#allocation9 + $0x148] sm:$0xff]
    %v1818 = vld [vmem:[#allocation9 + $0x150] sm:$0xff]
    %v1819 = vld [vmem:[#allocation9 + $0x158] sm:$0xff]
    %v1820 = vld [vmem:[#allocation9 + $0x160] sm:$0xff]
    %v1821 = vld [vmem:[#allocation9 + $0x168] sm:$0xff]
    %v1822 = vld [vmem:[#allocation9 + $0x170] sm:$0xff]
    %v1823 = vld [vmem:[#allocation9 + $0x178] sm:$0xff]
    %s1824 = scalar_lea.vmem [#allocation9], 384
    %v1825 = vld [vmem:[%s1824] sm:$0xff]
    %v1826 = vld [vmem:[%s1824 + $0x8] sm:$0xff]
    %v1827 = vld [vmem:[%s1824 + $0x10] sm:$0xff]
    %v1828 = vld [vmem:[%s1824 + $0x18] sm:$0xff]
    %v1829 = vld [vmem:[%s1824 + $0x20] sm:$0xff]
    %v1830 = vld [vmem:[%s1824 + $0x28] sm:$0xff]
    %v1831 = vld [vmem:[%s1824 + $0x30] sm:$0xff]
    %v1832 = vld [vmem:[%s1824 + $0x38] sm:$0xff]
    %v1833 = vld [vmem:[%s1824 + $0x40] sm:$0xff]
    %v1834 = vld [vmem:[%s1824 + $0x48] sm:$0xff]
    %v1835 = vld [vmem:[%s1824 + $0x50] sm:$0xff]
    %v1836 = vld [vmem:[%s1824 + $0x58] sm:$0xff]
    %v1837 = vld [vmem:[%s1824 + $0x60] sm:$0xff]
    %v1838 = vld [vmem:[%s1824 + $0x68] sm:$0xff]
    %v1839 = vld [vmem:[%s1824 + $0x70] sm:$0xff]
    %v1840 = vld [vmem:[%s1824 + $0x78] sm:$0xff]
    %v1841 = vld [vmem:[%s1824 + $0x80] sm:$0xff]
    %v1842 = vld [vmem:[%s1824 + $0x88] sm:$0xff]
    %v1843 = vld [vmem:[%s1824 + $0x90] sm:$0xff]
    %v1844 = vld [vmem:[%s1824 + $0x98] sm:$0xff]
    %v1845 = vld [vmem:[%s1824 + $0xa0] sm:$0xff]
    %v1846 = vld [vmem:[%s1824 + $0xa8] sm:$0xff]
    %v1847 = vld [vmem:[%s1824 + $0xb0] sm:$0xff]
    %v1848 = vld [vmem:[%s1824 + $0xb8] sm:$0xff]
    %v1849 = vld [vmem:[%s1824 + $0xc0] sm:$0xff]
    %v1850 = vld [vmem:[%s1824 + $0xc8] sm:$0xff]
    %v1851 = vld [vmem:[%s1824 + $0xd0] sm:$0xff]
    %v1852 = vld [vmem:[%s1824 + $0xd8] sm:$0xff]
    %v1853 = vld [vmem:[%s1824 + $0xe0] sm:$0xff]
    %v1854 = vld [vmem:[%s1824 + $0xe8] sm:$0xff]
    %v1855 = vld [vmem:[%s1824 + $0xf0] sm:$0xff]
    %v1856 = vld [vmem:[%s1824 + $0xf8] sm:$0xff]
    %v1857 = vld [vmem:[%s1824 + $0x100] sm:$0xff]
    %v1858 = vld [vmem:[%s1824 + $0x108] sm:$0xff]
    %v1859 = vld [vmem:[%s1824 + $0x110] sm:$0xff]
    %v1860 = vld [vmem:[%s1824 + $0x118] sm:$0xff]
    %v1861 = vld [vmem:[%s1824 + $0x120] sm:$0xff]
    %v1862 = vld [vmem:[%s1824 + $0x128] sm:$0xff]
    %v1863 = vld [vmem:[%s1824 + $0x130] sm:$0xff]
    %v1864 = vld [vmem:[%s1824 + $0x138] sm:$0xff]
    %v1865 = vld [vmem:[%s1824 + $0x140] sm:$0xff]
    %v1866 = vld [vmem:[%s1824 + $0x148] sm:$0xff]
    %v1867 = vld [vmem:[%s1824 + $0x150] sm:$0xff]
    %v1868 = vld [vmem:[%s1824 + $0x158] sm:$0xff]
    %v1869 = vld [vmem:[%s1824 + $0x160] sm:$0xff]
    %v1870 = vld [vmem:[%s1824 + $0x168] sm:$0xff]
    %v1871 = vld [vmem:[%s1824 + $0x170] sm:$0xff]
    %v1872 = vld [vmem:[%s1824 + $0x178] sm:$0xff]
    %1873 = vmatprep.subr.mxu0 0.0
    %1874 = vmatpush1.msra.mxu0 %v1840
    %1875 = vmatprep.subr.mxu0 0.0
    %1876 = vmatpush1.msra.mxu0 %v1839
    %1877 = vmatprep.subr.mxu0 0.0
    %1878 = vmatpush1.msra.mxu0 %v1838
    %1879 = vmatprep.subr.mxu0 0.0
    %1880 = vmatpush1.msra.mxu0 %v1837
    %1881 = vmatprep.subr.mxu0 0.0
    %1882 = vmatpush1.msra.mxu0 %v1836
    %1883 = vmatprep.subr.mxu0 0.0
    %1884 = vmatpush1.msra.mxu0 %v1835
    %1885 = vmatprep.subr.mxu0 0.0
    %1886 = vmatpush1.msra.mxu0 %v1834
    %1887 = vmatprep.subr.mxu0 0.0
    %1888 = vmatpush1.msra.mxu0 %v1833
    %1889 = vmatprep.subr.mxu0 0.0
    %1890 = vmatpush1.msra.mxu0 %v1832
    %1891 = vmatprep.subr.mxu0 0.0
    %1892 = vmatpush1.msra.mxu0 %v1831
    %1893 = vmatprep.subr.mxu0 0.0
    %1894 = vmatpush1.msra.mxu0 %v1830
    %1895 = vmatprep.subr.mxu0 0.0
    %1896 = vmatpush1.msra.mxu0 %v1829
    %1897 = vmatprep.subr.mxu0 0.0
    %1898 = vmatpush1.msra.mxu0 %v1828
    %1899 = vmatprep.subr.mxu0 0.0
    %1900 = vmatpush1.msra.mxu0 %v1827
    %1901 = vmatprep.subr.mxu0 0.0
    %1902 = vmatpush1.msra.mxu0 %v1826
    %1903 = vmatprep.subr.mxu0 0.0
    %1904 = vmatpush1.msra.mxu0 %v1825
    %1905 = vmatprep.subr.mxu0 0.0
    %1906 = vmatpush2.msra.mxu0 %v1856
    %1907 = vmatprep.subr.mxu0 0.0
    %1908 = vmatpush2.msra.mxu0 %v1855
    %1909 = vmatprep.subr.mxu0 0.0
    %1910 = vmatpush2.msra.mxu0 %v1854
    %1911 = vmatprep.subr.mxu0 0.0
    %1912 = vmatpush2.msra.mxu0 %v1853
    %1913 = vmatprep.subr.mxu0 0.0
    %1914 = vmatpush2.msra.mxu0 %v1852
    %1915 = vmatprep.subr.mxu0 0.0
    %1916 = vmatpush2.msra.mxu0 %v1851
    %1917 = vmatprep.subr.mxu0 0.0
    %1918 = vmatpush2.msra.mxu0 %v1850
    %1919 = vmatprep.subr.mxu0 0.0
    %1920 = vmatpush2.msra.mxu0 %v1849
    %1921 = vmatprep.subr.mxu0 0.0
    %1922 = vmatpush2.msra.mxu0 %v1848
    %1923 = vmatprep.subr.mxu0 0.0
    %1924 = vmatpush2.msra.mxu0 %v1847
    %1925 = vmatprep.subr.mxu0 0.0
    %1926 = vmatpush2.msra.mxu0 %v1846
    %1927 = vmatprep.subr.mxu0 0.0
    %1928 = vmatpush2.msra.mxu0 %v1845
    %1929 = vmatprep.subr.mxu0 0.0
    %1930 = vmatpush2.msra.mxu0 %v1844
    %1931 = vmatprep.subr.mxu0 0.0
    %1932 = vmatpush2.msra.mxu0 %v1843
    %1933 = vmatprep.subr.mxu0 0.0
    %1934 = vmatpush2.msra.mxu0 %v1842
    %1935 = vmatprep.subr.mxu0 0.0
    %1936 = vmatpush2.msra.mxu0 %v1841
    %1937 = vmatprep.mubr.f32.mxu0 %v1733
    %1938 = vmatmul.mubr.f32.gmra.mxu0 %v1706
    %v1939 = vpop.f32.mrf.mxu0
    %v1940 = vadd.f32 0.0, %v1939
    %v1941 = vpop.f32.mrf.mxu0
    %1942 = vmatprep.mubr.f32.mxu0 %v1736
    %1943 = vmatmul.mubr.f32.gmra.mxu0 %v1708
    %v1944 = vpop.f32.mrf.mxu0
    %v1945 = vadd.f32 0.0, %v1944
    %v1946 = vpop.f32.mrf.mxu0
    %1947 = vmatprep.mubr.f32.mxu0 %v1739
    %1948 = vmatmul.mubr.f32.gmra.mxu0 %v1710
    %v1949 = vpop.f32.mrf.mxu0
    %v1950 = vadd.f32 0.0, %v1949
    %v1951 = vpop.f32.mrf.mxu0
    %1952 = vmatprep.mubr.f32.mxu0 %v1742
    %1953 = vmatmul.mubr.f32.gmra.mxu0 %v1712
    %v1954 = vpop.f32.mrf.mxu0
    %v1955 = vadd.f32 0.0, %v1954
    %v1956 = vpop.f32.mrf.mxu0
    %1957 = vdwg.mxu0
    %1958 = vmatprep.subr.mxu0 0.0
    %1959 = vmatpush1.msra.mxu0 %v1872
    %1960 = vmatprep.subr.mxu0 0.0
    %1961 = vmatpush1.msra.mxu0 %v1871
    %1962 = vmatprep.subr.mxu0 0.0
    %1963 = vmatpush1.msra.mxu0 %v1870
    %1964 = vmatprep.subr.mxu0 0.0
    %1965 = vmatpush1.msra.mxu0 %v1869
    %1966 = vmatprep.subr.mxu0 0.0
    %1967 = vmatpush1.msra.mxu0 %v1868
    %1968 = vmatprep.subr.mxu0 0.0
    %1969 = vmatpush1.msra.mxu0 %v1867
    %1970 = vmatprep.subr.mxu0 0.0
    %1971 = vmatpush1.msra.mxu0 %v1866
    %1972 = vmatprep.subr.mxu0 0.0
    %1973 = vmatpush1.msra.mxu0 %v1865
    %1974 = vmatprep.subr.mxu0 0.0
    %1975 = vmatpush1.msra.mxu0 %v1864
    %1976 = vmatprep.subr.mxu0 0.0
    %1977 = vmatpush1.msra.mxu0 %v1863
    %1978 = vmatprep.subr.mxu0 0.0
    %1979 = vmatpush1.msra.mxu0 %v1862
    %1980 = vmatprep.subr.mxu0 0.0
    %1981 = vmatpush1.msra.mxu0 %v1861
    %1982 = vmatprep.subr.mxu0 0.0
    %1983 = vmatpush1.msra.mxu0 %v1860
    %1984 = vmatprep.subr.mxu0 0.0
    %1985 = vmatpush1.msra.mxu0 %v1859
    %1986 = vmatprep.subr.mxu0 0.0
    %1987 = vmatpush1.msra.mxu0 %v1858
    %1988 = vmatprep.subr.mxu0 0.0
    %1989 = vmatpush1.msra.mxu0 %v1857
    %1990 = vmatprep.subr.mxu0 0.0
    %1991 = vmatpush2.msra.mxu0 0.0
    %1992 = vmatprep.subr.mxu0 0.0
    %1993 = vmatpush2.msra.mxu0 0.0
    %1994 = vmatprep.subr.mxu0 0.0
    %1995 = vmatpush2.msra.mxu0 0.0
    %1996 = vmatprep.subr.mxu0 0.0
    %1997 = vmatpush2.msra.mxu0 0.0
    %1998 = vmatprep.subr.mxu0 0.0
    %1999 = vmatpush2.msra.mxu0 0.0
    %2000 = vmatprep.subr.mxu0 0.0
    %2001 = vmatpush2.msra.mxu0 0.0
    %2002 = vmatprep.subr.mxu0 0.0
    %2003 = vmatpush2.msra.mxu0 0.0
    %2004 = vmatprep.subr.mxu0 0.0
    %2005 = vmatpush2.msra.mxu0 0.0
    %2006 = vmatprep.subr.mxu0 0.0
    %2007 = vmatpush2.msra.mxu0 0.0
    %2008 = vmatprep.subr.mxu0 0.0
    %2009 = vmatpush2.msra.mxu0 0.0
    %2010 = vmatprep.subr.mxu0 0.0
    %2011 = vmatpush2.msra.mxu0 0.0
    %2012 = vmatprep.subr.mxu0 0.0
    %2013 = vmatpush2.msra.mxu0 0.0
    %2014 = vmatprep.subr.mxu0 0.0
    %2015 = vmatpush2.msra.mxu0 0.0
    %2016 = vmatprep.subr.mxu0 0.0
    %2017 = vmatpush2.msra.mxu0 0.0
    %2018 = vmatprep.subr.mxu0 0.0
    %2019 = vmatpush2.msra.mxu0 0.0
    %2020 = vmatprep.subr.mxu0 0.0
    %2021 = vmatpush2.msra.mxu0 0.0
    %2022 = vmatprep.mubr.f32.mxu0 0.0
    %2023 = vmatmul.mubr.f32.gmra.mxu0 %v1757
    %v2024 = vpop.f32.mrf.mxu0
    %v2025 = vadd.f32 %v1940, %v2024
    %v2026 = vpop.f32.mrf.mxu0
    %2027 = vmatprep.mubr.f32.mxu0 0.0
    %2028 = vmatmul.mubr.f32.gmra.mxu0 %v1760
    %v2029 = vpop.f32.mrf.mxu0
    %v2030 = vadd.f32 %v1945, %v2029
    %v2031 = vpop.f32.mrf.mxu0
    %2032 = vmatprep.mubr.f32.mxu0 0.0
    %2033 = vmatmul.mubr.f32.gmra.mxu0 %v1763
    %v2034 = vpop.f32.mrf.mxu0
    %v2035 = vadd.f32 %v1950, %v2034
    %v2036 = vpop.f32.mrf.mxu0
    %2037 = vmatprep.mubr.f32.mxu0 0.0
    %2038 = vmatmul.mubr.f32.gmra.mxu0 %v1766
    %v2039 = vpop.f32.mrf.mxu0
    %v2040 = vadd.f32 %v1955, %v2039
    %v2041 = vpop.f32.mrf.mxu0
    %2042 = vdwg.mxu0
    %2043 = vmatprep.subr.mxu0 0.0
    %2044 = vmatpush1.msra.mxu0 %v1791
    %2045 = vmatprep.subr.mxu0 0.0
    %2046 = vmatpush1.msra.mxu0 %v1790
    %2047 = vmatprep.subr.mxu0 0.0
    %2048 = vmatpush1.msra.mxu0 %v1789
    %2049 = vmatprep.subr.mxu0 0.0
    %2050 = vmatpush1.msra.mxu0 %v1788
    %2051 = vmatprep.subr.mxu0 0.0
    %2052 = vmatpush1.msra.mxu0 %v1787
    %2053 = vmatprep.subr.mxu0 0.0
    %2054 = vmatpush1.msra.mxu0 %v1786
    %2055 = vmatprep.subr.mxu0 0.0
    %2056 = vmatpush1.msra.mxu0 %v1785
    %2057 = vmatprep.subr.mxu0 0.0
    %2058 = vmatpush1.msra.mxu0 %v1784
    %2059 = vmatprep.subr.mxu0 0.0
    %2060 = vmatpush1.msra.mxu0 %v1783
    %2061 = vmatprep.subr.mxu0 0.0
    %2062 = vmatpush1.msra.mxu0 %v1782
    %2063 = vmatprep.subr.mxu0 0.0
    %2064 = vmatpush1.msra.mxu0 %v1781
    %2065 = vmatprep.subr.mxu0 0.0
    %2066 = vmatpush1.msra.mxu0 %v1780
    %2067 = vmatprep.subr.mxu0 0.0
    %2068 = vmatpush1.msra.mxu0 %v1779
    %2069 = vmatprep.subr.mxu0 0.0
    %2070 = vmatpush1.msra.mxu0 %v1778
    %2071 = vmatprep.subr.mxu0 0.0
    %2072 = vmatpush1.msra.mxu0 %v1777
    %2073 = vmatprep.subr.mxu0 0.0
    %2074 = vmatpush1.msra.mxu0 %v1776
    %2075 = vmatprep.subr.mxu0 0.0
    %2076 = vmatpush2.msra.mxu0 %v1807
    %2077 = vmatprep.subr.mxu0 0.0
    %2078 = vmatpush2.msra.mxu0 %v1806
    %2079 = vmatprep.subr.mxu0 0.0
    %2080 = vmatpush2.msra.mxu0 %v1805
    %2081 = vmatprep.subr.mxu0 0.0
    %2082 = vmatpush2.msra.mxu0 %v1804
    %2083 = vmatprep.subr.mxu0 0.0
    %2084 = vmatpush2.msra.mxu0 %v1803
    %2085 = vmatprep.subr.mxu0 0.0
    %2086 = vmatpush2.msra.mxu0 %v1802
    %2087 = vmatprep.subr.mxu0 0.0
    %2088 = vmatpush2.msra.mxu0 %v1801
    %2089 = vmatprep.subr.mxu0 0.0
    %2090 = vmatpush2.msra.mxu0 %v1800
    %2091 = vmatprep.subr.mxu0 0.0
    %2092 = vmatpush2.msra.mxu0 %v1799
    %2093 = vmatprep.subr.mxu0 0.0
    %2094 = vmatpush2.msra.mxu0 %v1798
    %2095 = vmatprep.subr.mxu0 0.0
    %2096 = vmatpush2.msra.mxu0 %v1797
    %2097 = vmatprep.subr.mxu0 0.0
    %2098 = vmatpush2.msra.mxu0 %v1796
    %2099 = vmatprep.subr.mxu0 0.0
    %2100 = vmatpush2.msra.mxu0 %v1795
    %2101 = vmatprep.subr.mxu0 0.0
    %2102 = vmatpush2.msra.mxu0 %v1794
    %2103 = vmatprep.subr.mxu0 0.0
    %2104 = vmatpush2.msra.mxu0 %v1793
    %2105 = vmatprep.subr.mxu0 0.0
    %2106 = vmatpush2.msra.mxu0 %v1792
    %2107 = vmatprep.mubr.f32.mxu0 %v1730
    %2108 = vmatmul.mubr.f32.gmra.mxu0 %v1704
    %v2109 = vpop.f32.mrf.mxu0
    %v2110 = vadd.f32 %v2025, %v2109
    %v2111 = vpop.f32.mrf.mxu0
    %2112 = vmatprep.mubr.f32.mxu0 %v1733
    %2113 = vmatmul.mubr.f32.gmra.mxu0 %v1706
    %v2114 = vpop.f32.mrf.mxu0
    %v2115 = vadd.f32 %v2030, %v2114
    %v2116 = vpop.f32.mrf.mxu0
    %2117 = vmatprep.mubr.f32.mxu0 %v1736
    %2118 = vmatmul.mubr.f32.gmra.mxu0 %v1708
    %v2119 = vpop.f32.mrf.mxu0
    %v2120 = vadd.f32 %v2035, %v2119
    %v2121 = vpop.f32.mrf.mxu0
    %2122 = vmatprep.mubr.f32.mxu0 %v1739
    %2123 = vmatmul.mubr.f32.gmra.mxu0 %v1710
    %v2124 = vpop.f32.mrf.mxu0
    %v2125 = vadd.f32 %v2040, %v2124
    %v2126 = vpop.f32.mrf.mxu0
    %2127 = vdwg.mxu0
    %2128 = vmatprep.subr.mxu0 0.0
    %2129 = vmatpush1.msra.mxu0 %v1823
    %2130 = vmatprep.subr.mxu0 0.0
    %2131 = vmatpush1.msra.mxu0 %v1822
    %2132 = vmatprep.subr.mxu0 0.0
    %2133 = vmatpush1.msra.mxu0 %v1821
    %2134 = vmatprep.subr.mxu0 0.0
    %2135 = vmatpush1.msra.mxu0 %v1820
    %2136 = vmatprep.subr.mxu0 0.0
    %2137 = vmatpush1.msra.mxu0 %v1819
    %2138 = vmatprep.subr.mxu0 0.0
    %2139 = vmatpush1.msra.mxu0 %v1818
    %2140 = vmatprep.subr.mxu0 0.0
    %2141 = vmatpush1.msra.mxu0 %v1817
    %2142 = vmatprep.subr.mxu0 0.0
    %2143 = vmatpush1.msra.mxu0 %v1816
    %2144 = vmatprep.subr.mxu0 0.0
    %2145 = vmatpush1.msra.mxu0 %v1815
    %2146 = vmatprep.subr.mxu0 0.0
    %2147 = vmatpush1.msra.mxu0 %v1814
    %2148 = vmatprep.subr.mxu0 0.0
    %2149 = vmatpush1.msra.mxu0 %v1813
    %2150 = vmatprep.subr.mxu0 0.0
    %2151 = vmatpush1.msra.mxu0 %v1812
    %2152 = vmatprep.subr.mxu0 0.0
    %2153 = vmatpush1.msra.mxu0 %v1811
    %2154 = vmatprep.subr.mxu0 0.0
    %2155 = vmatpush1.msra.mxu0 %v1810
    %2156 = vmatprep.subr.mxu0 0.0
    %2157 = vmatpush1.msra.mxu0 %v1809
    %2158 = vmatprep.subr.mxu0 0.0
    %2159 = vmatpush1.msra.mxu0 %v1808
    %2160 = vmatprep.subr.mxu0 0.0
    %2161 = vmatpush2.msra.mxu0 0.0
    %2162 = vmatprep.subr.mxu0 0.0
    %2163 = vmatpush2.msra.mxu0 0.0
    %2164 = vmatprep.subr.mxu0 0.0
    %2165 = vmatpush2.msra.mxu0 0.0
    %2166 = vmatprep.subr.mxu0 0.0
    %2167 = vmatpush2.msra.mxu0 0.0
    %2168 = vmatprep.subr.mxu0 0.0
    %2169 = vmatpush2.msra.mxu0 0.0
    %2170 = vmatprep.subr.mxu0 0.0
    %2171 = vmatpush2.msra.mxu0 0.0
    %2172 = vmatprep.subr.mxu0 0.0
    %2173 = vmatpush2.msra.mxu0 0.0
    %2174 = vmatprep.subr.mxu0 0.0
    %2175 = vmatpush2.msra.mxu0 0.0
    %2176 = vmatprep.subr.mxu0 0.0
    %2177 = vmatpush2.msra.mxu0 0.0
    %2178 = vmatprep.subr.mxu0 0.0
    %2179 = vmatpush2.msra.mxu0 0.0
    %2180 = vmatprep.subr.mxu0 0.0
    %2181 = vmatpush2.msra.mxu0 0.0
    %2182 = vmatprep.subr.mxu0 0.0
    %2183 = vmatpush2.msra.mxu0 0.0
    %2184 = vmatprep.subr.mxu0 0.0
    %2185 = vmatpush2.msra.mxu0 0.0
    %2186 = vmatprep.subr.mxu0 0.0
    %2187 = vmatpush2.msra.mxu0 0.0
    %2188 = vmatprep.subr.mxu0 0.0
    %2189 = vmatpush2.msra.mxu0 0.0
    %2190 = vmatprep.subr.mxu0 0.0
    %2191 = vmatpush2.msra.mxu0 0.0
    %2192 = vmatprep.mubr.f32.mxu0 0.0
    %2193 = vmatmul.mubr.f32.gmra.mxu0 %v1754
    %v2194 = vpop.f32.mrf.mxu0
    %v2195 = vadd.f32 %v2110, %v2194
    %v2196 = vpop.f32.mrf.mxu0
    %2197 = vmatprep.mubr.f32.mxu0 0.0
    %2198 = vmatmul.mubr.f32.gmra.mxu0 %v1757
    %v2199 = vpop.f32.mrf.mxu0
    %v2200 = vadd.f32 %v2115, %v2199
    %v2201 = vpop.f32.mrf.mxu0
    %2202 = vmatprep.mubr.f32.mxu0 0.0
    %2203 = vmatmul.mubr.f32.gmra.mxu0 %v1760
    %v2204 = vpop.f32.mrf.mxu0
    %v2205 = vadd.f32 %v2120, %v2204
    %v2206 = vpop.f32.mrf.mxu0
    %2207 = vmatprep.mubr.f32.mxu0 0.0
    %2208 = vmatmul.mubr.f32.gmra.mxu0 %v1763
    %v2209 = vpop.f32.mrf.mxu0
    %v2210 = vadd.f32 %v2125, %v2209
    %v2211 = vpop.f32.mrf.mxu0
    %2212 = vdwg.mxu0
    %s2213 = scalar_lea.vmem [#allocation9], 768
    %v2214 = vld [vmem:[%s2213] sm:$0xff]
    %v2215 = vld [vmem:[%s2213 + $0x8] sm:$0xff]
    %v2216 = vld [vmem:[%s2213 + $0x10] sm:$0xff]
    %v2217 = vld [vmem:[%s2213 + $0x18] sm:$0xff]
    %v2218 = vld [vmem:[%s2213 + $0x20] sm:$0xff]
    %v2219 = vld [vmem:[%s2213 + $0x28] sm:$0xff]
    %v2220 = vld [vmem:[%s2213 + $0x30] sm:$0xff]
    %v2221 = vld [vmem:[%s2213 + $0x38] sm:$0xff]
    %v2222 = vld [vmem:[%s2213 + $0x40] sm:$0xff]
    %v2223 = vld [vmem:[%s2213 + $0x48] sm:$0xff]
    %v2224 = vld [vmem:[%s2213 + $0x50] sm:$0xff]
    %v2225 = vld [vmem:[%s2213 + $0x58] sm:$0xff]
    %v2226 = vld [vmem:[%s2213 + $0x60] sm:$0xff]
    %v2227 = vld [vmem:[%s2213 + $0x68] sm:$0xff]
    %v2228 = vld [vmem:[%s2213 + $0x70] sm:$0xff]
    %v2229 = vld [vmem:[%s2213 + $0x78] sm:$0xff]
    %v2230 = vld [vmem:[%s2213 + $0x80] sm:$0xff]
    %v2231 = vld [vmem:[%s2213 + $0x88] sm:$0xff]
    %v2232 = vld [vmem:[%s2213 + $0x90] sm:$0xff]
    %v2233 = vld [vmem:[%s2213 + $0x98] sm:$0xff]
    %v2234 = vld [vmem:[%s2213 + $0xa0] sm:$0xff]
    %v2235 = vld [vmem:[%s2213 + $0xa8] sm:$0xff]
    %v2236 = vld [vmem:[%s2213 + $0xb0] sm:$0xff]
    %v2237 = vld [vmem:[%s2213 + $0xb8] sm:$0xff]
    %v2238 = vld [vmem:[%s2213 + $0xc0] sm:$0xff]
    %v2239 = vld [vmem:[%s2213 + $0xc8] sm:$0xff]
    %v2240 = vld [vmem:[%s2213 + $0xd0] sm:$0xff]
    %v2241 = vld [vmem:[%s2213 + $0xd8] sm:$0xff]
    %v2242 = vld [vmem:[%s2213 + $0xe0] sm:$0xff]
    %v2243 = vld [vmem:[%s2213 + $0xe8] sm:$0xff]
    %v2244 = vld [vmem:[%s2213 + $0xf0] sm:$0xff]
    %v2245 = vld [vmem:[%s2213 + $0xf8] sm:$0xff]
    %v2246 = vld [vmem:[%s2213 + $0x100] sm:$0xff]
    %v2247 = vld [vmem:[%s2213 + $0x108] sm:$0xff]
    %v2248 = vld [vmem:[%s2213 + $0x110] sm:$0xff]
    %v2249 = vld [vmem:[%s2213 + $0x118] sm:$0xff]
    %v2250 = vld [vmem:[%s2213 + $0x120] sm:$0xff]
    %v2251 = vld [vmem:[%s2213 + $0x128] sm:$0xff]
    %v2252 = vld [vmem:[%s2213 + $0x130] sm:$0xff]
    %v2253 = vld [vmem:[%s2213 + $0x138] sm:$0xff]
    %v2254 = vld [vmem:[%s2213 + $0x140] sm:$0xff]
    %v2255 = vld [vmem:[%s2213 + $0x148] sm:$0xff]
    %v2256 = vld [vmem:[%s2213 + $0x150] sm:$0xff]
    %v2257 = vld [vmem:[%s2213 + $0x158] sm:$0xff]
    %v2258 = vld [vmem:[%s2213 + $0x160] sm:$0xff]
    %v2259 = vld [vmem:[%s2213 + $0x168] sm:$0xff]
    %v2260 = vld [vmem:[%s2213 + $0x170] sm:$0xff]
    %v2261 = vld [vmem:[%s2213 + $0x178] sm:$0xff]
    %2262 = vmatprep.subr.mxu0 0.0
    %2263 = vmatpush1.msra.mxu0 %v2229
    %2264 = vmatprep.subr.mxu0 0.0
    %2265 = vmatpush1.msra.mxu0 %v2228
    %2266 = vmatprep.subr.mxu0 0.0
    %2267 = vmatpush1.msra.mxu0 %v2227
    %2268 = vmatprep.subr.mxu0 0.0
    %2269 = vmatpush1.msra.mxu0 %v2226
    %2270 = vmatprep.subr.mxu0 0.0
    %2271 = vmatpush1.msra.mxu0 %v2225
    %2272 = vmatprep.subr.mxu0 0.0
    %2273 = vmatpush1.msra.mxu0 %v2224
    %2274 = vmatprep.subr.mxu0 0.0
    %2275 = vmatpush1.msra.mxu0 %v2223
    %2276 = vmatprep.subr.mxu0 0.0
    %2277 = vmatpush1.msra.mxu0 %v2222
    %2278 = vmatprep.subr.mxu0 0.0
    %2279 = vmatpush1.msra.mxu0 %v2221
    %2280 = vmatprep.subr.mxu0 0.0
    %2281 = vmatpush1.msra.mxu0 %v2220
    %2282 = vmatprep.subr.mxu0 0.0
    %2283 = vmatpush1.msra.mxu0 %v2219
    %2284 = vmatprep.subr.mxu0 0.0
    %2285 = vmatpush1.msra.mxu0 %v2218
    %2286 = vmatprep.subr.mxu0 0.0
    %2287 = vmatpush1.msra.mxu0 %v2217
    %2288 = vmatprep.subr.mxu0 0.0
    %2289 = vmatpush1.msra.mxu0 %v2216
    %2290 = vmatprep.subr.mxu0 0.0
    %2291 = vmatpush1.msra.mxu0 %v2215
    %2292 = vmatprep.subr.mxu0 0.0
    %2293 = vmatpush1.msra.mxu0 %v2214
    %2294 = vmatprep.subr.mxu0 0.0
    %2295 = vmatpush2.msra.mxu0 %v2245
    %2296 = vmatprep.subr.mxu0 0.0
    %2297 = vmatpush2.msra.mxu0 %v2244
    %2298 = vmatprep.subr.mxu0 0.0
    %2299 = vmatpush2.msra.mxu0 %v2243
    %2300 = vmatprep.subr.mxu0 0.0
    %2301 = vmatpush2.msra.mxu0 %v2242
    %2302 = vmatprep.subr.mxu0 0.0
    %2303 = vmatpush2.msra.mxu0 %v2241
    %2304 = vmatprep.subr.mxu0 0.0
    %2305 = vmatpush2.msra.mxu0 %v2240
    %2306 = vmatprep.subr.mxu0 0.0
    %2307 = vmatpush2.msra.mxu0 %v2239
    %2308 = vmatprep.subr.mxu0 0.0
    %2309 = vmatpush2.msra.mxu0 %v2238
    %2310 = vmatprep.subr.mxu0 0.0
    %2311 = vmatpush2.msra.mxu0 %v2237
    %2312 = vmatprep.subr.mxu0 0.0
    %2313 = vmatpush2.msra.mxu0 %v2236
    %2314 = vmatprep.subr.mxu0 0.0
    %2315 = vmatpush2.msra.mxu0 %v2235
    %2316 = vmatprep.subr.mxu0 0.0
    %2317 = vmatpush2.msra.mxu0 %v2234
    %2318 = vmatprep.subr.mxu0 0.0
    %2319 = vmatpush2.msra.mxu0 %v2233
    %2320 = vmatprep.subr.mxu0 0.0
    %2321 = vmatpush2.msra.mxu0 %v2232
    %2322 = vmatprep.subr.mxu0 0.0
    %2323 = vmatpush2.msra.mxu0 %v2231
    %2324 = vmatprep.subr.mxu0 0.0
    %2325 = vmatpush2.msra.mxu0 %v2230
    %2326 = vmatprep.mubr.f32.mxu0 %v1736
    %2327 = vmatmul.mubr.f32.gmra.mxu0 %v1708
    %v2328 = vpop.f32.mrf.mxu0
    %v2329 = vadd.f32 0.0, %v2328
    %v2330 = vpop.f32.mrf.mxu0
    %2331 = vmatprep.mubr.f32.mxu0 %v1739
    %2332 = vmatmul.mubr.f32.gmra.mxu0 %v1710
    %v2333 = vpop.f32.mrf.mxu0
    %v2334 = vadd.f32 0.0, %v2333
    %v2335 = vpop.f32.mrf.mxu0
    %2336 = vmatprep.mubr.f32.mxu0 %v1742
    %2337 = vmatmul.mubr.f32.gmra.mxu0 %v1712
    %v2338 = vpop.f32.mrf.mxu0
    %v2339 = vadd.f32 0.0, %v2338
    %v2340 = vpop.f32.mrf.mxu0
    %2341 = vmatprep.mubr.f32.mxu0 %v1745
    %2342 = vmatmul.mubr.f32.gmra.mxu0 %v1714
    %v2343 = vpop.f32.mrf.mxu0
    %v2344 = vadd.f32 0.0, %v2343
    %v2345 = vpop.f32.mrf.mxu0
    %2346 = vdwg.mxu0
    %2347 = vmatprep.subr.mxu0 0.0
    %2348 = vmatpush1.msra.mxu0 %v2261
    %2349 = vmatprep.subr.mxu0 0.0
    %2350 = vmatpush1.msra.mxu0 %v2260
    %2351 = vmatprep.subr.mxu0 0.0
    %2352 = vmatpush1.msra.mxu0 %v2259
    %2353 = vmatprep.subr.mxu0 0.0
    %2354 = vmatpush1.msra.mxu0 %v2258
    %2355 = vmatprep.subr.mxu0 0.0
    %2356 = vmatpush1.msra.mxu0 %v2257
    %2357 = vmatprep.subr.mxu0 0.0
    %2358 = vmatpush1.msra.mxu0 %v2256
    %2359 = vmatprep.subr.mxu0 0.0
    %2360 = vmatpush1.msra.mxu0 %v2255
    %2361 = vmatprep.subr.mxu0 0.0
    %2362 = vmatpush1.msra.mxu0 %v2254
    %2363 = vmatprep.subr.mxu0 0.0
    %2364 = vmatpush1.msra.mxu0 %v2253
    %2365 = vmatprep.subr.mxu0 0.0
    %2366 = vmatpush1.msra.mxu0 %v2252
    %2367 = vmatprep.subr.mxu0 0.0
    %2368 = vmatpush1.msra.mxu0 %v2251
    %2369 = vmatprep.subr.mxu0 0.0
    %2370 = vmatpush1.msra.mxu0 %v2250
    %2371 = vmatprep.subr.mxu0 0.0
    %2372 = vmatpush1.msra.mxu0 %v2249
    %2373 = vmatprep.subr.mxu0 0.0
    %2374 = vmatpush1.msra.mxu0 %v2248
    %2375 = vmatprep.subr.mxu0 0.0
    %2376 = vmatpush1.msra.mxu0 %v2247
    %2377 = vmatprep.subr.mxu0 0.0
    %2378 = vmatpush1.msra.mxu0 %v2246
    %2379 = vmatprep.subr.mxu0 0.0
    %2380 = vmatpush2.msra.mxu0 0.0
    %2381 = vmatprep.subr.mxu0 0.0
    %2382 = vmatpush2.msra.mxu0 0.0
    %2383 = vmatprep.subr.mxu0 0.0
    %2384 = vmatpush2.msra.mxu0 0.0
    %2385 = vmatprep.subr.mxu0 0.0
    %2386 = vmatpush2.msra.mxu0 0.0
    %2387 = vmatprep.subr.mxu0 0.0
    %2388 = vmatpush2.msra.mxu0 0.0
    %2389 = vmatprep.subr.mxu0 0.0
    %2390 = vmatpush2.msra.mxu0 0.0
    %2391 = vmatprep.subr.mxu0 0.0
    %2392 = vmatpush2.msra.mxu0 0.0
    %2393 = vmatprep.subr.mxu0 0.0
    %2394 = vmatpush2.msra.mxu0 0.0
    %2395 = vmatprep.subr.mxu0 0.0
    %2396 = vmatpush2.msra.mxu0 0.0
    %2397 = vmatprep.subr.mxu0 0.0
    %2398 = vmatpush2.msra.mxu0 0.0
    %2399 = vmatprep.subr.mxu0 0.0
    %2400 = vmatpush2.msra.mxu0 0.0
    %2401 = vmatprep.subr.mxu0 0.0
    %2402 = vmatpush2.msra.mxu0 0.0
    %2403 = vmatprep.subr.mxu0 0.0
    %2404 = vmatpush2.msra.mxu0 0.0
    %2405 = vmatprep.subr.mxu0 0.0
    %2406 = vmatpush2.msra.mxu0 0.0
    %2407 = vmatprep.subr.mxu0 0.0
    %2408 = vmatpush2.msra.mxu0 0.0
    %2409 = vmatprep.subr.mxu0 0.0
    %2410 = vmatpush2.msra.mxu0 0.0
    %2411 = vmatprep.mubr.f32.mxu0 0.0
    %2412 = vmatmul.mubr.f32.gmra.mxu0 %v1760
    %v2413 = vpop.f32.mrf.mxu0
    %v2414 = vadd.f32 %v2329, %v2413
    %v2415 = vpop.f32.mrf.mxu0
    %2416 = vmatprep.mubr.f32.mxu0 0.0
    %2417 = vmatmul.mubr.f32.gmra.mxu0 %v1763
    %v2418 = vpop.f32.mrf.mxu0
    %v2419 = vadd.f32 %v2334, %v2418
    %v2420 = vpop.f32.mrf.mxu0
    %2421 = vmatprep.mubr.f32.mxu0 0.0
    %2422 = vmatmul.mubr.f32.gmra.mxu0 %v1766
    %v2423 = vpop.f32.mrf.mxu0
    %v2424 = vadd.f32 %v2339, %v2423
    %v2425 = vpop.f32.mrf.mxu0
    %2426 = vmatprep.mubr.f32.mxu0 0.0
    %2427 = vmatmul.mubr.f32.gmra.mxu0 %v1769
    %v2428 = vpop.f32.mrf.mxu0
    %v2429 = vadd.f32 %v2344, %v2428
    %v2430 = vpop.f32.mrf.mxu0
    %2431 = vdwg.mxu0
    %v2432 = vadd.f32 %v2195, %v2414
    %v2433 = vadd.f32 %v2200, %v2419
    %v2434 = vadd.f32 %v2205, %v2424
    %v2435 = vadd.f32 %v2210, %v2429
    %v2436 = vld [vmem:[%s13] sm:$0x1]
    %v2438 = vlaneseq
    %v2439 = vshrl.u32 %v2438, 7
    %v2440 = vsub.s32 0, %v2439
    %v2441 = vrot.slane %v2436, %v2440
    %v2443 = vadd.f32 %v2432, %v2441
    %v2444 = vadd.f32 %v2433, %v2441
    %v2445 = vadd.f32 %v2434, %v2441
    %v2446 = vadd.f32 %v2435, %v2441
    %v2447 = vmax.f32 %v2443, 0.0
    %v2448 = vmax.f32 %v2444, 0.0
    %v2449 = vmax.f32 %v2445, 0.0
    %v2450 = vmax.f32 %v2446, 0.0
    %v2451 = vld [vmem:[%s3] sm:$0x1]
    %v2453 = vlaneseq
    %v2454 = vshrl.u32 %v2453, 7
    %v2455 = vsub.s32 0, %v2454
    %v2456 = vrot.slane %v2451, %v2455
    %v2458 = vmul.f32 %v2447, %v2456
    %v2459 = vmul.f32 %v2448, %v2456
    %v2460 = vmul.f32 %v2449, %v2456
    %v2461 = vmul.f32 %v2450, %v2456
    %2462 = vst [vmem:[%s174 + $0x1] sm:$0xff] %v2458
    %2463 = vst [vmem:[%s174 + $0x11] sm:$0xff] %v2459
    %2464 = vst [vmem:[%s174 + $0x21] sm:$0xff] %v2460
    %2465 = vst [vmem:[%s174 + $0x31] sm:$0xff] %v2461
    %v2466 = vld [vmem:[#allocation2] sm:$0xff]
    %v2467 = vld [vmem:[#allocation2 + $0x8] sm:$0x3]
    %v2468 = vld [vmem:[#allocation2 + $0x10] sm:$0xff]
    %v2469 = vld [vmem:[#allocation2 + $0x18] sm:$0x3]
    %v2470 = vld [vmem:[#allocation2 + $0x20] sm:$0xff]
    %v2471 = vld [vmem:[#allocation2 + $0x28] sm:$0x3]
    %v2472 = vld [vmem:[#allocation2 + $0x30] sm:$0xff]
    %v2473 = vld [vmem:[#allocation2 + $0x38] sm:$0x3]
    %v2474 = vld [vmem:[#allocation2 + $0x40] sm:$0xff]
    %v2475 = vld [vmem:[#allocation2 + $0x48] sm:$0x3]
    %v2476 = vld [vmem:[#allocation2 + $0x50] sm:$0xff]
    %v2477 = vld [vmem:[#allocation2 + $0x58] sm:$0x3]
    %v2490 = vrot.slane %v2466, 1
    %v2491 = vrot.slane %v2467, 1
    %v2492 = vsel %vm203, %v2490, %v2491
    %v2493 = vrot.slane %v2468, 1
    %v2494 = vrot.slane %v2469, 1
    %v2495 = vsel %vm203, %v2493, %v2494
    %v2496 = vrot.slane %v2470, 1
    %v2497 = vrot.slane %v2471, 1
    %v2498 = vsel %vm203, %v2496, %v2497
    %v2499 = vrot.slane %v2472, 1
    %v2500 = vrot.slane %v2473, 1
    %v2501 = vsel %vm203, %v2499, %v2500
    %v2502 = vrot.slane %v2474, 1
    %v2503 = vrot.slane %v2475, 1
    %v2504 = vsel %vm203, %v2502, %v2503
    %v2505 = vrot.slane %v2476, 1
    %v2506 = vrot.slane %v2477, 1
    %v2507 = vsel %vm203, %v2505, %v2506
    %v2514 = vrot.slane %v2466, 2
    %v2515 = vrot.slane %v2467, 2
    %v2516 = vsel %vm228, %v2514, %v2515
    %v2517 = vrot.slane %v2468, 2
    %v2518 = vrot.slane %v2469, 2
    %v2519 = vsel %vm228, %v2517, %v2518
    %v2520 = vrot.slane %v2470, 2
    %v2521 = vrot.slane %v2471, 2
    %v2522 = vsel %vm228, %v2520, %v2521
    %v2523 = vrot.slane %v2472, 2
    %v2524 = vrot.slane %v2473, 2
    %v2525 = vsel %vm228, %v2523, %v2524
    %v2526 = vrot.slane %v2474, 2
    %v2527 = vrot.slane %v2475, 2
    %v2528 = vsel %vm228, %v2526, %v2527
    %v2529 = vrot.slane %v2476, 2
    %v2530 = vrot.slane %v2477, 2
    %v2531 = vsel %vm228, %v2529, %v2530
    %v2538 = vld [vmem:[#allocation11] sm:$0xff]
    %v2539 = vld [vmem:[#allocation11 + $0x8] sm:$0xff]
    %v2540 = vld [vmem:[#allocation11 + $0x10] sm:$0xff]
    %v2541 = vld [vmem:[#allocation11 + $0x18] sm:$0xff]
    %v2542 = vld [vmem:[#allocation11 + $0x20] sm:$0xff]
    %v2543 = vld [vmem:[#allocation11 + $0x28] sm:$0xff]
    %v2544 = vld [vmem:[#allocation11 + $0x30] sm:$0xff]
    %v2545 = vld [vmem:[#allocation11 + $0x38] sm:$0xff]
    %v2546 = vld [vmem:[#allocation11 + $0x40] sm:$0xff]
    %v2547 = vld [vmem:[#allocation11 + $0x48] sm:$0xff]
    %v2548 = vld [vmem:[#allocation11 + $0x50] sm:$0xff]
    %v2549 = vld [vmem:[#allocation11 + $0x58] sm:$0xff]
    %v2550 = vld [vmem:[#allocation11 + $0x60] sm:$0xff]
    %v2551 = vld [vmem:[#allocation11 + $0x68] sm:$0xff]
    %v2552 = vld [vmem:[#allocation11 + $0x70] sm:$0xff]
    %v2553 = vld [vmem:[#allocation11 + $0x78] sm:$0xff]
    %v2554 = vld [vmem:[#allocation11 + $0x80] sm:$0xff]
    %v2555 = vld [vmem:[#allocation11 + $0x88] sm:$0xff]
    %v2556 = vld [vmem:[#allocation11 + $0x90] sm:$0xff]
    %v2557 = vld [vmem:[#allocation11 + $0x98] sm:$0xff]
    %v2558 = vld [vmem:[#allocation11 + $0xa0] sm:$0xff]
    %v2559 = vld [vmem:[#allocation11 + $0xa8] sm:$0xff]
    %v2560 = vld [vmem:[#allocation11 + $0xb0] sm:$0xff]
    %v2561 = vld [vmem:[#allocation11 + $0xb8] sm:$0xff]
    %v2562 = vld [vmem:[#allocation11 + $0xc0] sm:$0xff]
    %v2563 = vld [vmem:[#allocation11 + $0xc8] sm:$0xff]
    %v2564 = vld [vmem:[#allocation11 + $0xd0] sm:$0xff]
    %v2565 = vld [vmem:[#allocation11 + $0xd8] sm:$0xff]
    %v2566 = vld [vmem:[#allocation11 + $0xe0] sm:$0xff]
    %v2567 = vld [vmem:[#allocation11 + $0xe8] sm:$0xff]
    %v2568 = vld [vmem:[#allocation11 + $0xf0] sm:$0xff]
    %v2569 = vld [vmem:[#allocation11 + $0xf8] sm:$0xff]
    %v2570 = vld [vmem:[#allocation11 + $0x100] sm:$0xff]
    %v2571 = vld [vmem:[#allocation11 + $0x108] sm:$0xff]
    %v2572 = vld [vmem:[#allocation11 + $0x110] sm:$0xff]
    %v2573 = vld [vmem:[#allocation11 + $0x118] sm:$0xff]
    %v2574 = vld [vmem:[#allocation11 + $0x120] sm:$0xff]
    %v2575 = vld [vmem:[#allocation11 + $0x128] sm:$0xff]
    %v2576 = vld [vmem:[#allocation11 + $0x130] sm:$0xff]
    %v2577 = vld [vmem:[#allocation11 + $0x138] sm:$0xff]
    %v2578 = vld [vmem:[#allocation11 + $0x140] sm:$0xff]
    %v2579 = vld [vmem:[#allocation11 + $0x148] sm:$0xff]
    %v2580 = vld [vmem:[#allocation11 + $0x150] sm:$0xff]
    %v2581 = vld [vmem:[#allocation11 + $0x158] sm:$0xff]
    %v2582 = vld [vmem:[#allocation11 + $0x160] sm:$0xff]
    %v2583 = vld [vmem:[#allocation11 + $0x168] sm:$0xff]
    %v2584 = vld [vmem:[#allocation11 + $0x170] sm:$0xff]
    %v2585 = vld [vmem:[#allocation11 + $0x178] sm:$0xff]
    %s2586 = scalar_lea.vmem [#allocation11], 384
    %v2587 = vld [vmem:[%s2586] sm:$0xff]
    %v2588 = vld [vmem:[%s2586 + $0x8] sm:$0xff]
    %v2589 = vld [vmem:[%s2586 + $0x10] sm:$0xff]
    %v2590 = vld [vmem:[%s2586 + $0x18] sm:$0xff]
    %v2591 = vld [vmem:[%s2586 + $0x20] sm:$0xff]
    %v2592 = vld [vmem:[%s2586 + $0x28] sm:$0xff]
    %v2593 = vld [vmem:[%s2586 + $0x30] sm:$0xff]
    %v2594 = vld [vmem:[%s2586 + $0x38] sm:$0xff]
    %v2595 = vld [vmem:[%s2586 + $0x40] sm:$0xff]
    %v2596 = vld [vmem:[%s2586 + $0x48] sm:$0xff]
    %v2597 = vld [vmem:[%s2586 + $0x50] sm:$0xff]
    %v2598 = vld [vmem:[%s2586 + $0x58] sm:$0xff]
    %v2599 = vld [vmem:[%s2586 + $0x60] sm:$0xff]
    %v2600 = vld [vmem:[%s2586 + $0x68] sm:$0xff]
    %v2601 = vld [vmem:[%s2586 + $0x70] sm:$0xff]
    %v2602 = vld [vmem:[%s2586 + $0x78] sm:$0xff]
    %v2603 = vld [vmem:[%s2586 + $0x80] sm:$0xff]
    %v2604 = vld [vmem:[%s2586 + $0x88] sm:$0xff]
    %v2605 = vld [vmem:[%s2586 + $0x90] sm:$0xff]
    %v2606 = vld [vmem:[%s2586 + $0x98] sm:$0xff]
    %v2607 = vld [vmem:[%s2586 + $0xa0] sm:$0xff]
    %v2608 = vld [vmem:[%s2586 + $0xa8] sm:$0xff]
    %v2609 = vld [vmem:[%s2586 + $0xb0] sm:$0xff]
    %v2610 = vld [vmem:[%s2586 + $0xb8] sm:$0xff]
    %v2611 = vld [vmem:[%s2586 + $0xc0] sm:$0xff]
    %v2612 = vld [vmem:[%s2586 + $0xc8] sm:$0xff]
    %v2613 = vld [vmem:[%s2586 + $0xd0] sm:$0xff]
    %v2614 = vld [vmem:[%s2586 + $0xd8] sm:$0xff]
    %v2615 = vld [vmem:[%s2586 + $0xe0] sm:$0xff]
    %v2616 = vld [vmem:[%s2586 + $0xe8] sm:$0xff]
    %v2617 = vld [vmem:[%s2586 + $0xf0] sm:$0xff]
    %v2618 = vld [vmem:[%s2586 + $0xf8] sm:$0xff]
    %v2619 = vld [vmem:[%s2586 + $0x100] sm:$0xff]
    %v2620 = vld [vmem:[%s2586 + $0x108] sm:$0xff]
    %v2621 = vld [vmem:[%s2586 + $0x110] sm:$0xff]
    %v2622 = vld [vmem:[%s2586 + $0x118] sm:$0xff]
    %v2623 = vld [vmem:[%s2586 + $0x120] sm:$0xff]
    %v2624 = vld [vmem:[%s2586 + $0x128] sm:$0xff]
    %v2625 = vld [vmem:[%s2586 + $0x130] sm:$0xff]
    %v2626 = vld [vmem:[%s2586 + $0x138] sm:$0xff]
    %v2627 = vld [vmem:[%s2586 + $0x140] sm:$0xff]
    %v2628 = vld [vmem:[%s2586 + $0x148] sm:$0xff]
    %v2629 = vld [vmem:[%s2586 + $0x150] sm:$0xff]
    %v2630 = vld [vmem:[%s2586 + $0x158] sm:$0xff]
    %v2631 = vld [vmem:[%s2586 + $0x160] sm:$0xff]
    %v2632 = vld [vmem:[%s2586 + $0x168] sm:$0xff]
    %v2633 = vld [vmem:[%s2586 + $0x170] sm:$0xff]
    %v2634 = vld [vmem:[%s2586 + $0x178] sm:$0xff]
    %2635 = vmatprep.subr.mxu0 0.0
    %2636 = vmatpush1.msra.mxu0 %v2602
    %2637 = vmatprep.subr.mxu0 0.0
    %2638 = vmatpush1.msra.mxu0 %v2601
    %2639 = vmatprep.subr.mxu0 0.0
    %2640 = vmatpush1.msra.mxu0 %v2600
    %2641 = vmatprep.subr.mxu0 0.0
    %2642 = vmatpush1.msra.mxu0 %v2599
    %2643 = vmatprep.subr.mxu0 0.0
    %2644 = vmatpush1.msra.mxu0 %v2598
    %2645 = vmatprep.subr.mxu0 0.0
    %2646 = vmatpush1.msra.mxu0 %v2597
    %2647 = vmatprep.subr.mxu0 0.0
    %2648 = vmatpush1.msra.mxu0 %v2596
    %2649 = vmatprep.subr.mxu0 0.0
    %2650 = vmatpush1.msra.mxu0 %v2595
    %2651 = vmatprep.subr.mxu0 0.0
    %2652 = vmatpush1.msra.mxu0 %v2594
    %2653 = vmatprep.subr.mxu0 0.0
    %2654 = vmatpush1.msra.mxu0 %v2593
    %2655 = vmatprep.subr.mxu0 0.0
    %2656 = vmatpush1.msra.mxu0 %v2592
    %2657 = vmatprep.subr.mxu0 0.0
    %2658 = vmatpush1.msra.mxu0 %v2591
    %2659 = vmatprep.subr.mxu0 0.0
    %2660 = vmatpush1.msra.mxu0 %v2590
    %2661 = vmatprep.subr.mxu0 0.0
    %2662 = vmatpush1.msra.mxu0 %v2589
    %2663 = vmatprep.subr.mxu0 0.0
    %2664 = vmatpush1.msra.mxu0 %v2588
    %2665 = vmatprep.subr.mxu0 0.0
    %2666 = vmatpush1.msra.mxu0 %v2587
    %2667 = vmatprep.subr.mxu0 0.0
    %2668 = vmatpush2.msra.mxu0 %v2618
    %2669 = vmatprep.subr.mxu0 0.0
    %2670 = vmatpush2.msra.mxu0 %v2617
    %2671 = vmatprep.subr.mxu0 0.0
    %2672 = vmatpush2.msra.mxu0 %v2616
    %2673 = vmatprep.subr.mxu0 0.0
    %2674 = vmatpush2.msra.mxu0 %v2615
    %2675 = vmatprep.subr.mxu0 0.0
    %2676 = vmatpush2.msra.mxu0 %v2614
    %2677 = vmatprep.subr.mxu0 0.0
    %2678 = vmatpush2.msra.mxu0 %v2613
    %2679 = vmatprep.subr.mxu0 0.0
    %2680 = vmatpush2.msra.mxu0 %v2612
    %2681 = vmatprep.subr.mxu0 0.0
    %2682 = vmatpush2.msra.mxu0 %v2611
    %2683 = vmatprep.subr.mxu0 0.0
    %2684 = vmatpush2.msra.mxu0 %v2610
    %2685 = vmatprep.subr.mxu0 0.0
    %2686 = vmatpush2.msra.mxu0 %v2609
    %2687 = vmatprep.subr.mxu0 0.0
    %2688 = vmatpush2.msra.mxu0 %v2608
    %2689 = vmatprep.subr.mxu0 0.0
    %2690 = vmatpush2.msra.mxu0 %v2607
    %2691 = vmatprep.subr.mxu0 0.0
    %2692 = vmatpush2.msra.mxu0 %v2606
    %2693 = vmatprep.subr.mxu0 0.0
    %2694 = vmatpush2.msra.mxu0 %v2605
    %2695 = vmatprep.subr.mxu0 0.0
    %2696 = vmatpush2.msra.mxu0 %v2604
    %2697 = vmatprep.subr.mxu0 0.0
    %2698 = vmatpush2.msra.mxu0 %v2603
    %2699 = vmatprep.mubr.f32.mxu0 %v2495
    %2700 = vmatmul.mubr.f32.gmra.mxu0 %v2468
    %v2701 = vpop.f32.mrf.mxu0
    %v2702 = vadd.f32 0.0, %v2701
    %v2703 = vpop.f32.mrf.mxu0
    %2704 = vmatprep.mubr.f32.mxu0 %v2498
    %2705 = vmatmul.mubr.f32.gmra.mxu0 %v2470
    %v2706 = vpop.f32.mrf.mxu0
    %v2707 = vadd.f32 0.0, %v2706
    %v2708 = vpop.f32.mrf.mxu0
    %2709 = vmatprep.mubr.f32.mxu0 %v2501
    %2710 = vmatmul.mubr.f32.gmra.mxu0 %v2472
    %v2711 = vpop.f32.mrf.mxu0
    %v2712 = vadd.f32 0.0, %v2711
    %v2713 = vpop.f32.mrf.mxu0
    %2714 = vmatprep.mubr.f32.mxu0 %v2504
    %2715 = vmatmul.mubr.f32.gmra.mxu0 %v2474
    %v2716 = vpop.f32.mrf.mxu0
    %v2717 = vadd.f32 0.0, %v2716
    %v2718 = vpop.f32.mrf.mxu0
    %2719 = vdwg.mxu0
    %2720 = vmatprep.subr.mxu0 0.0
    %2721 = vmatpush1.msra.mxu0 %v2634
    %2722 = vmatprep.subr.mxu0 0.0
    %2723 = vmatpush1.msra.mxu0 %v2633
    %2724 = vmatprep.subr.mxu0 0.0
    %2725 = vmatpush1.msra.mxu0 %v2632
    %2726 = vmatprep.subr.mxu0 0.0
    %2727 = vmatpush1.msra.mxu0 %v2631
    %2728 = vmatprep.subr.mxu0 0.0
    %2729 = vmatpush1.msra.mxu0 %v2630
    %2730 = vmatprep.subr.mxu0 0.0
    %2731 = vmatpush1.msra.mxu0 %v2629
    %2732 = vmatprep.subr.mxu0 0.0
    %2733 = vmatpush1.msra.mxu0 %v2628
    %2734 = vmatprep.subr.mxu0 0.0
    %2735 = vmatpush1.msra.mxu0 %v2627
    %2736 = vmatprep.subr.mxu0 0.0
    %2737 = vmatpush1.msra.mxu0 %v2626
    %2738 = vmatprep.subr.mxu0 0.0
    %2739 = vmatpush1.msra.mxu0 %v2625
    %2740 = vmatprep.subr.mxu0 0.0
    %2741 = vmatpush1.msra.mxu0 %v2624
    %2742 = vmatprep.subr.mxu0 0.0
    %2743 = vmatpush1.msra.mxu0 %v2623
    %2744 = vmatprep.subr.mxu0 0.0
    %2745 = vmatpush1.msra.mxu0 %v2622
    %2746 = vmatprep.subr.mxu0 0.0
    %2747 = vmatpush1.msra.mxu0 %v2621
    %2748 = vmatprep.subr.mxu0 0.0
    %2749 = vmatpush1.msra.mxu0 %v2620
    %2750 = vmatprep.subr.mxu0 0.0
    %2751 = vmatpush1.msra.mxu0 %v2619
    %2752 = vmatprep.subr.mxu0 0.0
    %2753 = vmatpush2.msra.mxu0 0.0
    %2754 = vmatprep.subr.mxu0 0.0
    %2755 = vmatpush2.msra.mxu0 0.0
    %2756 = vmatprep.subr.mxu0 0.0
    %2757 = vmatpush2.msra.mxu0 0.0
    %2758 = vmatprep.subr.mxu0 0.0
    %2759 = vmatpush2.msra.mxu0 0.0
    %2760 = vmatprep.subr.mxu0 0.0
    %2761 = vmatpush2.msra.mxu0 0.0
    %2762 = vmatprep.subr.mxu0 0.0
    %2763 = vmatpush2.msra.mxu0 0.0
    %2764 = vmatprep.subr.mxu0 0.0
    %2765 = vmatpush2.msra.mxu0 0.0
    %2766 = vmatprep.subr.mxu0 0.0
    %2767 = vmatpush2.msra.mxu0 0.0
    %2768 = vmatprep.subr.mxu0 0.0
    %2769 = vmatpush2.msra.mxu0 0.0
    %2770 = vmatprep.subr.mxu0 0.0
    %2771 = vmatpush2.msra.mxu0 0.0
    %2772 = vmatprep.subr.mxu0 0.0
    %2773 = vmatpush2.msra.mxu0 0.0
    %2774 = vmatprep.subr.mxu0 0.0
    %2775 = vmatpush2.msra.mxu0 0.0
    %2776 = vmatprep.subr.mxu0 0.0
    %2777 = vmatpush2.msra.mxu0 0.0
    %2778 = vmatprep.subr.mxu0 0.0
    %2779 = vmatpush2.msra.mxu0 0.0
    %2780 = vmatprep.subr.mxu0 0.0
    %2781 = vmatpush2.msra.mxu0 0.0
    %2782 = vmatprep.subr.mxu0 0.0
    %2783 = vmatpush2.msra.mxu0 0.0
    %2784 = vmatprep.mubr.f32.mxu0 0.0
    %2785 = vmatmul.mubr.f32.gmra.mxu0 %v2519
    %v2786 = vpop.f32.mrf.mxu0
    %v2787 = vadd.f32 %v2702, %v2786
    %v2788 = vpop.f32.mrf.mxu0
    %2789 = vmatprep.mubr.f32.mxu0 0.0
    %2790 = vmatmul.mubr.f32.gmra.mxu0 %v2522
    %v2791 = vpop.f32.mrf.mxu0
    %v2792 = vadd.f32 %v2707, %v2791
    %v2793 = vpop.f32.mrf.mxu0
    %2794 = vmatprep.mubr.f32.mxu0 0.0
    %2795 = vmatmul.mubr.f32.gmra.mxu0 %v2525
    %v2796 = vpop.f32.mrf.mxu0
    %v2797 = vadd.f32 %v2712, %v2796
    %v2798 = vpop.f32.mrf.mxu0
    %2799 = vmatprep.mubr.f32.mxu0 0.0
    %2800 = vmatmul.mubr.f32.gmra.mxu0 %v2528
    %v2801 = vpop.f32.mrf.mxu0
    %v2802 = vadd.f32 %v2717, %v2801
    %v2803 = vpop.f32.mrf.mxu0
    %2804 = vdwg.mxu0
    %2805 = vmatprep.subr.mxu0 0.0
    %2806 = vmatpush1.msra.mxu0 %v2553
    %2807 = vmatprep.subr.mxu0 0.0
    %2808 = vmatpush1.msra.mxu0 %v2552
    %2809 = vmatprep.subr.mxu0 0.0
    %2810 = vmatpush1.msra.mxu0 %v2551
    %2811 = vmatprep.subr.mxu0 0.0
    %2812 = vmatpush1.msra.mxu0 %v2550
    %2813 = vmatprep.subr.mxu0 0.0
    %2814 = vmatpush1.msra.mxu0 %v2549
    %2815 = vmatprep.subr.mxu0 0.0
    %2816 = vmatpush1.msra.mxu0 %v2548
    %2817 = vmatprep.subr.mxu0 0.0
    %2818 = vmatpush1.msra.mxu0 %v2547
    %2819 = vmatprep.subr.mxu0 0.0
    %2820 = vmatpush1.msra.mxu0 %v2546
    %2821 = vmatprep.subr.mxu0 0.0
    %2822 = vmatpush1.msra.mxu0 %v2545
    %2823 = vmatprep.subr.mxu0 0.0
    %2824 = vmatpush1.msra.mxu0 %v2544
    %2825 = vmatprep.subr.mxu0 0.0
    %2826 = vmatpush1.msra.mxu0 %v2543
    %2827 = vmatprep.subr.mxu0 0.0
    %2828 = vmatpush1.msra.mxu0 %v2542
    %2829 = vmatprep.subr.mxu0 0.0
    %2830 = vmatpush1.msra.mxu0 %v2541
    %2831 = vmatprep.subr.mxu0 0.0
    %2832 = vmatpush1.msra.mxu0 %v2540
    %2833 = vmatprep.subr.mxu0 0.0
    %2834 = vmatpush1.msra.mxu0 %v2539
    %2835 = vmatprep.subr.mxu0 0.0
    %2836 = vmatpush1.msra.mxu0 %v2538
    %2837 = vmatprep.subr.mxu0 0.0
    %2838 = vmatpush2.msra.mxu0 %v2569
    %2839 = vmatprep.subr.mxu0 0.0
    %2840 = vmatpush2.msra.mxu0 %v2568
    %2841 = vmatprep.subr.mxu0 0.0
    %2842 = vmatpush2.msra.mxu0 %v2567
    %2843 = vmatprep.subr.mxu0 0.0
    %2844 = vmatpush2.msra.mxu0 %v2566
    %2845 = vmatprep.subr.mxu0 0.0
    %2846 = vmatpush2.msra.mxu0 %v2565
    %2847 = vmatprep.subr.mxu0 0.0
    %2848 = vmatpush2.msra.mxu0 %v2564
    %2849 = vmatprep.subr.mxu0 0.0
    %2850 = vmatpush2.msra.mxu0 %v2563
    %2851 = vmatprep.subr.mxu0 0.0
    %2852 = vmatpush2.msra.mxu0 %v2562
    %2853 = vmatprep.subr.mxu0 0.0
    %2854 = vmatpush2.msra.mxu0 %v2561
    %2855 = vmatprep.subr.mxu0 0.0
    %2856 = vmatpush2.msra.mxu0 %v2560
    %2857 = vmatprep.subr.mxu0 0.0
    %2858 = vmatpush2.msra.mxu0 %v2559
    %2859 = vmatprep.subr.mxu0 0.0
    %2860 = vmatpush2.msra.mxu0 %v2558
    %2861 = vmatprep.subr.mxu0 0.0
    %2862 = vmatpush2.msra.mxu0 %v2557
    %2863 = vmatprep.subr.mxu0 0.0
    %2864 = vmatpush2.msra.mxu0 %v2556
    %2865 = vmatprep.subr.mxu0 0.0
    %2866 = vmatpush2.msra.mxu0 %v2555
    %2867 = vmatprep.subr.mxu0 0.0
    %2868 = vmatpush2.msra.mxu0 %v2554
    %2869 = vmatprep.mubr.f32.mxu0 %v2492
    %2870 = vmatmul.mubr.f32.gmra.mxu0 %v2466
    %v2871 = vpop.f32.mrf.mxu0
    %v2872 = vadd.f32 %v2787, %v2871
    %v2873 = vpop.f32.mrf.mxu0
    %2874 = vmatprep.mubr.f32.mxu0 %v2495
    %2875 = vmatmul.mubr.f32.gmra.mxu0 %v2468
    %v2876 = vpop.f32.mrf.mxu0
    %v2877 = vadd.f32 %v2792, %v2876
    %v2878 = vpop.f32.mrf.mxu0
    %2879 = vmatprep.mubr.f32.mxu0 %v2498
    %2880 = vmatmul.mubr.f32.gmra.mxu0 %v2470
    %v2881 = vpop.f32.mrf.mxu0
    %v2882 = vadd.f32 %v2797, %v2881
    %v2883 = vpop.f32.mrf.mxu0
    %2884 = vmatprep.mubr.f32.mxu0 %v2501
    %2885 = vmatmul.mubr.f32.gmra.mxu0 %v2472
    %v2886 = vpop.f32.mrf.mxu0
    %v2887 = vadd.f32 %v2802, %v2886
    %v2888 = vpop.f32.mrf.mxu0
    %2889 = vdwg.mxu0
    %2890 = vmatprep.subr.mxu0 0.0
    %2891 = vmatpush1.msra.mxu0 %v2585
    %2892 = vmatprep.subr.mxu0 0.0
    %2893 = vmatpush1.msra.mxu0 %v2584
    %2894 = vmatprep.subr.mxu0 0.0
    %2895 = vmatpush1.msra.mxu0 %v2583
    %2896 = vmatprep.subr.mxu0 0.0
    %2897 = vmatpush1.msra.mxu0 %v2582
    %2898 = vmatprep.subr.mxu0 0.0
    %2899 = vmatpush1.msra.mxu0 %v2581
    %2900 = vmatprep.subr.mxu0 0.0
    %2901 = vmatpush1.msra.mxu0 %v2580
    %2902 = vmatprep.subr.mxu0 0.0
    %2903 = vmatpush1.msra.mxu0 %v2579
    %2904 = vmatprep.subr.mxu0 0.0
    %2905 = vmatpush1.msra.mxu0 %v2578
    %2906 = vmatprep.subr.mxu0 0.0
    %2907 = vmatpush1.msra.mxu0 %v2577
    %2908 = vmatprep.subr.mxu0 0.0
    %2909 = vmatpush1.msra.mxu0 %v2576
    %2910 = vmatprep.subr.mxu0 0.0
    %2911 = vmatpush1.msra.mxu0 %v2575
    %2912 = vmatprep.subr.mxu0 0.0
    %2913 = vmatpush1.msra.mxu0 %v2574
    %2914 = vmatprep.subr.mxu0 0.0
    %2915 = vmatpush1.msra.mxu0 %v2573
    %2916 = vmatprep.subr.mxu0 0.0
    %2917 = vmatpush1.msra.mxu0 %v2572
    %2918 = vmatprep.subr.mxu0 0.0
    %2919 = vmatpush1.msra.mxu0 %v2571
    %2920 = vmatprep.subr.mxu0 0.0
    %2921 = vmatpush1.msra.mxu0 %v2570
    %2922 = vmatprep.subr.mxu0 0.0
    %2923 = vmatpush2.msra.mxu0 0.0
    %2924 = vmatprep.subr.mxu0 0.0
    %2925 = vmatpush2.msra.mxu0 0.0
    %2926 = vmatprep.subr.mxu0 0.0
    %2927 = vmatpush2.msra.mxu0 0.0
    %2928 = vmatprep.subr.mxu0 0.0
    %2929 = vmatpush2.msra.mxu0 0.0
    %2930 = vmatprep.subr.mxu0 0.0
    %2931 = vmatpush2.msra.mxu0 0.0
    %2932 = vmatprep.subr.mxu0 0.0
    %2933 = vmatpush2.msra.mxu0 0.0
    %2934 = vmatprep.subr.mxu0 0.0
    %2935 = vmatpush2.msra.mxu0 0.0
    %2936 = vmatprep.subr.mxu0 0.0
    %2937 = vmatpush2.msra.mxu0 0.0
    %2938 = vmatprep.subr.mxu0 0.0
    %2939 = vmatpush2.msra.mxu0 0.0
    %2940 = vmatprep.subr.mxu0 0.0
    %2941 = vmatpush2.msra.mxu0 0.0
    %2942 = vmatprep.subr.mxu0 0.0
    %2943 = vmatpush2.msra.mxu0 0.0
    %2944 = vmatprep.subr.mxu0 0.0
    %2945 = vmatpush2.msra.mxu0 0.0
    %2946 = vmatprep.subr.mxu0 0.0
    %2947 = vmatpush2.msra.mxu0 0.0
    %2948 = vmatprep.subr.mxu0 0.0
    %2949 = vmatpush2.msra.mxu0 0.0
    %2950 = vmatprep.subr.mxu0 0.0
    %2951 = vmatpush2.msra.mxu0 0.0
    %2952 = vmatprep.subr.mxu0 0.0
    %2953 = vmatpush2.msra.mxu0 0.0
    %2954 = vmatprep.mubr.f32.mxu0 0.0
    %2955 = vmatmul.mubr.f32.gmra.mxu0 %v2516
    %v2956 = vpop.f32.mrf.mxu0
    %v2957 = vadd.f32 %v2872, %v2956
    %v2958 = vpop.f32.mrf.mxu0
    %2959 = vmatprep.mubr.f32.mxu0 0.0
    %2960 = vmatmul.mubr.f32.gmra.mxu0 %v2519
    %v2961 = vpop.f32.mrf.mxu0
    %v2962 = vadd.f32 %v2877, %v2961
    %v2963 = vpop.f32.mrf.mxu0
    %2964 = vmatprep.mubr.f32.mxu0 0.0
    %2965 = vmatmul.mubr.f32.gmra.mxu0 %v2522
    %v2966 = vpop.f32.mrf.mxu0
    %v2967 = vadd.f32 %v2882, %v2966
    %v2968 = vpop.f32.mrf.mxu0
    %2969 = vmatprep.mubr.f32.mxu0 0.0
    %2970 = vmatmul.mubr.f32.gmra.mxu0 %v2525
    %v2971 = vpop.f32.mrf.mxu0
    %v2972 = vadd.f32 %v2887, %v2971
    %v2973 = vpop.f32.mrf.mxu0
    %2974 = vdwg.mxu0
    %s2975 = scalar_lea.vmem [#allocation11], 768
    %v2976 = vld [vmem:[%s2975] sm:$0xff]
    %v2977 = vld [vmem:[%s2975 + $0x8] sm:$0xff]
    %v2978 = vld [vmem:[%s2975 + $0x10] sm:$0xff]
    %v2979 = vld [vmem:[%s2975 + $0x18] sm:$0xff]
    %v2980 = vld [vmem:[%s2975 + $0x20] sm:$0xff]
    %v2981 = vld [vmem:[%s2975 + $0x28] sm:$0xff]
    %v2982 = vld [vmem:[%s2975 + $0x30] sm:$0xff]
    %v2983 = vld [vmem:[%s2975 + $0x38] sm:$0xff]
    %v2984 = vld [vmem:[%s2975 + $0x40] sm:$0xff]
    %v2985 = vld [vmem:[%s2975 + $0x48] sm:$0xff]
    %v2986 = vld [vmem:[%s2975 + $0x50] sm:$0xff]
    %v2987 = vld [vmem:[%s2975 + $0x58] sm:$0xff]
    %v2988 = vld [vmem:[%s2975 + $0x60] sm:$0xff]
    %v2989 = vld [vmem:[%s2975 + $0x68] sm:$0xff]
    %v2990 = vld [vmem:[%s2975 + $0x70] sm:$0xff]
    %v2991 = vld [vmem:[%s2975 + $0x78] sm:$0xff]
    %v2992 = vld [vmem:[%s2975 + $0x80] sm:$0xff]
    %v2993 = vld [vmem:[%s2975 + $0x88] sm:$0xff]
    %v2994 = vld [vmem:[%s2975 + $0x90] sm:$0xff]
    %v2995 = vld [vmem:[%s2975 + $0x98] sm:$0xff]
    %v2996 = vld [vmem:[%s2975 + $0xa0] sm:$0xff]
    %v2997 = vld [vmem:[%s2975 + $0xa8] sm:$0xff]
    %v2998 = vld [vmem:[%s2975 + $0xb0] sm:$0xff]
    %v2999 = vld [vmem:[%s2975 + $0xb8] sm:$0xff]
    %v3000 = vld [vmem:[%s2975 + $0xc0] sm:$0xff]
    %v3001 = vld [vmem:[%s2975 + $0xc8] sm:$0xff]
    %v3002 = vld [vmem:[%s2975 + $0xd0] sm:$0xff]
    %v3003 = vld [vmem:[%s2975 + $0xd8] sm:$0xff]
    %v3004 = vld [vmem:[%s2975 + $0xe0] sm:$0xff]
    %v3005 = vld [vmem:[%s2975 + $0xe8] sm:$0xff]
    %v3006 = vld [vmem:[%s2975 + $0xf0] sm:$0xff]
    %v3007 = vld [vmem:[%s2975 + $0xf8] sm:$0xff]
    %v3008 = vld [vmem:[%s2975 + $0x100] sm:$0xff]
    %v3009 = vld [vmem:[%s2975 + $0x108] sm:$0xff]
    %v3010 = vld [vmem:[%s2975 + $0x110] sm:$0xff]
    %v3011 = vld [vmem:[%s2975 + $0x118] sm:$0xff]
    %v3012 = vld [vmem:[%s2975 + $0x120] sm:$0xff]
    %v3013 = vld [vmem:[%s2975 + $0x128] sm:$0xff]
    %v3014 = vld [vmem:[%s2975 + $0x130] sm:$0xff]
    %v3015 = vld [vmem:[%s2975 + $0x138] sm:$0xff]
    %v3016 = vld [vmem:[%s2975 + $0x140] sm:$0xff]
    %v3017 = vld [vmem:[%s2975 + $0x148] sm:$0xff]
    %v3018 = vld [vmem:[%s2975 + $0x150] sm:$0xff]
    %v3019 = vld [vmem:[%s2975 + $0x158] sm:$0xff]
    %v3020 = vld [vmem:[%s2975 + $0x160] sm:$0xff]
    %v3021 = vld [vmem:[%s2975 + $0x168] sm:$0xff]
    %v3022 = vld [vmem:[%s2975 + $0x170] sm:$0xff]
    %v3023 = vld [vmem:[%s2975 + $0x178] sm:$0xff]
    %3024 = vmatprep.subr.mxu0 0.0
    %3025 = vmatpush1.msra.mxu0 %v2991
    %3026 = vmatprep.subr.mxu0 0.0
    %3027 = vmatpush1.msra.mxu0 %v2990
    %3028 = vmatprep.subr.mxu0 0.0
    %3029 = vmatpush1.msra.mxu0 %v2989
    %3030 = vmatprep.subr.mxu0 0.0
    %3031 = vmatpush1.msra.mxu0 %v2988
    %3032 = vmatprep.subr.mxu0 0.0
    %3033 = vmatpush1.msra.mxu0 %v2987
    %3034 = vmatprep.subr.mxu0 0.0
    %3035 = vmatpush1.msra.mxu0 %v2986
    %3036 = vmatprep.subr.mxu0 0.0
    %3037 = vmatpush1.msra.mxu0 %v2985
    %3038 = vmatprep.subr.mxu0 0.0
    %3039 = vmatpush1.msra.mxu0 %v2984
    %3040 = vmatprep.subr.mxu0 0.0
    %3041 = vmatpush1.msra.mxu0 %v2983
    %3042 = vmatprep.subr.mxu0 0.0
    %3043 = vmatpush1.msra.mxu0 %v2982
    %3044 = vmatprep.subr.mxu0 0.0
    %3045 = vmatpush1.msra.mxu0 %v2981
    %3046 = vmatprep.subr.mxu0 0.0
    %3047 = vmatpush1.msra.mxu0 %v2980
    %3048 = vmatprep.subr.mxu0 0.0
    %3049 = vmatpush1.msra.mxu0 %v2979
    %3050 = vmatprep.subr.mxu0 0.0
    %3051 = vmatpush1.msra.mxu0 %v2978
    %3052 = vmatprep.subr.mxu0 0.0
    %3053 = vmatpush1.msra.mxu0 %v2977
    %3054 = vmatprep.subr.mxu0 0.0
    %3055 = vmatpush1.msra.mxu0 %v2976
    %3056 = vmatprep.subr.mxu0 0.0
    %3057 = vmatpush2.msra.mxu0 %v3007
    %3058 = vmatprep.subr.mxu0 0.0
    %3059 = vmatpush2.msra.mxu0 %v3006
    %3060 = vmatprep.subr.mxu0 0.0
    %3061 = vmatpush2.msra.mxu0 %v3005
    %3062 = vmatprep.subr.mxu0 0.0
    %3063 = vmatpush2.msra.mxu0 %v3004
    %3064 = vmatprep.subr.mxu0 0.0
    %3065 = vmatpush2.msra.mxu0 %v3003
    %3066 = vmatprep.subr.mxu0 0.0
    %3067 = vmatpush2.msra.mxu0 %v3002
    %3068 = vmatprep.subr.mxu0 0.0
    %3069 = vmatpush2.msra.mxu0 %v3001
    %3070 = vmatprep.subr.mxu0 0.0
    %3071 = vmatpush2.msra.mxu0 %v3000
    %3072 = vmatprep.subr.mxu0 0.0
    %3073 = vmatpush2.msra.mxu0 %v2999
    %3074 = vmatprep.subr.mxu0 0.0
    %3075 = vmatpush2.msra.mxu0 %v2998
    %3076 = vmatprep.subr.mxu0 0.0
    %3077 = vmatpush2.msra.mxu0 %v2997
    %3078 = vmatprep.subr.mxu0 0.0
    %3079 = vmatpush2.msra.mxu0 %v2996
    %3080 = vmatprep.subr.mxu0 0.0
    %3081 = vmatpush2.msra.mxu0 %v2995
    %3082 = vmatprep.subr.mxu0 0.0
    %3083 = vmatpush2.msra.mxu0 %v2994
    %3084 = vmatprep.subr.mxu0 0.0
    %3085 = vmatpush2.msra.mxu0 %v2993
    %3086 = vmatprep.subr.mxu0 0.0
    %3087 = vmatpush2.msra.mxu0 %v2992
    %3088 = vmatprep.mubr.f32.mxu0 %v2498
    %3089 = vmatmul.mubr.f32.gmra.mxu0 %v2470
    %v3090 = vpop.f32.mrf.mxu0
    %v3091 = vadd.f32 0.0, %v3090
    %v3092 = vpop.f32.mrf.mxu0
    %3093 = vmatprep.mubr.f32.mxu0 %v2501
    %3094 = vmatmul.mubr.f32.gmra.mxu0 %v2472
    %v3095 = vpop.f32.mrf.mxu0
    %v3096 = vadd.f32 0.0, %v3095
    %v3097 = vpop.f32.mrf.mxu0
    %3098 = vmatprep.mubr.f32.mxu0 %v2504
    %3099 = vmatmul.mubr.f32.gmra.mxu0 %v2474
    %v3100 = vpop.f32.mrf.mxu0
    %v3101 = vadd.f32 0.0, %v3100
    %v3102 = vpop.f32.mrf.mxu0
    %3103 = vmatprep.mubr.f32.mxu0 %v2507
    %3104 = vmatmul.mubr.f32.gmra.mxu0 %v2476
    %v3105 = vpop.f32.mrf.mxu0
    %v3106 = vadd.f32 0.0, %v3105
    %v3107 = vpop.f32.mrf.mxu0
    %3108 = vdwg.mxu0
    %3109 = vmatprep.subr.mxu0 0.0
    %3110 = vmatpush1.msra.mxu0 %v3023
    %3111 = vmatprep.subr.mxu0 0.0
    %3112 = vmatpush1.msra.mxu0 %v3022
    %3113 = vmatprep.subr.mxu0 0.0
    %3114 = vmatpush1.msra.mxu0 %v3021
    %3115 = vmatprep.subr.mxu0 0.0
    %3116 = vmatpush1.msra.mxu0 %v3020
    %3117 = vmatprep.subr.mxu0 0.0
    %3118 = vmatpush1.msra.mxu0 %v3019
    %3119 = vmatprep.subr.mxu0 0.0
    %3120 = vmatpush1.msra.mxu0 %v3018
    %3121 = vmatprep.subr.mxu0 0.0
    %3122 = vmatpush1.msra.mxu0 %v3017
    %3123 = vmatprep.subr.mxu0 0.0
    %3124 = vmatpush1.msra.mxu0 %v3016
    %3125 = vmatprep.subr.mxu0 0.0
    %3126 = vmatpush1.msra.mxu0 %v3015
    %3127 = vmatprep.subr.mxu0 0.0
    %3128 = vmatpush1.msra.mxu0 %v3014
    %3129 = vmatprep.subr.mxu0 0.0
    %3130 = vmatpush1.msra.mxu0 %v3013
    %3131 = vmatprep.subr.mxu0 0.0
    %3132 = vmatpush1.msra.mxu0 %v3012
    %3133 = vmatprep.subr.mxu0 0.0
    %3134 = vmatpush1.msra.mxu0 %v3011
    %3135 = vmatprep.subr.mxu0 0.0
    %3136 = vmatpush1.msra.mxu0 %v3010
    %3137 = vmatprep.subr.mxu0 0.0
    %3138 = vmatpush1.msra.mxu0 %v3009
    %3139 = vmatprep.subr.mxu0 0.0
    %3140 = vmatpush1.msra.mxu0 %v3008
    %3141 = vmatprep.subr.mxu0 0.0
    %3142 = vmatpush2.msra.mxu0 0.0
    %3143 = vmatprep.subr.mxu0 0.0
    %3144 = vmatpush2.msra.mxu0 0.0
    %3145 = vmatprep.subr.mxu0 0.0
    %3146 = vmatpush2.msra.mxu0 0.0
    %3147 = vmatprep.subr.mxu0 0.0
    %3148 = vmatpush2.msra.mxu0 0.0
    %3149 = vmatprep.subr.mxu0 0.0
    %3150 = vmatpush2.msra.mxu0 0.0
    %3151 = vmatprep.subr.mxu0 0.0
    %3152 = vmatpush2.msra.mxu0 0.0
    %3153 = vmatprep.subr.mxu0 0.0
    %3154 = vmatpush2.msra.mxu0 0.0
    %3155 = vmatprep.subr.mxu0 0.0
    %3156 = vmatpush2.msra.mxu0 0.0
    %3157 = vmatprep.subr.mxu0 0.0
    %3158 = vmatpush2.msra.mxu0 0.0
    %3159 = vmatprep.subr.mxu0 0.0
    %3160 = vmatpush2.msra.mxu0 0.0
    %3161 = vmatprep.subr.mxu0 0.0
    %3162 = vmatpush2.msra.mxu0 0.0
    %3163 = vmatprep.subr.mxu0 0.0
    %3164 = vmatpush2.msra.mxu0 0.0
    %3165 = vmatprep.subr.mxu0 0.0
    %3166 = vmatpush2.msra.mxu0 0.0
    %3167 = vmatprep.subr.mxu0 0.0
    %3168 = vmatpush2.msra.mxu0 0.0
    %3169 = vmatprep.subr.mxu0 0.0
    %3170 = vmatpush2.msra.mxu0 0.0
    %3171 = vmatprep.subr.mxu0 0.0
    %3172 = vmatpush2.msra.mxu0 0.0
    %3173 = vmatprep.mubr.f32.mxu0 0.0
    %3174 = vmatmul.mubr.f32.gmra.mxu0 %v2522
    %v3175 = vpop.f32.mrf.mxu0
    %v3176 = vadd.f32 %v3091, %v3175
    %v3177 = vpop.f32.mrf.mxu0
    %3178 = vmatprep.mubr.f32.mxu0 0.0
    %3179 = vmatmul.mubr.f32.gmra.mxu0 %v2525
    %v3180 = vpop.f32.mrf.mxu0
    %v3181 = vadd.f32 %v3096, %v3180
    %v3182 = vpop.f32.mrf.mxu0
    %3183 = vmatprep.mubr.f32.mxu0 0.0
    %3184 = vmatmul.mubr.f32.gmra.mxu0 %v2528
    %v3185 = vpop.f32.mrf.mxu0
    %v3186 = vadd.f32 %v3101, %v3185
    %v3187 = vpop.f32.mrf.mxu0
    %3188 = vmatprep.mubr.f32.mxu0 0.0
    %3189 = vmatmul.mubr.f32.gmra.mxu0 %v2531
    %v3190 = vpop.f32.mrf.mxu0
    %v3191 = vadd.f32 %v3106, %v3190
    %v3192 = vpop.f32.mrf.mxu0
    %3193 = vdwg.mxu0
    %v3194 = vadd.f32 %v2957, %v3176
    %v3195 = vadd.f32 %v2962, %v3181
    %v3196 = vadd.f32 %v2967, %v3186
    %v3197 = vadd.f32 %v2972, %v3191
    %v3198 = vld [vmem:[%s14] sm:$0x1]
    %v3200 = vlaneseq
    %v3201 = vshrl.u32 %v3200, 7
    %v3202 = vsub.s32 0, %v3201
    %v3203 = vrot.slane %v3198, %v3202
    %v3205 = vadd.f32 %v3194, %v3203
    %v3206 = vadd.f32 %v3195, %v3203
    %v3207 = vadd.f32 %v3196, %v3203
    %v3208 = vadd.f32 %v3197, %v3203
    %v3209 = vadd.f32 %v3205, %v1696
    %v3210 = vadd.f32 %v3206, %v1697
    %v3211 = vadd.f32 %v3207, %v1698
    %v3212 = vadd.f32 %v3208, %v1699
    %v3213 = vmul.f32 %v3209, %v1694
    %v3214 = vmul.f32 %v3210, %v1694
    %v3215 = vmul.f32 %v3211, %v1694
    %v3216 = vmul.f32 %v3212, %v1694
    %3217 = vst [vmem:[%s174 + $0x1] sm:$0xff] %v3213
    %3218 = vst [vmem:[%s174 + $0x11] sm:$0xff] %v3214
    %3219 = vst [vmem:[%s174 + $0x21] sm:$0xff] %v3215
    %3220 = vst [vmem:[%s174 + $0x31] sm:$0xff] %v3216
    %v3221 = vld [vmem:[#allocation2] sm:$0xff]
    %v3222 = vld [vmem:[#allocation2 + $0x8] sm:$0x3]
    %v3223 = vld [vmem:[#allocation2 + $0x10] sm:$0xff]
    %v3224 = vld [vmem:[#allocation2 + $0x18] sm:$0x3]
    %v3225 = vld [vmem:[#allocation2 + $0x20] sm:$0xff]
    %v3226 = vld [vmem:[#allocation2 + $0x28] sm:$0x3]
    %v3227 = vld [vmem:[#allocation2 + $0x30] sm:$0xff]
    %v3228 = vld [vmem:[#allocation2 + $0x38] sm:$0x3]
    %v3229 = vld [vmem:[#allocation2 + $0x40] sm:$0xff]
    %v3230 = vld [vmem:[#allocation2 + $0x48] sm:$0x3]
    %v3231 = vld [vmem:[#allocation2 + $0x50] sm:$0xff]
    %v3232 = vld [vmem:[#allocation2 + $0x58] sm:$0x3]
    %v3245 = vrot.slane %v3221, 1
    %v3246 = vrot.slane %v3222, 1
    %v3247 = vsel %vm203, %v3245, %v3246
    %v3248 = vrot.slane %v3223, 1
    %v3249 = vrot.slane %v3224, 1
    %v3250 = vsel %vm203, %v3248, %v3249
    %v3251 = vrot.slane %v3225, 1
    %v3252 = vrot.slane %v3226, 1
    %v3253 = vsel %vm203, %v3251, %v3252
    %v3254 = vrot.slane %v3227, 1
    %v3255 = vrot.slane %v3228, 1
    %v3256 = vsel %vm203, %v3254, %v3255
    %v3257 = vrot.slane %v3229, 1
    %v3258 = vrot.slane %v3230, 1
    %v3259 = vsel %vm203, %v3257, %v3258
    %v3260 = vrot.slane %v3231, 1
    %v3261 = vrot.slane %v3232, 1
    %v3262 = vsel %vm203, %v3260, %v3261
    %v3269 = vrot.slane %v3221, 2
    %v3270 = vrot.slane %v3222, 2
    %v3271 = vsel %vm228, %v3269, %v3270
    %v3272 = vrot.slane %v3223, 2
    %v3273 = vrot.slane %v3224, 2
    %v3274 = vsel %vm228, %v3272, %v3273
    %v3275 = vrot.slane %v3225, 2
    %v3276 = vrot.slane %v3226, 2
    %v3277 = vsel %vm228, %v3275, %v3276
    %v3278 = vrot.slane %v3227, 2
    %v3279 = vrot.slane %v3228, 2
    %v3280 = vsel %vm228, %v3278, %v3279
    %v3281 = vrot.slane %v3229, 2
    %v3282 = vrot.slane %v3230, 2
    %v3283 = vsel %vm228, %v3281, %v3282
    %v3284 = vrot.slane %v3231, 2
    %v3285 = vrot.slane %v3232, 2
    %v3286 = vsel %vm228, %v3284, %v3285
    %v3293 = vld [vmem:[#allocation12] sm:$0xff]
    %v3294 = vld [vmem:[#allocation12 + $0x8] sm:$0xff]
    %v3295 = vld [vmem:[#allocation12 + $0x10] sm:$0xff]
    %v3296 = vld [vmem:[#allocation12 + $0x18] sm:$0xff]
    %v3297 = vld [vmem:[#allocation12 + $0x20] sm:$0xff]
    %v3298 = vld [vmem:[#allocation12 + $0x28] sm:$0xff]
    %v3299 = vld [vmem:[#allocation12 + $0x30] sm:$0xff]
    %v3300 = vld [vmem:[#allocation12 + $0x38] sm:$0xff]
    %v3301 = vld [vmem:[#allocation12 + $0x40] sm:$0xff]
    %v3302 = vld [vmem:[#allocation12 + $0x48] sm:$0xff]
    %v3303 = vld [vmem:[#allocation12 + $0x50] sm:$0xff]
    %v3304 = vld [vmem:[#allocation12 + $0x58] sm:$0xff]
    %v3305 = vld [vmem:[#allocation12 + $0x60] sm:$0xff]
    %v3306 = vld [vmem:[#allocation12 + $0x68] sm:$0xff]
    %v3307 = vld [vmem:[#allocation12 + $0x70] sm:$0xff]
    %v3308 = vld [vmem:[#allocation12 + $0x78] sm:$0xff]
    %v3309 = vld [vmem:[#allocation12 + $0x80] sm:$0xff]
    %v3310 = vld [vmem:[#allocation12 + $0x88] sm:$0xff]
    %v3311 = vld [vmem:[#allocation12 + $0x90] sm:$0xff]
    %v3312 = vld [vmem:[#allocation12 + $0x98] sm:$0xff]
    %v3313 = vld [vmem:[#allocation12 + $0xa0] sm:$0xff]
    %v3314 = vld [vmem:[#allocation12 + $0xa8] sm:$0xff]
    %v3315 = vld [vmem:[#allocation12 + $0xb0] sm:$0xff]
    %v3316 = vld [vmem:[#allocation12 + $0xb8] sm:$0xff]
    %v3317 = vld [vmem:[#allocation12 + $0xc0] sm:$0xff]
    %v3318 = vld [vmem:[#allocation12 + $0xc8] sm:$0xff]
    %v3319 = vld [vmem:[#allocation12 + $0xd0] sm:$0xff]
    %v3320 = vld [vmem:[#allocation12 + $0xd8] sm:$0xff]
    %v3321 = vld [vmem:[#allocation12 + $0xe0] sm:$0xff]
    %v3322 = vld [vmem:[#allocation12 + $0xe8] sm:$0xff]
    %v3323 = vld [vmem:[#allocation12 + $0xf0] sm:$0xff]
    %v3324 = vld [vmem:[#allocation12 + $0xf8] sm:$0xff]
    %v3325 = vld [vmem:[#allocation12 + $0x100] sm:$0xff]
    %v3326 = vld [vmem:[#allocation12 + $0x108] sm:$0xff]
    %v3327 = vld [vmem:[#allocation12 + $0x110] sm:$0xff]
    %v3328 = vld [vmem:[#allocation12 + $0x118] sm:$0xff]
    %v3329 = vld [vmem:[#allocation12 + $0x120] sm:$0xff]
    %v3330 = vld [vmem:[#allocation12 + $0x128] sm:$0xff]
    %v3331 = vld [vmem:[#allocation12 + $0x130] sm:$0xff]
    %v3332 = vld [vmem:[#allocation12 + $0x138] sm:$0xff]
    %v3333 = vld [vmem:[#allocation12 + $0x140] sm:$0xff]
    %v3334 = vld [vmem:[#allocation12 + $0x148] sm:$0xff]
    %v3335 = vld [vmem:[#allocation12 + $0x150] sm:$0xff]
    %v3336 = vld [vmem:[#allocation12 + $0x158] sm:$0xff]
    %v3337 = vld [vmem:[#allocation12 + $0x160] sm:$0xff]
    %v3338 = vld [vmem:[#allocation12 + $0x168] sm:$0xff]
    %v3339 = vld [vmem:[#allocation12 + $0x170] sm:$0xff]
    %v3340 = vld [vmem:[#allocation12 + $0x178] sm:$0xff]
    %s3341 = scalar_lea.vmem [#allocation12], 384
    %v3342 = vld [vmem:[%s3341] sm:$0xff]
    %v3343 = vld [vmem:[%s3341 + $0x8] sm:$0xff]
    %v3344 = vld [vmem:[%s3341 + $0x10] sm:$0xff]
    %v3345 = vld [vmem:[%s3341 + $0x18] sm:$0xff]
    %v3346 = vld [vmem:[%s3341 + $0x20] sm:$0xff]
    %v3347 = vld [vmem:[%s3341 + $0x28] sm:$0xff]
    %v3348 = vld [vmem:[%s3341 + $0x30] sm:$0xff]
    %v3349 = vld [vmem:[%s3341 + $0x38] sm:$0xff]
    %v3350 = vld [vmem:[%s3341 + $0x40] sm:$0xff]
    %v3351 = vld [vmem:[%s3341 + $0x48] sm:$0xff]
    %v3352 = vld [vmem:[%s3341 + $0x50] sm:$0xff]
    %v3353 = vld [vmem:[%s3341 + $0x58] sm:$0xff]
    %v3354 = vld [vmem:[%s3341 + $0x60] sm:$0xff]
    %v3355 = vld [vmem:[%s3341 + $0x68] sm:$0xff]
    %v3356 = vld [vmem:[%s3341 + $0x70] sm:$0xff]
    %v3357 = vld [vmem:[%s3341 + $0x78] sm:$0xff]
    %v3358 = vld [vmem:[%s3341 + $0x80] sm:$0xff]
    %v3359 = vld [vmem:[%s3341 + $0x88] sm:$0xff]
    %v3360 = vld [vmem:[%s3341 + $0x90] sm:$0xff]
    %v3361 = vld [vmem:[%s3341 + $0x98] sm:$0xff]
    %v3362 = vld [vmem:[%s3341 + $0xa0] sm:$0xff]
    %v3363 = vld [vmem:[%s3341 + $0xa8] sm:$0xff]
    %v3364 = vld [vmem:[%s3341 + $0xb0] sm:$0xff]
    %v3365 = vld [vmem:[%s3341 + $0xb8] sm:$0xff]
    %v3366 = vld [vmem:[%s3341 + $0xc0] sm:$0xff]
    %v3367 = vld [vmem:[%s3341 + $0xc8] sm:$0xff]
    %v3368 = vld [vmem:[%s3341 + $0xd0] sm:$0xff]
    %v3369 = vld [vmem:[%s3341 + $0xd8] sm:$0xff]
    %v3370 = vld [vmem:[%s3341 + $0xe0] sm:$0xff]
    %v3371 = vld [vmem:[%s3341 + $0xe8] sm:$0xff]
    %v3372 = vld [vmem:[%s3341 + $0xf0] sm:$0xff]
    %v3373 = vld [vmem:[%s3341 + $0xf8] sm:$0xff]
    %v3374 = vld [vmem:[%s3341 + $0x100] sm:$0xff]
    %v3375 = vld [vmem:[%s3341 + $0x108] sm:$0xff]
    %v3376 = vld [vmem:[%s3341 + $0x110] sm:$0xff]
    %v3377 = vld [vmem:[%s3341 + $0x118] sm:$0xff]
    %v3378 = vld [vmem:[%s3341 + $0x120] sm:$0xff]
    %v3379 = vld [vmem:[%s3341 + $0x128] sm:$0xff]
    %v3380 = vld [vmem:[%s3341 + $0x130] sm:$0xff]
    %v3381 = vld [vmem:[%s3341 + $0x138] sm:$0xff]
    %v3382 = vld [vmem:[%s3341 + $0x140] sm:$0xff]
    %v3383 = vld [vmem:[%s3341 + $0x148] sm:$0xff]
    %v3384 = vld [vmem:[%s3341 + $0x150] sm:$0xff]
    %v3385 = vld [vmem:[%s3341 + $0x158] sm:$0xff]
    %v3386 = vld [vmem:[%s3341 + $0x160] sm:$0xff]
    %v3387 = vld [vmem:[%s3341 + $0x168] sm:$0xff]
    %v3388 = vld [vmem:[%s3341 + $0x170] sm:$0xff]
    %v3389 = vld [vmem:[%s3341 + $0x178] sm:$0xff]
    %3390 = vmatprep.subr.mxu0 0.0
    %3391 = vmatpush1.msra.mxu0 %v3357
    %3392 = vmatprep.subr.mxu0 0.0
    %3393 = vmatpush1.msra.mxu0 %v3356
    %3394 = vmatprep.subr.mxu0 0.0
    %3395 = vmatpush1.msra.mxu0 %v3355
    %3396 = vmatprep.subr.mxu0 0.0
    %3397 = vmatpush1.msra.mxu0 %v3354
    %3398 = vmatprep.subr.mxu0 0.0
    %3399 = vmatpush1.msra.mxu0 %v3353
    %3400 = vmatprep.subr.mxu0 0.0
    %3401 = vmatpush1.msra.mxu0 %v3352
    %3402 = vmatprep.subr.mxu0 0.0
    %3403 = vmatpush1.msra.mxu0 %v3351
    %3404 = vmatprep.subr.mxu0 0.0
    %3405 = vmatpush1.msra.mxu0 %v3350
    %3406 = vmatprep.subr.mxu0 0.0
    %3407 = vmatpush1.msra.mxu0 %v3349
    %3408 = vmatprep.subr.mxu0 0.0
    %3409 = vmatpush1.msra.mxu0 %v3348
    %3410 = vmatprep.subr.mxu0 0.0
    %3411 = vmatpush1.msra.mxu0 %v3347
    %3412 = vmatprep.subr.mxu0 0.0
    %3413 = vmatpush1.msra.mxu0 %v3346
    %3414 = vmatprep.subr.mxu0 0.0
    %3415 = vmatpush1.msra.mxu0 %v3345
    %3416 = vmatprep.subr.mxu0 0.0
    %3417 = vmatpush1.msra.mxu0 %v3344
    %3418 = vmatprep.subr.mxu0 0.0
    %3419 = vmatpush1.msra.mxu0 %v3343
    %3420 = vmatprep.subr.mxu0 0.0
    %3421 = vmatpush1.msra.mxu0 %v3342
    %3422 = vmatprep.subr.mxu0 0.0
    %3423 = vmatpush2.msra.mxu0 %v3373
    %3424 = vmatprep.subr.mxu0 0.0
    %3425 = vmatpush2.msra.mxu0 %v3372
    %3426 = vmatprep.subr.mxu0 0.0
    %3427 = vmatpush2.msra.mxu0 %v3371
    %3428 = vmatprep.subr.mxu0 0.0
    %3429 = vmatpush2.msra.mxu0 %v3370
    %3430 = vmatprep.subr.mxu0 0.0
    %3431 = vmatpush2.msra.mxu0 %v3369
    %3432 = vmatprep.subr.mxu0 0.0
    %3433 = vmatpush2.msra.mxu0 %v3368
    %3434 = vmatprep.subr.mxu0 0.0
    %3435 = vmatpush2.msra.mxu0 %v3367
    %3436 = vmatprep.subr.mxu0 0.0
    %3437 = vmatpush2.msra.mxu0 %v3366
    %3438 = vmatprep.subr.mxu0 0.0
    %3439 = vmatpush2.msra.mxu0 %v3365
    %3440 = vmatprep.subr.mxu0 0.0
    %3441 = vmatpush2.msra.mxu0 %v3364
    %3442 = vmatprep.subr.mxu0 0.0
    %3443 = vmatpush2.msra.mxu0 %v3363
    %3444 = vmatprep.subr.mxu0 0.0
    %3445 = vmatpush2.msra.mxu0 %v3362
    %3446 = vmatprep.subr.mxu0 0.0
    %3447 = vmatpush2.msra.mxu0 %v3361
    %3448 = vmatprep.subr.mxu0 0.0
    %3449 = vmatpush2.msra.mxu0 %v3360
    %3450 = vmatprep.subr.mxu0 0.0
    %3451 = vmatpush2.msra.mxu0 %v3359
    %3452 = vmatprep.subr.mxu0 0.0
    %3453 = vmatpush2.msra.mxu0 %v3358
    %3454 = vmatprep.mubr.f32.mxu0 %v3250
    %3455 = vmatmul.mubr.f32.gmra.mxu0 %v3223
    %v3456 = vpop.f32.mrf.mxu0
    %v3457 = vadd.f32 0.0, %v3456
    %v3458 = vpop.f32.mrf.mxu0
    %3459 = vmatprep.mubr.f32.mxu0 %v3253
    %3460 = vmatmul.mubr.f32.gmra.mxu0 %v3225
    %v3461 = vpop.f32.mrf.mxu0
    %v3462 = vadd.f32 0.0, %v3461
    %v3463 = vpop.f32.mrf.mxu0
    %3464 = vmatprep.mubr.f32.mxu0 %v3256
    %3465 = vmatmul.mubr.f32.gmra.mxu0 %v3227
    %v3466 = vpop.f32.mrf.mxu0
    %v3467 = vadd.f32 0.0, %v3466
    %v3468 = vpop.f32.mrf.mxu0
    %3469 = vmatprep.mubr.f32.mxu0 %v3259
    %3470 = vmatmul.mubr.f32.gmra.mxu0 %v3229
    %v3471 = vpop.f32.mrf.mxu0
    %v3472 = vadd.f32 0.0, %v3471
    %v3473 = vpop.f32.mrf.mxu0
    %3474 = vdwg.mxu0
    %3475 = vmatprep.subr.mxu0 0.0
    %3476 = vmatpush1.msra.mxu0 %v3389
    %3477 = vmatprep.subr.mxu0 0.0
    %3478 = vmatpush1.msra.mxu0 %v3388
    %3479 = vmatprep.subr.mxu0 0.0
    %3480 = vmatpush1.msra.mxu0 %v3387
    %3481 = vmatprep.subr.mxu0 0.0
    %3482 = vmatpush1.msra.mxu0 %v3386
    %3483 = vmatprep.subr.mxu0 0.0
    %3484 = vmatpush1.msra.mxu0 %v3385
    %3485 = vmatprep.subr.mxu0 0.0
    %3486 = vmatpush1.msra.mxu0 %v3384
    %3487 = vmatprep.subr.mxu0 0.0
    %3488 = vmatpush1.msra.mxu0 %v3383
    %3489 = vmatprep.subr.mxu0 0.0
    %3490 = vmatpush1.msra.mxu0 %v3382
    %3491 = vmatprep.subr.mxu0 0.0
    %3492 = vmatpush1.msra.mxu0 %v3381
    %3493 = vmatprep.subr.mxu0 0.0
    %3494 = vmatpush1.msra.mxu0 %v3380
    %3495 = vmatprep.subr.mxu0 0.0
    %3496 = vmatpush1.msra.mxu0 %v3379
    %3497 = vmatprep.subr.mxu0 0.0
    %3498 = vmatpush1.msra.mxu0 %v3378
    %3499 = vmatprep.subr.mxu0 0.0
    %3500 = vmatpush1.msra.mxu0 %v3377
    %3501 = vmatprep.subr.mxu0 0.0
    %3502 = vmatpush1.msra.mxu0 %v3376
    %3503 = vmatprep.subr.mxu0 0.0
    %3504 = vmatpush1.msra.mxu0 %v3375
    %3505 = vmatprep.subr.mxu0 0.0
    %3506 = vmatpush1.msra.mxu0 %v3374
    %3507 = vmatprep.subr.mxu0 0.0
    %3508 = vmatpush2.msra.mxu0 0.0
    %3509 = vmatprep.subr.mxu0 0.0
    %3510 = vmatpush2.msra.mxu0 0.0
    %3511 = vmatprep.subr.mxu0 0.0
    %3512 = vmatpush2.msra.mxu0 0.0
    %3513 = vmatprep.subr.mxu0 0.0
    %3514 = vmatpush2.msra.mxu0 0.0
    %3515 = vmatprep.subr.mxu0 0.0
    %3516 = vmatpush2.msra.mxu0 0.0
    %3517 = vmatprep.subr.mxu0 0.0
    %3518 = vmatpush2.msra.mxu0 0.0
    %3519 = vmatprep.subr.mxu0 0.0
    %3520 = vmatpush2.msra.mxu0 0.0
    %3521 = vmatprep.subr.mxu0 0.0
    %3522 = vmatpush2.msra.mxu0 0.0
    %3523 = vmatprep.subr.mxu0 0.0
    %3524 = vmatpush2.msra.mxu0 0.0
    %3525 = vmatprep.subr.mxu0 0.0
    %3526 = vmatpush2.msra.mxu0 0.0
    %3527 = vmatprep.subr.mxu0 0.0
    %3528 = vmatpush2.msra.mxu0 0.0
    %3529 = vmatprep.subr.mxu0 0.0
    %3530 = vmatpush2.msra.mxu0 0.0
    %3531 = vmatprep.subr.mxu0 0.0
    %3532 = vmatpush2.msra.mxu0 0.0
    %3533 = vmatprep.subr.mxu0 0.0
    %3534 = vmatpush2.msra.mxu0 0.0
    %3535 = vmatprep.subr.mxu0 0.0
    %3536 = vmatpush2.msra.mxu0 0.0
    %3537 = vmatprep.subr.mxu0 0.0
    %3538 = vmatpush2.msra.mxu0 0.0
    %3539 = vmatprep.mubr.f32.mxu0 0.0
    %3540 = vmatmul.mubr.f32.gmra.mxu0 %v3274
    %v3541 = vpop.f32.mrf.mxu0
    %v3542 = vadd.f32 %v3457, %v3541
    %v3543 = vpop.f32.mrf.mxu0
    %3544 = vmatprep.mubr.f32.mxu0 0.0
    %3545 = vmatmul.mubr.f32.gmra.mxu0 %v3277
    %v3546 = vpop.f32.mrf.mxu0
    %v3547 = vadd.f32 %v3462, %v3546
    %v3548 = vpop.f32.mrf.mxu0
    %3549 = vmatprep.mubr.f32.mxu0 0.0
    %3550 = vmatmul.mubr.f32.gmra.mxu0 %v3280
    %v3551 = vpop.f32.mrf.mxu0
    %v3552 = vadd.f32 %v3467, %v3551
    %v3553 = vpop.f32.mrf.mxu0
    %3554 = vmatprep.mubr.f32.mxu0 0.0
    %3555 = vmatmul.mubr.f32.gmra.mxu0 %v3283
    %v3556 = vpop.f32.mrf.mxu0
    %v3557 = vadd.f32 %v3472, %v3556
    %v3558 = vpop.f32.mrf.mxu0
    %3559 = vdwg.mxu0
    %3560 = vmatprep.subr.mxu0 0.0
    %3561 = vmatpush1.msra.mxu0 %v3308
    %3562 = vmatprep.subr.mxu0 0.0
    %3563 = vmatpush1.msra.mxu0 %v3307
    %3564 = vmatprep.subr.mxu0 0.0
    %3565 = vmatpush1.msra.mxu0 %v3306
    %3566 = vmatprep.subr.mxu0 0.0
    %3567 = vmatpush1.msra.mxu0 %v3305
    %3568 = vmatprep.subr.mxu0 0.0
    %3569 = vmatpush1.msra.mxu0 %v3304
    %3570 = vmatprep.subr.mxu0 0.0
    %3571 = vmatpush1.msra.mxu0 %v3303
    %3572 = vmatprep.subr.mxu0 0.0
    %3573 = vmatpush1.msra.mxu0 %v3302
    %3574 = vmatprep.subr.mxu0 0.0
    %3575 = vmatpush1.msra.mxu0 %v3301
    %3576 = vmatprep.subr.mxu0 0.0
    %3577 = vmatpush1.msra.mxu0 %v3300
    %3578 = vmatprep.subr.mxu0 0.0
    %3579 = vmatpush1.msra.mxu0 %v3299
    %3580 = vmatprep.subr.mxu0 0.0
    %3581 = vmatpush1.msra.mxu0 %v3298
    %3582 = vmatprep.subr.mxu0 0.0
    %3583 = vmatpush1.msra.mxu0 %v3297
    %3584 = vmatprep.subr.mxu0 0.0
    %3585 = vmatpush1.msra.mxu0 %v3296
    %3586 = vmatprep.subr.mxu0 0.0
    %3587 = vmatpush1.msra.mxu0 %v3295
    %3588 = vmatprep.subr.mxu0 0.0
    %3589 = vmatpush1.msra.mxu0 %v3294
    %3590 = vmatprep.subr.mxu0 0.0
    %3591 = vmatpush1.msra.mxu0 %v3293
    %3592 = vmatprep.subr.mxu0 0.0
    %3593 = vmatpush2.msra.mxu0 %v3324
    %3594 = vmatprep.subr.mxu0 0.0
    %3595 = vmatpush2.msra.mxu0 %v3323
    %3596 = vmatprep.subr.mxu0 0.0
    %3597 = vmatpush2.msra.mxu0 %v3322
    %3598 = vmatprep.subr.mxu0 0.0
    %3599 = vmatpush2.msra.mxu0 %v3321
    %3600 = vmatprep.subr.mxu0 0.0
    %3601 = vmatpush2.msra.mxu0 %v3320
    %3602 = vmatprep.subr.mxu0 0.0
    %3603 = vmatpush2.msra.mxu0 %v3319
    %3604 = vmatprep.subr.mxu0 0.0
    %3605 = vmatpush2.msra.mxu0 %v3318
    %3606 = vmatprep.subr.mxu0 0.0
    %3607 = vmatpush2.msra.mxu0 %v3317
    %3608 = vmatprep.subr.mxu0 0.0
    %3609 = vmatpush2.msra.mxu0 %v3316
    %3610 = vmatprep.subr.mxu0 0.0
    %3611 = vmatpush2.msra.mxu0 %v3315
    %3612 = vmatprep.subr.mxu0 0.0
    %3613 = vmatpush2.msra.mxu0 %v3314
    %3614 = vmatprep.subr.mxu0 0.0
    %3615 = vmatpush2.msra.mxu0 %v3313
    %3616 = vmatprep.subr.mxu0 0.0
    %3617 = vmatpush2.msra.mxu0 %v3312
    %3618 = vmatprep.subr.mxu0 0.0
    %3619 = vmatpush2.msra.mxu0 %v3311
    %3620 = vmatprep.subr.mxu0 0.0
    %3621 = vmatpush2.msra.mxu0 %v3310
    %3622 = vmatprep.subr.mxu0 0.0
    %3623 = vmatpush2.msra.mxu0 %v3309
    %3624 = vmatprep.mubr.f32.mxu0 %v3247
    %3625 = vmatmul.mubr.f32.gmra.mxu0 %v3221
    %v3626 = vpop.f32.mrf.mxu0
    %v3627 = vadd.f32 %v3542, %v3626
    %v3628 = vpop.f32.mrf.mxu0
    %3629 = vmatprep.mubr.f32.mxu0 %v3250
    %3630 = vmatmul.mubr.f32.gmra.mxu0 %v3223
    %v3631 = vpop.f32.mrf.mxu0
    %v3632 = vadd.f32 %v3547, %v3631
    %v3633 = vpop.f32.mrf.mxu0
    %3634 = vmatprep.mubr.f32.mxu0 %v3253
    %3635 = vmatmul.mubr.f32.gmra.mxu0 %v3225
    %v3636 = vpop.f32.mrf.mxu0
    %v3637 = vadd.f32 %v3552, %v3636
    %v3638 = vpop.f32.mrf.mxu0
    %3639 = vmatprep.mubr.f32.mxu0 %v3256
    %3640 = vmatmul.mubr.f32.gmra.mxu0 %v3227
    %v3641 = vpop.f32.mrf.mxu0
    %v3642 = vadd.f32 %v3557, %v3641
    %v3643 = vpop.f32.mrf.mxu0
    %3644 = vdwg.mxu0
    %3645 = vmatprep.subr.mxu0 0.0
    %3646 = vmatpush1.msra.mxu0 %v3340
    %3647 = vmatprep.subr.mxu0 0.0
    %3648 = vmatpush1.msra.mxu0 %v3339
    %3649 = vmatprep.subr.mxu0 0.0
    %3650 = vmatpush1.msra.mxu0 %v3338
    %3651 = vmatprep.subr.mxu0 0.0
    %3652 = vmatpush1.msra.mxu0 %v3337
    %3653 = vmatprep.subr.mxu0 0.0
    %3654 = vmatpush1.msra.mxu0 %v3336
    %3655 = vmatprep.subr.mxu0 0.0
    %3656 = vmatpush1.msra.mxu0 %v3335
    %3657 = vmatprep.subr.mxu0 0.0
    %3658 = vmatpush1.msra.mxu0 %v3334
    %3659 = vmatprep.subr.mxu0 0.0
    %3660 = vmatpush1.msra.mxu0 %v3333
    %3661 = vmatprep.subr.mxu0 0.0
    %3662 = vmatpush1.msra.mxu0 %v3332
    %3663 = vmatprep.subr.mxu0 0.0
    %3664 = vmatpush1.msra.mxu0 %v3331
    %3665 = vmatprep.subr.mxu0 0.0
    %3666 = vmatpush1.msra.mxu0 %v3330
    %3667 = vmatprep.subr.mxu0 0.0
    %3668 = vmatpush1.msra.mxu0 %v3329
    %3669 = vmatprep.subr.mxu0 0.0
    %3670 = vmatpush1.msra.mxu0 %v3328
    %3671 = vmatprep.subr.mxu0 0.0
    %3672 = vmatpush1.msra.mxu0 %v3327
    %3673 = vmatprep.subr.mxu0 0.0
    %3674 = vmatpush1.msra.mxu0 %v3326
    %3675 = vmatprep.subr.mxu0 0.0
    %3676 = vmatpush1.msra.mxu0 %v3325
    %3677 = vmatprep.subr.mxu0 0.0
    %3678 = vmatpush2.msra.mxu0 0.0
    %3679 = vmatprep.subr.mxu0 0.0
    %3680 = vmatpush2.msra.mxu0 0.0
    %3681 = vmatprep.subr.mxu0 0.0
    %3682 = vmatpush2.msra.mxu0 0.0
    %3683 = vmatprep.subr.mxu0 0.0
    %3684 = vmatpush2.msra.mxu0 0.0
    %3685 = vmatprep.subr.mxu0 0.0
    %3686 = vmatpush2.msra.mxu0 0.0
    %3687 = vmatprep.subr.mxu0 0.0
    %3688 = vmatpush2.msra.mxu0 0.0
    %3689 = vmatprep.subr.mxu0 0.0
    %3690 = vmatpush2.msra.mxu0 0.0
    %3691 = vmatprep.subr.mxu0 0.0
    %3692 = vmatpush2.msra.mxu0 0.0
    %3693 = vmatprep.subr.mxu0 0.0
    %3694 = vmatpush2.msra.mxu0 0.0
    %3695 = vmatprep.subr.mxu0 0.0
    %3696 = vmatpush2.msra.mxu0 0.0
    %3697 = vmatprep.subr.mxu0 0.0
    %3698 = vmatpush2.msra.mxu0 0.0
    %3699 = vmatprep.subr.mxu0 0.0
    %3700 = vmatpush2.msra.mxu0 0.0
    %3701 = vmatprep.subr.mxu0 0.0
    %3702 = vmatpush2.msra.mxu0 0.0
    %3703 = vmatprep.subr.mxu0 0.0
    %3704 = vmatpush2.msra.mxu0 0.0
    %3705 = vmatprep.subr.mxu0 0.0
    %3706 = vmatpush2.msra.mxu0 0.0
    %3707 = vmatprep.subr.mxu0 0.0
    %3708 = vmatpush2.msra.mxu0 0.0
    %3709 = vmatprep.mubr.f32.mxu0 0.0
    %3710 = vmatmul.mubr.f32.gmra.mxu0 %v3271
    %v3711 = vpop.f32.mrf.mxu0
    %v3712 = vadd.f32 %v3627, %v3711
    %v3713 = vpop.f32.mrf.mxu0
    %3714 = vmatprep.mubr.f32.mxu0 0.0
    %3715 = vmatmul.mubr.f32.gmra.mxu0 %v3274
    %v3716 = vpop.f32.mrf.mxu0
    %v3717 = vadd.f32 %v3632, %v3716
    %v3718 = vpop.f32.mrf.mxu0
    %3719 = vmatprep.mubr.f32.mxu0 0.0
    %3720 = vmatmul.mubr.f32.gmra.mxu0 %v3277
    %v3721 = vpop.f32.mrf.mxu0
    %v3722 = vadd.f32 %v3637, %v3721
    %v3723 = vpop.f32.mrf.mxu0
    %3724 = vmatprep.mubr.f32.mxu0 0.0
    %3725 = vmatmul.mubr.f32.gmra.mxu0 %v3280
    %v3726 = vpop.f32.mrf.mxu0
    %v3727 = vadd.f32 %v3642, %v3726
    %v3728 = vpop.f32.mrf.mxu0
    %3729 = vdwg.mxu0
    %s3730 = scalar_lea.vmem [#allocation12], 768
    %v3731 = vld [vmem:[%s3730] sm:$0xff]
    %v3732 = vld [vmem:[%s3730 + $0x8] sm:$0xff]
    %v3733 = vld [vmem:[%s3730 + $0x10] sm:$0xff]
    %v3734 = vld [vmem:[%s3730 + $0x18] sm:$0xff]
    %v3735 = vld [vmem:[%s3730 + $0x20] sm:$0xff]
    %v3736 = vld [vmem:[%s3730 + $0x28] sm:$0xff]
    %v3737 = vld [vmem:[%s3730 + $0x30] sm:$0xff]
    %v3738 = vld [vmem:[%s3730 + $0x38] sm:$0xff]
    %v3739 = vld [vmem:[%s3730 + $0x40] sm:$0xff]
    %v3740 = vld [vmem:[%s3730 + $0x48] sm:$0xff]
    %v3741 = vld [vmem:[%s3730 + $0x50] sm:$0xff]
    %v3742 = vld [vmem:[%s3730 + $0x58] sm:$0xff]
    %v3743 = vld [vmem:[%s3730 + $0x60] sm:$0xff]
    %v3744 = vld [vmem:[%s3730 + $0x68] sm:$0xff]
    %v3745 = vld [vmem:[%s3730 + $0x70] sm:$0xff]
    %v3746 = vld [vmem:[%s3730 + $0x78] sm:$0xff]
    %v3747 = vld [vmem:[%s3730 + $0x80] sm:$0xff]
    %v3748 = vld [vmem:[%s3730 + $0x88] sm:$0xff]
    %v3749 = vld [vmem:[%s3730 + $0x90] sm:$0xff]
    %v3750 = vld [vmem:[%s3730 + $0x98] sm:$0xff]
    %v3751 = vld [vmem:[%s3730 + $0xa0] sm:$0xff]
    %v3752 = vld [vmem:[%s3730 + $0xa8] sm:$0xff]
    %v3753 = vld [vmem:[%s3730 + $0xb0] sm:$0xff]
    %v3754 = vld [vmem:[%s3730 + $0xb8] sm:$0xff]
    %v3755 = vld [vmem:[%s3730 + $0xc0] sm:$0xff]
    %v3756 = vld [vmem:[%s3730 + $0xc8] sm:$0xff]
    %v3757 = vld [vmem:[%s3730 + $0xd0] sm:$0xff]
    %v3758 = vld [vmem:[%s3730 + $0xd8] sm:$0xff]
    %v3759 = vld [vmem:[%s3730 + $0xe0] sm:$0xff]
    %v3760 = vld [vmem:[%s3730 + $0xe8] sm:$0xff]
    %v3761 = vld [vmem:[%s3730 + $0xf0] sm:$0xff]
    %v3762 = vld [vmem:[%s3730 + $0xf8] sm:$0xff]
    %v3763 = vld [vmem:[%s3730 + $0x100] sm:$0xff]
    %v3764 = vld [vmem:[%s3730 + $0x108] sm:$0xff]
    %v3765 = vld [vmem:[%s3730 + $0x110] sm:$0xff]
    %v3766 = vld [vmem:[%s3730 + $0x118] sm:$0xff]
    %v3767 = vld [vmem:[%s3730 + $0x120] sm:$0xff]
    %v3768 = vld [vmem:[%s3730 + $0x128] sm:$0xff]
    %v3769 = vld [vmem:[%s3730 + $0x130] sm:$0xff]
    %v3770 = vld [vmem:[%s3730 + $0x138] sm:$0xff]
    %v3771 = vld [vmem:[%s3730 + $0x140] sm:$0xff]
    %v3772 = vld [vmem:[%s3730 + $0x148] sm:$0xff]
    %v3773 = vld [vmem:[%s3730 + $0x150] sm:$0xff]
    %v3774 = vld [vmem:[%s3730 + $0x158] sm:$0xff]
    %v3775 = vld [vmem:[%s3730 + $0x160] sm:$0xff]
    %v3776 = vld [vmem:[%s3730 + $0x168] sm:$0xff]
    %v3777 = vld [vmem:[%s3730 + $0x170] sm:$0xff]
    %v3778 = vld [vmem:[%s3730 + $0x178] sm:$0xff]
    %3779 = vmatprep.subr.mxu0 0.0
    %3780 = vmatpush1.msra.mxu0 %v3746
    %3781 = vmatprep.subr.mxu0 0.0
    %3782 = vmatpush1.msra.mxu0 %v3745
    %3783 = vmatprep.subr.mxu0 0.0
    %3784 = vmatpush1.msra.mxu0 %v3744
    %3785 = vmatprep.subr.mxu0 0.0
    %3786 = vmatpush1.msra.mxu0 %v3743
    %3787 = vmatprep.subr.mxu0 0.0
    %3788 = vmatpush1.msra.mxu0 %v3742
    %3789 = vmatprep.subr.mxu0 0.0
    %3790 = vmatpush1.msra.mxu0 %v3741
    %3791 = vmatprep.subr.mxu0 0.0
    %3792 = vmatpush1.msra.mxu0 %v3740
    %3793 = vmatprep.subr.mxu0 0.0
    %3794 = vmatpush1.msra.mxu0 %v3739
    %3795 = vmatprep.subr.mxu0 0.0
    %3796 = vmatpush1.msra.mxu0 %v3738
    %3797 = vmatprep.subr.mxu0 0.0
    %3798 = vmatpush1.msra.mxu0 %v3737
    %3799 = vmatprep.subr.mxu0 0.0
    %3800 = vmatpush1.msra.mxu0 %v3736
    %3801 = vmatprep.subr.mxu0 0.0
    %3802 = vmatpush1.msra.mxu0 %v3735
    %3803 = vmatprep.subr.mxu0 0.0
    %3804 = vmatpush1.msra.mxu0 %v3734
    %3805 = vmatprep.subr.mxu0 0.0
    %3806 = vmatpush1.msra.mxu0 %v3733
    %3807 = vmatprep.subr.mxu0 0.0
    %3808 = vmatpush1.msra.mxu0 %v3732
    %3809 = vmatprep.subr.mxu0 0.0
    %3810 = vmatpush1.msra.mxu0 %v3731
    %3811 = vmatprep.subr.mxu0 0.0
    %3812 = vmatpush2.msra.mxu0 %v3762
    %3813 = vmatprep.subr.mxu0 0.0
    %3814 = vmatpush2.msra.mxu0 %v3761
    %3815 = vmatprep.subr.mxu0 0.0
    %3816 = vmatpush2.msra.mxu0 %v3760
    %3817 = vmatprep.subr.mxu0 0.0
    %3818 = vmatpush2.msra.mxu0 %v3759
    %3819 = vmatprep.subr.mxu0 0.0
    %3820 = vmatpush2.msra.mxu0 %v3758
    %3821 = vmatprep.subr.mxu0 0.0
    %3822 = vmatpush2.msra.mxu0 %v3757
    %3823 = vmatprep.subr.mxu0 0.0
    %3824 = vmatpush2.msra.mxu0 %v3756
    %3825 = vmatprep.subr.mxu0 0.0
    %3826 = vmatpush2.msra.mxu0 %v3755
    %3827 = vmatprep.subr.mxu0 0.0
    %3828 = vmatpush2.msra.mxu0 %v3754
    %3829 = vmatprep.subr.mxu0 0.0
    %3830 = vmatpush2.msra.mxu0 %v3753
    %3831 = vmatprep.subr.mxu0 0.0
    %3832 = vmatpush2.msra.mxu0 %v3752
    %3833 = vmatprep.subr.mxu0 0.0
    %3834 = vmatpush2.msra.mxu0 %v3751
    %3835 = vmatprep.subr.mxu0 0.0
    %3836 = vmatpush2.msra.mxu0 %v3750
    %3837 = vmatprep.subr.mxu0 0.0
    %3838 = vmatpush2.msra.mxu0 %v3749
    %3839 = vmatprep.subr.mxu0 0.0
    %3840 = vmatpush2.msra.mxu0 %v3748
    %3841 = vmatprep.subr.mxu0 0.0
    %3842 = vmatpush2.msra.mxu0 %v3747
    %3843 = vmatprep.mubr.f32.mxu0 %v3253
    %3844 = vmatmul.mubr.f32.gmra.mxu0 %v3225
    %v3845 = vpop.f32.mrf.mxu0
    %v3846 = vadd.f32 0.0, %v3845
    %v3847 = vpop.f32.mrf.mxu0
    %3848 = vmatprep.mubr.f32.mxu0 %v3256
    %3849 = vmatmul.mubr.f32.gmra.mxu0 %v3227
    %v3850 = vpop.f32.mrf.mxu0
    %v3851 = vadd.f32 0.0, %v3850
    %v3852 = vpop.f32.mrf.mxu0
    %3853 = vmatprep.mubr.f32.mxu0 %v3259
    %3854 = vmatmul.mubr.f32.gmra.mxu0 %v3229
    %v3855 = vpop.f32.mrf.mxu0
    %v3856 = vadd.f32 0.0, %v3855
    %v3857 = vpop.f32.mrf.mxu0
    %3858 = vmatprep.mubr.f32.mxu0 %v3262
    %3859 = vmatmul.mubr.f32.gmra.mxu0 %v3231
    %v3860 = vpop.f32.mrf.mxu0
    %v3861 = vadd.f32 0.0, %v3860
    %v3862 = vpop.f32.mrf.mxu0
    %3863 = vdwg.mxu0
    %3864 = vmatprep.subr.mxu0 0.0
    %3865 = vmatpush1.msra.mxu0 %v3778
    %3866 = vmatprep.subr.mxu0 0.0
    %3867 = vmatpush1.msra.mxu0 %v3777
    %3868 = vmatprep.subr.mxu0 0.0
    %3869 = vmatpush1.msra.mxu0 %v3776
    %3870 = vmatprep.subr.mxu0 0.0
    %3871 = vmatpush1.msra.mxu0 %v3775
    %3872 = vmatprep.subr.mxu0 0.0
    %3873 = vmatpush1.msra.mxu0 %v3774
    %3874 = vmatprep.subr.mxu0 0.0
    %3875 = vmatpush1.msra.mxu0 %v3773
    %3876 = vmatprep.subr.mxu0 0.0
    %3877 = vmatpush1.msra.mxu0 %v3772
    %3878 = vmatprep.subr.mxu0 0.0
    %3879 = vmatpush1.msra.mxu0 %v3771
    %3880 = vmatprep.subr.mxu0 0.0
    %3881 = vmatpush1.msra.mxu0 %v3770
    %3882 = vmatprep.subr.mxu0 0.0
    %3883 = vmatpush1.msra.mxu0 %v3769
    %3884 = vmatprep.subr.mxu0 0.0
    %3885 = vmatpush1.msra.mxu0 %v3768
    %3886 = vmatprep.subr.mxu0 0.0
    %3887 = vmatpush1.msra.mxu0 %v3767
    %3888 = vmatprep.subr.mxu0 0.0
    %3889 = vmatpush1.msra.mxu0 %v3766
    %3890 = vmatprep.subr.mxu0 0.0
    %3891 = vmatpush1.msra.mxu0 %v3765
    %3892 = vmatprep.subr.mxu0 0.0
    %3893 = vmatpush1.msra.mxu0 %v3764
    %3894 = vmatprep.subr.mxu0 0.0
    %3895 = vmatpush1.msra.mxu0 %v3763
    %3896 = vmatprep.subr.mxu0 0.0
    %3897 = vmatpush2.msra.mxu0 0.0
    %3898 = vmatprep.subr.mxu0 0.0
    %3899 = vmatpush2.msra.mxu0 0.0
    %3900 = vmatprep.subr.mxu0 0.0
    %3901 = vmatpush2.msra.mxu0 0.0
    %3902 = vmatprep.subr.mxu0 0.0
    %3903 = vmatpush2.msra.mxu0 0.0
    %3904 = vmatprep.subr.mxu0 0.0
    %3905 = vmatpush2.msra.mxu0 0.0
    %3906 = vmatprep.subr.mxu0 0.0
    %3907 = vmatpush2.msra.mxu0 0.0
    %3908 = vmatprep.subr.mxu0 0.0
    %3909 = vmatpush2.msra.mxu0 0.0
    %3910 = vmatprep.subr.mxu0 0.0
    %3911 = vmatpush2.msra.mxu0 0.0
    %3912 = vmatprep.subr.mxu0 0.0
    %3913 = vmatpush2.msra.mxu0 0.0
    %3914 = vmatprep.subr.mxu0 0.0
    %3915 = vmatpush2.msra.mxu0 0.0
    %3916 = vmatprep.subr.mxu0 0.0
    %3917 = vmatpush2.msra.mxu0 0.0
    %3918 = vmatprep.subr.mxu0 0.0
    %3919 = vmatpush2.msra.mxu0 0.0
    %3920 = vmatprep.subr.mxu0 0.0
    %3921 = vmatpush2.msra.mxu0 0.0
    %3922 = vmatprep.subr.mxu0 0.0
    %3923 = vmatpush2.msra.mxu0 0.0
    %3924 = vmatprep.subr.mxu0 0.0
    %3925 = vmatpush2.msra.mxu0 0.0
    %3926 = vmatprep.subr.mxu0 0.0
    %3927 = vmatpush2.msra.mxu0 0.0
    %3928 = vmatprep.mubr.f32.mxu0 0.0
    %3929 = vmatmul.mubr.f32.gmra.mxu0 %v3277
    %v3930 = vpop.f32.mrf.mxu0
    %v3931 = vadd.f32 %v3846, %v3930
    %v3932 = vpop.f32.mrf.mxu0
    %3933 = vmatprep.mubr.f32.mxu0 0.0
    %3934 = vmatmul.mubr.f32.gmra.mxu0 %v3280
    %v3935 = vpop.f32.mrf.mxu0
    %v3936 = vadd.f32 %v3851, %v3935
    %v3937 = vpop.f32.mrf.mxu0
    %3938 = vmatprep.mubr.f32.mxu0 0.0
    %3939 = vmatmul.mubr.f32.gmra.mxu0 %v3283
    %v3940 = vpop.f32.mrf.mxu0
    %v3941 = vadd.f32 %v3856, %v3940
    %v3942 = vpop.f32.mrf.mxu0
    %3943 = vmatprep.mubr.f32.mxu0 0.0
    %3944 = vmatmul.mubr.f32.gmra.mxu0 %v3286
    %v3945 = vpop.f32.mrf.mxu0
    %v3946 = vadd.f32 %v3861, %v3945
    %v3947 = vpop.f32.mrf.mxu0
    %3948 = vdwg.mxu0
    %v3949 = vadd.f32 %v3712, %v3931
    %v3950 = vadd.f32 %v3717, %v3936
    %v3951 = vadd.f32 %v3722, %v3941
    %v3952 = vadd.f32 %v3727, %v3946
    %v3953 = vld [vmem:[%s15] sm:$0x1]
    %v3955 = vlaneseq
    %v3956 = vshrl.u32 %v3955, 7
    %v3957 = vsub.s32 0, %v3956
    %v3958 = vrot.slane %v3953, %v3957
    %v3960 = vadd.f32 %v3949, %v3958
    %v3961 = vadd.f32 %v3950, %v3958
    %v3962 = vadd.f32 %v3951, %v3958
    %v3963 = vadd.f32 %v3952, %v3958
    %v3964 = vmax.f32 %v3960, 0.0
    %v3965 = vmax.f32 %v3961, 0.0
    %v3966 = vmax.f32 %v3962, 0.0
    %v3967 = vmax.f32 %v3963, 0.0
    %v3968 = vld [vmem:[%s4] sm:$0x1]
    %v3970 = vlaneseq
    %v3971 = vshrl.u32 %v3970, 7
    %v3972 = vsub.s32 0, %v3971
    %v3973 = vrot.slane %v3968, %v3972
    %v3975 = vmul.f32 %v3964, %v3973
    %v3976 = vmul.f32 %v3965, %v3973
    %v3977 = vmul.f32 %v3966, %v3973
    %v3978 = vmul.f32 %v3967, %v3973
    %3979 = vst [vmem:[%s174 + $0x1] sm:$0xff] %v3975
    %3980 = vst [vmem:[%s174 + $0x11] sm:$0xff] %v3976
    %3981 = vst [vmem:[%s174 + $0x21] sm:$0xff] %v3977
    %3982 = vst [vmem:[%s174 + $0x31] sm:$0xff] %v3978
    %v3983 = vld [vmem:[#allocation2] sm:$0xff]
    %v3984 = vld [vmem:[#allocation2 + $0x8] sm:$0x3]
    %v3985 = vld [vmem:[#allocation2 + $0x10] sm:$0xff]
    %v3986 = vld [vmem:[#allocation2 + $0x18] sm:$0x3]
    %v3987 = vld [vmem:[#allocation2 + $0x20] sm:$0xff]
    %v3988 = vld [vmem:[#allocation2 + $0x28] sm:$0x3]
    %v3989 = vld [vmem:[#allocation2 + $0x30] sm:$0xff]
    %v3990 = vld [vmem:[#allocation2 + $0x38] sm:$0x3]
    %v3991 = vld [vmem:[#allocation2 + $0x40] sm:$0xff]
    %v3992 = vld [vmem:[#allocation2 + $0x48] sm:$0x3]
    %v3993 = vld [vmem:[#allocation2 + $0x50] sm:$0xff]
    %v3994 = vld [vmem:[#allocation2 + $0x58] sm:$0x3]
    %v4007 = vrot.slane %v3983, 1
    %v4008 = vrot.slane %v3984, 1
    %v4009 = vsel %vm203, %v4007, %v4008
    %v4010 = vrot.slane %v3985, 1
    %v4011 = vrot.slane %v3986, 1
    %v4012 = vsel %vm203, %v4010, %v4011
    %v4013 = vrot.slane %v3987, 1
    %v4014 = vrot.slane %v3988, 1
    %v4015 = vsel %vm203, %v4013, %v4014
    %v4016 = vrot.slane %v3989, 1
    %v4017 = vrot.slane %v3990, 1
    %v4018 = vsel %vm203, %v4016, %v4017
    %v4019 = vrot.slane %v3991, 1
    %v4020 = vrot.slane %v3992, 1
    %v4021 = vsel %vm203, %v4019, %v4020
    %v4022 = vrot.slane %v3993, 1
    %v4023 = vrot.slane %v3994, 1
    %v4024 = vsel %vm203, %v4022, %v4023
    %v4031 = vrot.slane %v3983, 2
    %v4032 = vrot.slane %v3984, 2
    %v4033 = vsel %vm228, %v4031, %v4032
    %v4034 = vrot.slane %v3985, 2
    %v4035 = vrot.slane %v3986, 2
    %v4036 = vsel %vm228, %v4034, %v4035
    %v4037 = vrot.slane %v3987, 2
    %v4038 = vrot.slane %v3988, 2
    %v4039 = vsel %vm228, %v4037, %v4038
    %v4040 = vrot.slane %v3989, 2
    %v4041 = vrot.slane %v3990, 2
    %v4042 = vsel %vm228, %v4040, %v4041
    %v4043 = vrot.slane %v3991, 2
    %v4044 = vrot.slane %v3992, 2
    %v4045 = vsel %vm228, %v4043, %v4044
    %v4046 = vrot.slane %v3993, 2
    %v4047 = vrot.slane %v3994, 2
    %v4048 = vsel %vm228, %v4046, %v4047
    %v4055 = vld [vmem:[#allocation14] sm:$0xff]
    %v4056 = vld [vmem:[#allocation14 + $0x8] sm:$0xff]
    %v4057 = vld [vmem:[#allocation14 + $0x10] sm:$0xff]
    %v4058 = vld [vmem:[#allocation14 + $0x18] sm:$0xff]
    %v4059 = vld [vmem:[#allocation14 + $0x20] sm:$0xff]
    %v4060 = vld [vmem:[#allocation14 + $0x28] sm:$0xff]
    %v4061 = vld [vmem:[#allocation14 + $0x30] sm:$0xff]
    %v4062 = vld [vmem:[#allocation14 + $0x38] sm:$0xff]
    %v4063 = vld [vmem:[#allocation14 + $0x40] sm:$0xff]
    %v4064 = vld [vmem:[#allocation14 + $0x48] sm:$0xff]
    %v4065 = vld [vmem:[#allocation14 + $0x50] sm:$0xff]
    %v4066 = vld [vmem:[#allocation14 + $0x58] sm:$0xff]
    %v4067 = vld [vmem:[#allocation14 + $0x60] sm:$0xff]
    %v4068 = vld [vmem:[#allocation14 + $0x68] sm:$0xff]
    %v4069 = vld [vmem:[#allocation14 + $0x70] sm:$0xff]
    %v4070 = vld [vmem:[#allocation14 + $0x78] sm:$0xff]
    %v4071 = vld [vmem:[#allocation14 + $0x80] sm:$0xff]
    %v4072 = vld [vmem:[#allocation14 + $0x88] sm:$0xff]
    %v4073 = vld [vmem:[#allocation14 + $0x90] sm:$0xff]
    %v4074 = vld [vmem:[#allocation14 + $0x98] sm:$0xff]
    %v4075 = vld [vmem:[#allocation14 + $0xa0] sm:$0xff]
    %v4076 = vld [vmem:[#allocation14 + $0xa8] sm:$0xff]
    %v4077 = vld [vmem:[#allocation14 + $0xb0] sm:$0xff]
    %v4078 = vld [vmem:[#allocation14 + $0xb8] sm:$0xff]
    %v4079 = vld [vmem:[#allocation14 + $0xc0] sm:$0xff]
    %v4080 = vld [vmem:[#allocation14 + $0xc8] sm:$0xff]
    %v4081 = vld [vmem:[#allocation14 + $0xd0] sm:$0xff]
    %v4082 = vld [vmem:[#allocation14 + $0xd8] sm:$0xff]
    %v4083 = vld [vmem:[#allocation14 + $0xe0] sm:$0xff]
    %v4084 = vld [vmem:[#allocation14 + $0xe8] sm:$0xff]
    %v4085 = vld [vmem:[#allocation14 + $0xf0] sm:$0xff]
    %v4086 = vld [vmem:[#allocation14 + $0xf8] sm:$0xff]
    %v4087 = vld [vmem:[#allocation14 + $0x100] sm:$0xff]
    %v4088 = vld [vmem:[#allocation14 + $0x108] sm:$0xff]
    %v4089 = vld [vmem:[#allocation14 + $0x110] sm:$0xff]
    %v4090 = vld [vmem:[#allocation14 + $0x118] sm:$0xff]
    %v4091 = vld [vmem:[#allocation14 + $0x120] sm:$0xff]
    %v4092 = vld [vmem:[#allocation14 + $0x128] sm:$0xff]
    %v4093 = vld [vmem:[#allocation14 + $0x130] sm:$0xff]
    %v4094 = vld [vmem:[#allocation14 + $0x138] sm:$0xff]
    %v4095 = vld [vmem:[#allocation14 + $0x140] sm:$0xff]
    %v4096 = vld [vmem:[#allocation14 + $0x148] sm:$0xff]
    %v4097 = vld [vmem:[#allocation14 + $0x150] sm:$0xff]
    %v4098 = vld [vmem:[#allocation14 + $0x158] sm:$0xff]
    %v4099 = vld [vmem:[#allocation14 + $0x160] sm:$0xff]
    %v4100 = vld [vmem:[#allocation14 + $0x168] sm:$0xff]
    %v4101 = vld [vmem:[#allocation14 + $0x170] sm:$0xff]
    %v4102 = vld [vmem:[#allocation14 + $0x178] sm:$0xff]
    %s4103 = scalar_lea.vmem [#allocation14], 384
    %v4104 = vld [vmem:[%s4103] sm:$0xff]
    %v4105 = vld [vmem:[%s4103 + $0x8] sm:$0xff]
    %v4106 = vld [vmem:[%s4103 + $0x10] sm:$0xff]
    %v4107 = vld [vmem:[%s4103 + $0x18] sm:$0xff]
    %v4108 = vld [vmem:[%s4103 + $0x20] sm:$0xff]
    %v4109 = vld [vmem:[%s4103 + $0x28] sm:$0xff]
    %v4110 = vld [vmem:[%s4103 + $0x30] sm:$0xff]
    %v4111 = vld [vmem:[%s4103 + $0x38] sm:$0xff]
    %v4112 = vld [vmem:[%s4103 + $0x40] sm:$0xff]
    %v4113 = vld [vmem:[%s4103 + $0x48] sm:$0xff]
    %v4114 = vld [vmem:[%s4103 + $0x50] sm:$0xff]
    %v4115 = vld [vmem:[%s4103 + $0x58] sm:$0xff]
    %v4116 = vld [vmem:[%s4103 + $0x60] sm:$0xff]
    %v4117 = vld [vmem:[%s4103 + $0x68] sm:$0xff]
    %v4118 = vld [vmem:[%s4103 + $0x70] sm:$0xff]
    %v4119 = vld [vmem:[%s4103 + $0x78] sm:$0xff]
    %v4120 = vld [vmem:[%s4103 + $0x80] sm:$0xff]
    %v4121 = vld [vmem:[%s4103 + $0x88] sm:$0xff]
    %v4122 = vld [vmem:[%s4103 + $0x90] sm:$0xff]
    %v4123 = vld [vmem:[%s4103 + $0x98] sm:$0xff]
    %v4124 = vld [vmem:[%s4103 + $0xa0] sm:$0xff]
    %v4125 = vld [vmem:[%s4103 + $0xa8] sm:$0xff]
    %v4126 = vld [vmem:[%s4103 + $0xb0] sm:$0xff]
    %v4127 = vld [vmem:[%s4103 + $0xb8] sm:$0xff]
    %v4128 = vld [vmem:[%s4103 + $0xc0] sm:$0xff]
    %v4129 = vld [vmem:[%s4103 + $0xc8] sm:$0xff]
    %v4130 = vld [vmem:[%s4103 + $0xd0] sm:$0xff]
    %v4131 = vld [vmem:[%s4103 + $0xd8] sm:$0xff]
    %v4132 = vld [vmem:[%s4103 + $0xe0] sm:$0xff]
    %v4133 = vld [vmem:[%s4103 + $0xe8] sm:$0xff]
    %v4134 = vld [vmem:[%s4103 + $0xf0] sm:$0xff]
    %v4135 = vld [vmem:[%s4103 + $0xf8] sm:$0xff]
    %v4136 = vld [vmem:[%s4103 + $0x100] sm:$0xff]
    %v4137 = vld [vmem:[%s4103 + $0x108] sm:$0xff]
    %v4138 = vld [vmem:[%s4103 + $0x110] sm:$0xff]
    %v4139 = vld [vmem:[%s4103 + $0x118] sm:$0xff]
    %v4140 = vld [vmem:[%s4103 + $0x120] sm:$0xff]
    %v4141 = vld [vmem:[%s4103 + $0x128] sm:$0xff]
    %v4142 = vld [vmem:[%s4103 + $0x130] sm:$0xff]
    %v4143 = vld [vmem:[%s4103 + $0x138] sm:$0xff]
    %v4144 = vld [vmem:[%s4103 + $0x140] sm:$0xff]
    %v4145 = vld [vmem:[%s4103 + $0x148] sm:$0xff]
    %v4146 = vld [vmem:[%s4103 + $0x150] sm:$0xff]
    %v4147 = vld [vmem:[%s4103 + $0x158] sm:$0xff]
    %v4148 = vld [vmem:[%s4103 + $0x160] sm:$0xff]
    %v4149 = vld [vmem:[%s4103 + $0x168] sm:$0xff]
    %v4150 = vld [vmem:[%s4103 + $0x170] sm:$0xff]
    %v4151 = vld [vmem:[%s4103 + $0x178] sm:$0xff]
    %4152 = vmatprep.subr.mxu0 0.0
    %4153 = vmatpush1.msra.mxu0 %v4119
    %4154 = vmatprep.subr.mxu0 0.0
    %4155 = vmatpush1.msra.mxu0 %v4118
    %4156 = vmatprep.subr.mxu0 0.0
    %4157 = vmatpush1.msra.mxu0 %v4117
    %4158 = vmatprep.subr.mxu0 0.0
    %4159 = vmatpush1.msra.mxu0 %v4116
    %4160 = vmatprep.subr.mxu0 0.0
    %4161 = vmatpush1.msra.mxu0 %v4115
    %4162 = vmatprep.subr.mxu0 0.0
    %4163 = vmatpush1.msra.mxu0 %v4114
    %4164 = vmatprep.subr.mxu0 0.0
    %4165 = vmatpush1.msra.mxu0 %v4113
    %4166 = vmatprep.subr.mxu0 0.0
    %4167 = vmatpush1.msra.mxu0 %v4112
    %4168 = vmatprep.subr.mxu0 0.0
    %4169 = vmatpush1.msra.mxu0 %v4111
    %4170 = vmatprep.subr.mxu0 0.0
    %4171 = vmatpush1.msra.mxu0 %v4110
    %4172 = vmatprep.subr.mxu0 0.0
    %4173 = vmatpush1.msra.mxu0 %v4109
    %4174 = vmatprep.subr.mxu0 0.0
    %4175 = vmatpush1.msra.mxu0 %v4108
    %4176 = vmatprep.subr.mxu0 0.0
    %4177 = vmatpush1.msra.mxu0 %v4107
    %4178 = vmatprep.subr.mxu0 0.0
    %4179 = vmatpush1.msra.mxu0 %v4106
    %4180 = vmatprep.subr.mxu0 0.0
    %4181 = vmatpush1.msra.mxu0 %v4105
    %4182 = vmatprep.subr.mxu0 0.0
    %4183 = vmatpush1.msra.mxu0 %v4104
    %4184 = vmatprep.subr.mxu0 0.0
    %4185 = vmatpush2.msra.mxu0 %v4135
    %4186 = vmatprep.subr.mxu0 0.0
    %4187 = vmatpush2.msra.mxu0 %v4134
    %4188 = vmatprep.subr.mxu0 0.0
    %4189 = vmatpush2.msra.mxu0 %v4133
    %4190 = vmatprep.subr.mxu0 0.0
    %4191 = vmatpush2.msra.mxu0 %v4132
    %4192 = vmatprep.subr.mxu0 0.0
    %4193 = vmatpush2.msra.mxu0 %v4131
    %4194 = vmatprep.subr.mxu0 0.0
    %4195 = vmatpush2.msra.mxu0 %v4130
    %4196 = vmatprep.subr.mxu0 0.0
    %4197 = vmatpush2.msra.mxu0 %v4129
    %4198 = vmatprep.subr.mxu0 0.0
    %4199 = vmatpush2.msra.mxu0 %v4128
    %4200 = vmatprep.subr.mxu0 0.0
    %4201 = vmatpush2.msra.mxu0 %v4127
    %4202 = vmatprep.subr.mxu0 0.0
    %4203 = vmatpush2.msra.mxu0 %v4126
    %4204 = vmatprep.subr.mxu0 0.0
    %4205 = vmatpush2.msra.mxu0 %v4125
    %4206 = vmatprep.subr.mxu0 0.0
    %4207 = vmatpush2.msra.mxu0 %v4124
    %4208 = vmatprep.subr.mxu0 0.0
    %4209 = vmatpush2.msra.mxu0 %v4123
    %4210 = vmatprep.subr.mxu0 0.0
    %4211 = vmatpush2.msra.mxu0 %v4122
    %4212 = vmatprep.subr.mxu0 0.0
    %4213 = vmatpush2.msra.mxu0 %v4121
    %4214 = vmatprep.subr.mxu0 0.0
    %4215 = vmatpush2.msra.mxu0 %v4120
    %4216 = vmatprep.mubr.f32.mxu0 %v4012
    %4217 = vmatmul.mubr.f32.gmra.mxu0 %v3985
    %v4218 = vpop.f32.mrf.mxu0
    %v4219 = vadd.f32 0.0, %v4218
    %v4220 = vpop.f32.mrf.mxu0
    %4221 = vmatprep.mubr.f32.mxu0 %v4015
    %4222 = vmatmul.mubr.f32.gmra.mxu0 %v3987
    %v4223 = vpop.f32.mrf.mxu0
    %v4224 = vadd.f32 0.0, %v4223
    %v4225 = vpop.f32.mrf.mxu0
    %4226 = vmatprep.mubr.f32.mxu0 %v4018
    %4227 = vmatmul.mubr.f32.gmra.mxu0 %v3989
    %v4228 = vpop.f32.mrf.mxu0
    %v4229 = vadd.f32 0.0, %v4228
    %v4230 = vpop.f32.mrf.mxu0
    %4231 = vmatprep.mubr.f32.mxu0 %v4021
    %4232 = vmatmul.mubr.f32.gmra.mxu0 %v3991
    %v4233 = vpop.f32.mrf.mxu0
    %v4234 = vadd.f32 0.0, %v4233
    %v4235 = vpop.f32.mrf.mxu0
    %4236 = vdwg.mxu0
    %4237 = vmatprep.subr.mxu0 0.0
    %4238 = vmatpush1.msra.mxu0 %v4151
    %4239 = vmatprep.subr.mxu0 0.0
    %4240 = vmatpush1.msra.mxu0 %v4150
    %4241 = vmatprep.subr.mxu0 0.0
    %4242 = vmatpush1.msra.mxu0 %v4149
    %4243 = vmatprep.subr.mxu0 0.0
    %4244 = vmatpush1.msra.mxu0 %v4148
    %4245 = vmatprep.subr.mxu0 0.0
    %4246 = vmatpush1.msra.mxu0 %v4147
    %4247 = vmatprep.subr.mxu0 0.0
    %4248 = vmatpush1.msra.mxu0 %v4146
    %4249 = vmatprep.subr.mxu0 0.0
    %4250 = vmatpush1.msra.mxu0 %v4145
    %4251 = vmatprep.subr.mxu0 0.0
    %4252 = vmatpush1.msra.mxu0 %v4144
    %4253 = vmatprep.subr.mxu0 0.0
    %4254 = vmatpush1.msra.mxu0 %v4143
    %4255 = vmatprep.subr.mxu0 0.0
    %4256 = vmatpush1.msra.mxu0 %v4142
    %4257 = vmatprep.subr.mxu0 0.0
    %4258 = vmatpush1.msra.mxu0 %v4141
    %4259 = vmatprep.subr.mxu0 0.0
    %4260 = vmatpush1.msra.mxu0 %v4140
    %4261 = vmatprep.subr.mxu0 0.0
    %4262 = vmatpush1.msra.mxu0 %v4139
    %4263 = vmatprep.subr.mxu0 0.0
    %4264 = vmatpush1.msra.mxu0 %v4138
    %4265 = vmatprep.subr.mxu0 0.0
    %4266 = vmatpush1.msra.mxu0 %v4137
    %4267 = vmatprep.subr.mxu0 0.0
    %4268 = vmatpush1.msra.mxu0 %v4136
    %4269 = vmatprep.subr.mxu0 0.0
    %4270 = vmatpush2.msra.mxu0 0.0
    %4271 = vmatprep.subr.mxu0 0.0
    %4272 = vmatpush2.msra.mxu0 0.0
    %4273 = vmatprep.subr.mxu0 0.0
    %4274 = vmatpush2.msra.mxu0 0.0
    %4275 = vmatprep.subr.mxu0 0.0
    %4276 = vmatpush2.msra.mxu0 0.0
    %4277 = vmatprep.subr.mxu0 0.0
    %4278 = vmatpush2.msra.mxu0 0.0
    %4279 = vmatprep.subr.mxu0 0.0
    %4280 = vmatpush2.msra.mxu0 0.0
    %4281 = vmatprep.subr.mxu0 0.0
    %4282 = vmatpush2.msra.mxu0 0.0
    %4283 = vmatprep.subr.mxu0 0.0
    %4284 = vmatpush2.msra.mxu0 0.0
    %4285 = vmatprep.subr.mxu0 0.0
    %4286 = vmatpush2.msra.mxu0 0.0
    %4287 = vmatprep.subr.mxu0 0.0
    %4288 = vmatpush2.msra.mxu0 0.0
    %4289 = vmatprep.subr.mxu0 0.0
    %4290 = vmatpush2.msra.mxu0 0.0
    %4291 = vmatprep.subr.mxu0 0.0
    %4292 = vmatpush2.msra.mxu0 0.0
    %4293 = vmatprep.subr.mxu0 0.0
    %4294 = vmatpush2.msra.mxu0 0.0
    %4295 = vmatprep.subr.mxu0 0.0
    %4296 = vmatpush2.msra.mxu0 0.0
    %4297 = vmatprep.subr.mxu0 0.0
    %4298 = vmatpush2.msra.mxu0 0.0
    %4299 = vmatprep.subr.mxu0 0.0
    %4300 = vmatpush2.msra.mxu0 0.0
    %4301 = vmatprep.mubr.f32.mxu0 0.0
    %4302 = vmatmul.mubr.f32.gmra.mxu0 %v4036
    %v4303 = vpop.f32.mrf.mxu0
    %v4304 = vadd.f32 %v4219, %v4303
    %v4305 = vpop.f32.mrf.mxu0
    %4306 = vmatprep.mubr.f32.mxu0 0.0
    %4307 = vmatmul.mubr.f32.gmra.mxu0 %v4039
    %v4308 = vpop.f32.mrf.mxu0
    %v4309 = vadd.f32 %v4224, %v4308
    %v4310 = vpop.f32.mrf.mxu0
    %4311 = vmatprep.mubr.f32.mxu0 0.0
    %4312 = vmatmul.mubr.f32.gmra.mxu0 %v4042
    %v4313 = vpop.f32.mrf.mxu0
    %v4314 = vadd.f32 %v4229, %v4313
    %v4315 = vpop.f32.mrf.mxu0
    %4316 = vmatprep.mubr.f32.mxu0 0.0
    %4317 = vmatmul.mubr.f32.gmra.mxu0 %v4045
    %v4318 = vpop.f32.mrf.mxu0
    %v4319 = vadd.f32 %v4234, %v4318
    %v4320 = vpop.f32.mrf.mxu0
    %4321 = vdwg.mxu0
    %4322 = vmatprep.subr.mxu0 0.0
    %4323 = vmatpush1.msra.mxu0 %v4070
    %4324 = vmatprep.subr.mxu0 0.0
    %4325 = vmatpush1.msra.mxu0 %v4069
    %4326 = vmatprep.subr.mxu0 0.0
    %4327 = vmatpush1.msra.mxu0 %v4068
    %4328 = vmatprep.subr.mxu0 0.0
    %4329 = vmatpush1.msra.mxu0 %v4067
    %4330 = vmatprep.subr.mxu0 0.0
    %4331 = vmatpush1.msra.mxu0 %v4066
    %4332 = vmatprep.subr.mxu0 0.0
    %4333 = vmatpush1.msra.mxu0 %v4065
    %4334 = vmatprep.subr.mxu0 0.0
    %4335 = vmatpush1.msra.mxu0 %v4064
    %4336 = vmatprep.subr.mxu0 0.0
    %4337 = vmatpush1.msra.mxu0 %v4063
    %4338 = vmatprep.subr.mxu0 0.0
    %4339 = vmatpush1.msra.mxu0 %v4062
    %4340 = vmatprep.subr.mxu0 0.0
    %4341 = vmatpush1.msra.mxu0 %v4061
    %4342 = vmatprep.subr.mxu0 0.0
    %4343 = vmatpush1.msra.mxu0 %v4060
    %4344 = vmatprep.subr.mxu0 0.0
    %4345 = vmatpush1.msra.mxu0 %v4059
    %4346 = vmatprep.subr.mxu0 0.0
    %4347 = vmatpush1.msra.mxu0 %v4058
    %4348 = vmatprep.subr.mxu0 0.0
    %4349 = vmatpush1.msra.mxu0 %v4057
    %4350 = vmatprep.subr.mxu0 0.0
    %4351 = vmatpush1.msra.mxu0 %v4056
    %4352 = vmatprep.subr.mxu0 0.0
    %4353 = vmatpush1.msra.mxu0 %v4055
    %4354 = vmatprep.subr.mxu0 0.0
    %4355 = vmatpush2.msra.mxu0 %v4086
    %4356 = vmatprep.subr.mxu0 0.0
    %4357 = vmatpush2.msra.mxu0 %v4085
    %4358 = vmatprep.subr.mxu0 0.0
    %4359 = vmatpush2.msra.mxu0 %v4084
    %4360 = vmatprep.subr.mxu0 0.0
    %4361 = vmatpush2.msra.mxu0 %v4083
    %4362 = vmatprep.subr.mxu0 0.0
    %4363 = vmatpush2.msra.mxu0 %v4082
    %4364 = vmatprep.subr.mxu0 0.0
    %4365 = vmatpush2.msra.mxu0 %v4081
    %4366 = vmatprep.subr.mxu0 0.0
    %4367 = vmatpush2.msra.mxu0 %v4080
    %4368 = vmatprep.subr.mxu0 0.0
    %4369 = vmatpush2.msra.mxu0 %v4079
    %4370 = vmatprep.subr.mxu0 0.0
    %4371 = vmatpush2.msra.mxu0 %v4078
    %4372 = vmatprep.subr.mxu0 0.0
    %4373 = vmatpush2.msra.mxu0 %v4077
    %4374 = vmatprep.subr.mxu0 0.0
    %4375 = vmatpush2.msra.mxu0 %v4076
    %4376 = vmatprep.subr.mxu0 0.0
    %4377 = vmatpush2.msra.mxu0 %v4075
    %4378 = vmatprep.subr.mxu0 0.0
    %4379 = vmatpush2.msra.mxu0 %v4074
    %4380 = vmatprep.subr.mxu0 0.0
    %4381 = vmatpush2.msra.mxu0 %v4073
    %4382 = vmatprep.subr.mxu0 0.0
    %4383 = vmatpush2.msra.mxu0 %v4072
    %4384 = vmatprep.subr.mxu0 0.0
    %4385 = vmatpush2.msra.mxu0 %v4071
    %4386 = vmatprep.mubr.f32.mxu0 %v4009
    %4387 = vmatmul.mubr.f32.gmra.mxu0 %v3983
    %v4388 = vpop.f32.mrf.mxu0
    %v4389 = vadd.f32 %v4304, %v4388
    %v4390 = vpop.f32.mrf.mxu0
    %4391 = vmatprep.mubr.f32.mxu0 %v4012
    %4392 = vmatmul.mubr.f32.gmra.mxu0 %v3985
    %v4393 = vpop.f32.mrf.mxu0
    %v4394 = vadd.f32 %v4309, %v4393
    %v4395 = vpop.f32.mrf.mxu0
    %4396 = vmatprep.mubr.f32.mxu0 %v4015
    %4397 = vmatmul.mubr.f32.gmra.mxu0 %v3987
    %v4398 = vpop.f32.mrf.mxu0
    %v4399 = vadd.f32 %v4314, %v4398
    %v4400 = vpop.f32.mrf.mxu0
    %4401 = vmatprep.mubr.f32.mxu0 %v4018
    %4402 = vmatmul.mubr.f32.gmra.mxu0 %v3989
    %v4403 = vpop.f32.mrf.mxu0
    %v4404 = vadd.f32 %v4319, %v4403
    %v4405 = vpop.f32.mrf.mxu0
    %4406 = vdwg.mxu0
    %4407 = vmatprep.subr.mxu0 0.0
    %4408 = vmatpush1.msra.mxu0 %v4102
    %4409 = vmatprep.subr.mxu0 0.0
    %4410 = vmatpush1.msra.mxu0 %v4101
    %4411 = vmatprep.subr.mxu0 0.0
    %4412 = vmatpush1.msra.mxu0 %v4100
    %4413 = vmatprep.subr.mxu0 0.0
    %4414 = vmatpush1.msra.mxu0 %v4099
    %4415 = vmatprep.subr.mxu0 0.0
    %4416 = vmatpush1.msra.mxu0 %v4098
    %4417 = vmatprep.subr.mxu0 0.0
    %4418 = vmatpush1.msra.mxu0 %v4097
    %4419 = vmatprep.subr.mxu0 0.0
    %4420 = vmatpush1.msra.mxu0 %v4096
    %4421 = vmatprep.subr.mxu0 0.0
    %4422 = vmatpush1.msra.mxu0 %v4095
    %4423 = vmatprep.subr.mxu0 0.0
    %4424 = vmatpush1.msra.mxu0 %v4094
    %4425 = vmatprep.subr.mxu0 0.0
    %4426 = vmatpush1.msra.mxu0 %v4093
    %4427 = vmatprep.subr.mxu0 0.0
    %4428 = vmatpush1.msra.mxu0 %v4092
    %4429 = vmatprep.subr.mxu0 0.0
    %4430 = vmatpush1.msra.mxu0 %v4091
    %4431 = vmatprep.subr.mxu0 0.0
    %4432 = vmatpush1.msra.mxu0 %v4090
    %4433 = vmatprep.subr.mxu0 0.0
    %4434 = vmatpush1.msra.mxu0 %v4089
    %4435 = vmatprep.subr.mxu0 0.0
    %4436 = vmatpush1.msra.mxu0 %v4088
    %4437 = vmatprep.subr.mxu0 0.0
    %4438 = vmatpush1.msra.mxu0 %v4087
    %4439 = vmatprep.subr.mxu0 0.0
    %4440 = vmatpush2.msra.mxu0 0.0
    %4441 = vmatprep.subr.mxu0 0.0
    %4442 = vmatpush2.msra.mxu0 0.0
    %4443 = vmatprep.subr.mxu0 0.0
    %4444 = vmatpush2.msra.mxu0 0.0
    %4445 = vmatprep.subr.mxu0 0.0
    %4446 = vmatpush2.msra.mxu0 0.0
    %4447 = vmatprep.subr.mxu0 0.0
    %4448 = vmatpush2.msra.mxu0 0.0
    %4449 = vmatprep.subr.mxu0 0.0
    %4450 = vmatpush2.msra.mxu0 0.0
    %4451 = vmatprep.subr.mxu0 0.0
    %4452 = vmatpush2.msra.mxu0 0.0
    %4453 = vmatprep.subr.mxu0 0.0
    %4454 = vmatpush2.msra.mxu0 0.0
    %4455 = vmatprep.subr.mxu0 0.0
    %4456 = vmatpush2.msra.mxu0 0.0
    %4457 = vmatprep.subr.mxu0 0.0
    %4458 = vmatpush2.msra.mxu0 0.0
    %4459 = vmatprep.subr.mxu0 0.0
    %4460 = vmatpush2.msra.mxu0 0.0
    %4461 = vmatprep.subr.mxu0 0.0
    %4462 = vmatpush2.msra.mxu0 0.0
    %4463 = vmatprep.subr.mxu0 0.0
    %4464 = vmatpush2.msra.mxu0 0.0
    %4465 = vmatprep.subr.mxu0 0.0
    %4466 = vmatpush2.msra.mxu0 0.0
    %4467 = vmatprep.subr.mxu0 0.0
    %4468 = vmatpush2.msra.mxu0 0.0
    %4469 = vmatprep.subr.mxu0 0.0
    %4470 = vmatpush2.msra.mxu0 0.0
    %4471 = vmatprep.mubr.f32.mxu0 0.0
    %4472 = vmatmul.mubr.f32.gmra.mxu0 %v4033
    %v4473 = vpop.f32.mrf.mxu0
    %v4474 = vadd.f32 %v4389, %v4473
    %v4475 = vpop.f32.mrf.mxu0
    %4476 = vmatprep.mubr.f32.mxu0 0.0
    %4477 = vmatmul.mubr.f32.gmra.mxu0 %v4036
    %v4478 = vpop.f32.mrf.mxu0
    %v4479 = vadd.f32 %v4394, %v4478
    %v4480 = vpop.f32.mrf.mxu0
    %4481 = vmatprep.mubr.f32.mxu0 0.0
    %4482 = vmatmul.mubr.f32.gmra.mxu0 %v4039
    %v4483 = vpop.f32.mrf.mxu0
    %v4484 = vadd.f32 %v4399, %v4483
    %v4485 = vpop.f32.mrf.mxu0
    %4486 = vmatprep.mubr.f32.mxu0 0.0
    %4487 = vmatmul.mubr.f32.gmra.mxu0 %v4042
    %v4488 = vpop.f32.mrf.mxu0
    %v4489 = vadd.f32 %v4404, %v4488
    %v4490 = vpop.f32.mrf.mxu0
    %4491 = vdwg.mxu0
    %s4492 = scalar_lea.vmem [#allocation14], 768
    %v4493 = vld [vmem:[%s4492] sm:$0xff]
    %v4494 = vld [vmem:[%s4492 + $0x8] sm:$0xff]
    %v4495 = vld [vmem:[%s4492 + $0x10] sm:$0xff]
    %v4496 = vld [vmem:[%s4492 + $0x18] sm:$0xff]
    %v4497 = vld [vmem:[%s4492 + $0x20] sm:$0xff]
    %v4498 = vld [vmem:[%s4492 + $0x28] sm:$0xff]
    %v4499 = vld [vmem:[%s4492 + $0x30] sm:$0xff]
    %v4500 = vld [vmem:[%s4492 + $0x38] sm:$0xff]
    %v4501 = vld [vmem:[%s4492 + $0x40] sm:$0xff]
    %v4502 = vld [vmem:[%s4492 + $0x48] sm:$0xff]
    %v4503 = vld [vmem:[%s4492 + $0x50] sm:$0xff]
    %v4504 = vld [vmem:[%s4492 + $0x58] sm:$0xff]
    %v4505 = vld [vmem:[%s4492 + $0x60] sm:$0xff]
    %v4506 = vld [vmem:[%s4492 + $0x68] sm:$0xff]
    %v4507 = vld [vmem:[%s4492 + $0x70] sm:$0xff]
    %v4508 = vld [vmem:[%s4492 + $0x78] sm:$0xff]
    %v4509 = vld [vmem:[%s4492 + $0x80] sm:$0xff]
    %v4510 = vld [vmem:[%s4492 + $0x88] sm:$0xff]
    %v4511 = vld [vmem:[%s4492 + $0x90] sm:$0xff]
    %v4512 = vld [vmem:[%s4492 + $0x98] sm:$0xff]
    %v4513 = vld [vmem:[%s4492 + $0xa0] sm:$0xff]
    %v4514 = vld [vmem:[%s4492 + $0xa8] sm:$0xff]
    %v4515 = vld [vmem:[%s4492 + $0xb0] sm:$0xff]
    %v4516 = vld [vmem:[%s4492 + $0xb8] sm:$0xff]
    %v4517 = vld [vmem:[%s4492 + $0xc0] sm:$0xff]
    %v4518 = vld [vmem:[%s4492 + $0xc8] sm:$0xff]
    %v4519 = vld [vmem:[%s4492 + $0xd0] sm:$0xff]
    %v4520 = vld [vmem:[%s4492 + $0xd8] sm:$0xff]
    %v4521 = vld [vmem:[%s4492 + $0xe0] sm:$0xff]
    %v4522 = vld [vmem:[%s4492 + $0xe8] sm:$0xff]
    %v4523 = vld [vmem:[%s4492 + $0xf0] sm:$0xff]
    %v4524 = vld [vmem:[%s4492 + $0xf8] sm:$0xff]
    %v4525 = vld [vmem:[%s4492 + $0x100] sm:$0xff]
    %v4526 = vld [vmem:[%s4492 + $0x108] sm:$0xff]
    %v4527 = vld [vmem:[%s4492 + $0x110] sm:$0xff]
    %v4528 = vld [vmem:[%s4492 + $0x118] sm:$0xff]
    %v4529 = vld [vmem:[%s4492 + $0x120] sm:$0xff]
    %v4530 = vld [vmem:[%s4492 + $0x128] sm:$0xff]
    %v4531 = vld [vmem:[%s4492 + $0x130] sm:$0xff]
    %v4532 = vld [vmem:[%s4492 + $0x138] sm:$0xff]
    %v4533 = vld [vmem:[%s4492 + $0x140] sm:$0xff]
    %v4534 = vld [vmem:[%s4492 + $0x148] sm:$0xff]
    %v4535 = vld [vmem:[%s4492 + $0x150] sm:$0xff]
    %v4536 = vld [vmem:[%s4492 + $0x158] sm:$0xff]
    %v4537 = vld [vmem:[%s4492 + $0x160] sm:$0xff]
    %v4538 = vld [vmem:[%s4492 + $0x168] sm:$0xff]
    %v4539 = vld [vmem:[%s4492 + $0x170] sm:$0xff]
    %v4540 = vld [vmem:[%s4492 + $0x178] sm:$0xff]
    %4541 = vmatprep.subr.mxu0 0.0
    %4542 = vmatpush1.msra.mxu0 %v4508
    %4543 = vmatprep.subr.mxu0 0.0
    %4544 = vmatpush1.msra.mxu0 %v4507
    %4545 = vmatprep.subr.mxu0 0.0
    %4546 = vmatpush1.msra.mxu0 %v4506
    %4547 = vmatprep.subr.mxu0 0.0
    %4548 = vmatpush1.msra.mxu0 %v4505
    %4549 = vmatprep.subr.mxu0 0.0
    %4550 = vmatpush1.msra.mxu0 %v4504
    %4551 = vmatprep.subr.mxu0 0.0
    %4552 = vmatpush1.msra.mxu0 %v4503
    %4553 = vmatprep.subr.mxu0 0.0
    %4554 = vmatpush1.msra.mxu0 %v4502
    %4555 = vmatprep.subr.mxu0 0.0
    %4556 = vmatpush1.msra.mxu0 %v4501
    %4557 = vmatprep.subr.mxu0 0.0
    %4558 = vmatpush1.msra.mxu0 %v4500
    %4559 = vmatprep.subr.mxu0 0.0
    %4560 = vmatpush1.msra.mxu0 %v4499
    %4561 = vmatprep.subr.mxu0 0.0
    %4562 = vmatpush1.msra.mxu0 %v4498
    %4563 = vmatprep.subr.mxu0 0.0
    %4564 = vmatpush1.msra.mxu0 %v4497
    %4565 = vmatprep.subr.mxu0 0.0
    %4566 = vmatpush1.msra.mxu0 %v4496
    %4567 = vmatprep.subr.mxu0 0.0
    %4568 = vmatpush1.msra.mxu0 %v4495
    %4569 = vmatprep.subr.mxu0 0.0
    %4570 = vmatpush1.msra.mxu0 %v4494
    %4571 = vmatprep.subr.mxu0 0.0
    %4572 = vmatpush1.msra.mxu0 %v4493
    %4573 = vmatprep.subr.mxu0 0.0
    %4574 = vmatpush2.msra.mxu0 %v4524
    %4575 = vmatprep.subr.mxu0 0.0
    %4576 = vmatpush2.msra.mxu0 %v4523
    %4577 = vmatprep.subr.mxu0 0.0
    %4578 = vmatpush2.msra.mxu0 %v4522
    %4579 = vmatprep.subr.mxu0 0.0
    %4580 = vmatpush2.msra.mxu0 %v4521
    %4581 = vmatprep.subr.mxu0 0.0
    %4582 = vmatpush2.msra.mxu0 %v4520
    %4583 = vmatprep.subr.mxu0 0.0
    %4584 = vmatpush2.msra.mxu0 %v4519
    %4585 = vmatprep.subr.mxu0 0.0
    %4586 = vmatpush2.msra.mxu0 %v4518
    %4587 = vmatprep.subr.mxu0 0.0
    %4588 = vmatpush2.msra.mxu0 %v4517
    %4589 = vmatprep.subr.mxu0 0.0
    %4590 = vmatpush2.msra.mxu0 %v4516
    %4591 = vmatprep.subr.mxu0 0.0
    %4592 = vmatpush2.msra.mxu0 %v4515
    %4593 = vmatprep.subr.mxu0 0.0
    %4594 = vmatpush2.msra.mxu0 %v4514
    %4595 = vmatprep.subr.mxu0 0.0
    %4596 = vmatpush2.msra.mxu0 %v4513
    %4597 = vmatprep.subr.mxu0 0.0
    %4598 = vmatpush2.msra.mxu0 %v4512
    %4599 = vmatprep.subr.mxu0 0.0
    %4600 = vmatpush2.msra.mxu0 %v4511
    %4601 = vmatprep.subr.mxu0 0.0
    %4602 = vmatpush2.msra.mxu0 %v4510
    %4603 = vmatprep.subr.mxu0 0.0
    %4604 = vmatpush2.msra.mxu0 %v4509
    %4605 = vmatprep.mubr.f32.mxu0 %v4015
    %4606 = vmatmul.mubr.f32.gmra.mxu0 %v3987
    %v4607 = vpop.f32.mrf.mxu0
    %v4608 = vadd.f32 0.0, %v4607
    %v4609 = vpop.f32.mrf.mxu0
    %4610 = vmatprep.mubr.f32.mxu0 %v4018
    %4611 = vmatmul.mubr.f32.gmra.mxu0 %v3989
    %v4612 = vpop.f32.mrf.mxu0
    %v4613 = vadd.f32 0.0, %v4612
    %v4614 = vpop.f32.mrf.mxu0
    %4615 = vmatprep.mubr.f32.mxu0 %v4021
    %4616 = vmatmul.mubr.f32.gmra.mxu0 %v3991
    %v4617 = vpop.f32.mrf.mxu0
    %v4618 = vadd.f32 0.0, %v4617
    %v4619 = vpop.f32.mrf.mxu0
    %4620 = vmatprep.mubr.f32.mxu0 %v4024
    %4621 = vmatmul.mubr.f32.gmra.mxu0 %v3993
    %v4622 = vpop.f32.mrf.mxu0
    %v4623 = vadd.f32 0.0, %v4622
    %v4624 = vpop.f32.mrf.mxu0
    %4625 = vdwg.mxu0
    %4626 = vmatprep.subr.mxu0 0.0
    %4627 = vmatpush1.msra.mxu0 %v4540
    %4628 = vmatprep.subr.mxu0 0.0
    %4629 = vmatpush1.msra.mxu0 %v4539
    %4630 = vmatprep.subr.mxu0 0.0
    %4631 = vmatpush1.msra.mxu0 %v4538
    %4632 = vmatprep.subr.mxu0 0.0
    %4633 = vmatpush1.msra.mxu0 %v4537
    %4634 = vmatprep.subr.mxu0 0.0
    %4635 = vmatpush1.msra.mxu0 %v4536
    %4636 = vmatprep.subr.mxu0 0.0
    %4637 = vmatpush1.msra.mxu0 %v4535
    %4638 = vmatprep.subr.mxu0 0.0
    %4639 = vmatpush1.msra.mxu0 %v4534
    %4640 = vmatprep.subr.mxu0 0.0
    %4641 = vmatpush1.msra.mxu0 %v4533
    %4642 = vmatprep.subr.mxu0 0.0
    %4643 = vmatpush1.msra.mxu0 %v4532
    %4644 = vmatprep.subr.mxu0 0.0
    %4645 = vmatpush1.msra.mxu0 %v4531
    %4646 = vmatprep.subr.mxu0 0.0
    %4647 = vmatpush1.msra.mxu0 %v4530
    %4648 = vmatprep.subr.mxu0 0.0
    %4649 = vmatpush1.msra.mxu0 %v4529
    %4650 = vmatprep.subr.mxu0 0.0
    %4651 = vmatpush1.msra.mxu0 %v4528
    %4652 = vmatprep.subr.mxu0 0.0
    %4653 = vmatpush1.msra.mxu0 %v4527
    %4654 = vmatprep.subr.mxu0 0.0
    %4655 = vmatpush1.msra.mxu0 %v4526
    %4656 = vmatprep.subr.mxu0 0.0
    %4657 = vmatpush1.msra.mxu0 %v4525
    %4658 = vmatprep.subr.mxu0 0.0
    %4659 = vmatpush2.msra.mxu0 0.0
    %4660 = vmatprep.subr.mxu0 0.0
    %4661 = vmatpush2.msra.mxu0 0.0
    %4662 = vmatprep.subr.mxu0 0.0
    %4663 = vmatpush2.msra.mxu0 0.0
    %4664 = vmatprep.subr.mxu0 0.0
    %4665 = vmatpush2.msra.mxu0 0.0
    %4666 = vmatprep.subr.mxu0 0.0
    %4667 = vmatpush2.msra.mxu0 0.0
    %4668 = vmatprep.subr.mxu0 0.0
    %4669 = vmatpush2.msra.mxu0 0.0
    %4670 = vmatprep.subr.mxu0 0.0
    %4671 = vmatpush2.msra.mxu0 0.0
    %4672 = vmatprep.subr.mxu0 0.0
    %4673 = vmatpush2.msra.mxu0 0.0
    %4674 = vmatprep.subr.mxu0 0.0
    %4675 = vmatpush2.msra.mxu0 0.0
    %4676 = vmatprep.subr.mxu0 0.0
    %4677 = vmatpush2.msra.mxu0 0.0
    %4678 = vmatprep.subr.mxu0 0.0
    %4679 = vmatpush2.msra.mxu0 0.0
    %4680 = vmatprep.subr.mxu0 0.0
    %4681 = vmatpush2.msra.mxu0 0.0
    %4682 = vmatprep.subr.mxu0 0.0
    %4683 = vmatpush2.msra.mxu0 0.0
    %4684 = vmatprep.subr.mxu0 0.0
    %4685 = vmatpush2.msra.mxu0 0.0
    %4686 = vmatprep.subr.mxu0 0.0
    %4687 = vmatpush2.msra.mxu0 0.0
    %4688 = vmatprep.subr.mxu0 0.0
    %4689 = vmatpush2.msra.mxu0 0.0
    %4690 = vmatprep.mubr.f32.mxu0 0.0
    %4691 = vmatmul.mubr.f32.gmra.mxu0 %v4039
    %v4692 = vpop.f32.mrf.mxu0
    %v4693 = vadd.f32 %v4608, %v4692
    %v4694 = vpop.f32.mrf.mxu0
    %4695 = vmatprep.mubr.f32.mxu0 0.0
    %4696 = vmatmul.mubr.f32.gmra.mxu0 %v4042
    %v4697 = vpop.f32.mrf.mxu0
    %v4698 = vadd.f32 %v4613, %v4697
    %v4699 = vpop.f32.mrf.mxu0
    %4700 = vmatprep.mubr.f32.mxu0 0.0
    %4701 = vmatmul.mubr.f32.gmra.mxu0 %v4045
    %v4702 = vpop.f32.mrf.mxu0
    %v4703 = vadd.f32 %v4618, %v4702
    %v4704 = vpop.f32.mrf.mxu0
    %4705 = vmatprep.mubr.f32.mxu0 0.0
    %4706 = vmatmul.mubr.f32.gmra.mxu0 %v4048
    %v4707 = vpop.f32.mrf.mxu0
    %v4708 = vadd.f32 %v4623, %v4707
    %v4709 = vpop.f32.mrf.mxu0
    %4710 = vdwg.mxu0
    %v4711 = vadd.f32 %v4474, %v4693
    %v4712 = vadd.f32 %v4479, %v4698
    %v4713 = vadd.f32 %v4484, %v4703
    %v4714 = vadd.f32 %v4489, %v4708
    %v4715 = vld [vmem:[%s16] sm:$0x1]
    %v4717 = vlaneseq
    %v4718 = vshrl.u32 %v4717, 7
    %v4719 = vsub.s32 0, %v4718
    %v4720 = vrot.slane %v4715, %v4719
    %v4722 = vadd.f32 %v4711, %v4720
    %v4723 = vadd.f32 %v4712, %v4720
    %v4724 = vadd.f32 %v4713, %v4720
    %v4725 = vadd.f32 %v4714, %v4720
    %v4726 = vadd.f32 %v4722, %v3213
    %v4727 = vadd.f32 %v4723, %v3214
    %v4728 = vadd.f32 %v4724, %v3215
    %v4729 = vadd.f32 %v4725, %v3216
    %v4730 = vmul.f32 %v4726, %v1694
    %v4731 = vmul.f32 %v4727, %v1694
    %v4732 = vmul.f32 %v4728, %v1694
    %v4733 = vmul.f32 %v4729, %v1694
    %4734 = vst [vmem:[#allocation15] sm:$0xff] %v4730
    %4735 = vst [vmem:[#allocation15 + $0x8] sm:$0xff] %v4731
    %4736 = vst [vmem:[#allocation15 + $0x10] sm:$0xff] %v4732
    %4737 = vst [vmem:[#allocation15 + $0x18] sm:$0xff] %v4733
    // Predicated region
    $region98: #{tpu_custom_call.1} parent=1 // pred_check
      _
    $region99: #{tpu_custom_call.1} parent=1 // pred_check_branch
      %4739 = sbr.rel (0) target = $region101
    $region100: #{tpu_custom_call.1} parent=1 // pred_region
      %s4741 = ssub.s32 512, 512
      %4742 = vsyncadd [#allocation5], %s4741
      %s4743 = sshll.u32 [#allocation15], 4
      %s4744 = int_to_ptr.vmem [resolvable:$true] %s4743
      %4749 = dma.vmem_to_hbm [thread:$0]  %s4744, 512, %s17, [#allocation5], 128, 128, 8
    $region101: #{tpu_custom_call.1} parent=1 // pred_fallthru
      _
    // Predicated region
    $region102: #{tpu_custom_call.1} parent=1 // pred_check
      _
    $region103: #{tpu_custom_call.1} parent=1 // pred_check_branch
      %4751 = sbr.rel (0) target = $region105
    $region104: #{tpu_custom_call.1} parent=1 // pred_region
      %4752 = dma.done [#allocation5], 512
    $region105: #{tpu_custom_call.1} parent=1 // pred_fallthru
      _
    %4753 = vsyncpa [#allocation4], 1
    %4754 = vsyncpa [#allocation7], 1
    %4755 = vsyncpa [#allocation10], 1
    %4756 = vsyncpa [#allocation13], 1
    %4757 = vsyncpa [#allocation5], 1

</llo_original>
